<compile_context>
chip_gen: v6e
topology: v6e:2x2x1
jax: 0.10.0
libtpu: 0.0.40
codegen_flags: <defaults>
</compile_context>

<pallas_src>
import functools

import numpy as np
import jax
import jax.numpy as jnp
from jax.experimental import pallas as pl
from jax.experimental.pallas import tpu as pltpu


def _conv_stats_kernel(xflat_ref, w_ref, conv_ref, stats_ref, *, H, W, Wp, K):
    """Per-image: conv via K*K shifted GEMMs + BatchNorm partial sums.

    xflat_ref: (1, C_in, Lpad)    bf16  zero-padded image, rows flattened (row stride Wp)
    w_ref    : (K*K, C_out, C_in) bf16  weights, tap-major
    conv_ref : (1, C_out, H, W)   f32   conv output (valid region)
    stats_ref: (1, C_out, 2)      f32   [:, 0] = sum, [:, 1] = sum of squares over (H, W)
    """
    L = H * Wp  # contiguous window length covering all valid output positions

    # conv[c, h*Wp + w] = sum_{ky,kx} W[:, :, ky, kx] @ xflat[:, (ky*Wp+kx) + (h*Wp+w)]
    acc = None
    for ky in range(K):
        for kx in range(K):
            d = ky * Wp + kx
            xs = xflat_ref[0, :, d:d + L]                          # (C_in, L) bf16
            part = jnp.dot(w_ref[ky * K + kx], xs,
                           preferred_element_type=jnp.float32)     # (C_out, L) f32
            acc = part if acc is None else acc + part

    # Extract the valid (non-padded-width) columns row by row, write them out and
    # accumulate single-pass BN statistics (sum & sum of squares).
    vsum = None
    vsq = None
    for h in range(H):
        row = acc[:, h * Wp:h * Wp + W]                            # (C_out, W)
        conv_ref[0, :, h, :] = row
        vsum = row if vsum is None else vsum + row
        vsq = row * row if vsq is None else vsq + row * row
    stats_ref[0, :, 0:1] = jnp.sum(vsum, axis=1, keepdims=True)
    stats_ref[0, :, 1:2] = jnp.sum(vsq, axis=1, keepdims=True)


def _bn_act_pool_kernel(conv_ref, scale_ref, shift_ref, bmT_ref, out_ref, *,
                        use_abs, activation, pool_k, pool_s, pool_p):
    """Per-image: folded BatchNorm + abs + activation + separable AvgPool2d.

    conv_ref : (1, C_out, H, W)  f32
    scale_ref: (C_out, 1, 1)     f32  = gamma * rsqrt(var + eps)
    shift_ref: (C_out, 1, 1)     f32  = beta - mean * scale
    bmT_ref  : (W, OW)           f32  width-pool matrix (already carries 1/pool_k)
    out_ref  : (1, C_out, OH, OW) f32
    """
    C_out, H, W = conv_ref.shape[1], conv_ref.shape[2], conv_ref.shape[3]
    OH, OW = out_ref.shape[2], out_ref.shape[3]

    # BatchNorm folded into a per-channel FMA (f32 on the VPU).
    y = conv_ref[0] * scale_ref[...] + shift_ref[...]              # (C_out, H, W)
    if use_abs:
        y = jnp.abs(y)
    y = jnp.tanh(y) if activation == "tanh" else jnp.maximum(y, 0.0)

    # Width pooling on the MXU: (C_out*H, W) @ (W, OW).
    yw = jnp.dot(y.reshape(C_out * H, W), bmT_ref[...],
                 preferred_element_type=jnp.float32)               # (C_out*H, OW)
    yw = yw.reshape(C_out, H, OW)

    # Height pooling: clipped shifted-row sums on the VPU.
    # count_include_pad=True -> divisor is always pool_k (zeros outside count).
    inv_k = 1.0 / float(pool_k)
    for oh in range(OH):
        lo = max(0, pool_s * oh - pool_p)
        hi = min(H, pool_s * oh - pool_p + pool_k)
        acc = yw[:, lo, :]
        for h in range(lo + 1, hi):
            acc = acc + yw[:, h, :]
        out_ref[0, :, oh, :] = acc * inv_k


def conv_block_forward(x, w, gamma, beta, *, activation="relu", use_abs=False,
                       eps=1e-5):
    """x: (N, C_in, H, W) NCHW; w: (C_out, C_in, K, K). Returns NCHW output."""
    N, C_in, H, W = x.shape
    C_out, _, K, _ = w.shape
    p = (K - 1) // 2
    Hp, Wp = H + 2 * p, W + 2 * p

    # ---- glue: zero-pad, flatten padded rows (row stride Wp), cast to bf16 ----
    xpad = jnp.pad(x, ((0, 0), (0, 0), (p, p), (p, p)))
    xflat = xpad.reshape(N, C_in, Hp * Wp)
    l_need = Hp * Wp + (K - 1)                    # largest tap shift + window length
    l_pad = ((l_need + 127) // 128) * 128         # lane-align the block
    xflat = jnp.pad(xflat, ((0, 0), (0, 0), (0, l_pad - Hp * Wp)))
    xflat = xflat.astype(jnp.bfloat16)
    wk = jnp.transpose(w, (2, 3, 0, 1)).reshape(K * K, C_out, C_in).astype(jnp.bfloat16)

    cparams = pltpu.CompilerParams(dimension_semantics=("parallel",),
                                   vmem_limit_bytes=32 * 1024 * 1024)

    # ---- pass 1: conv (25 shifted bf16 GEMMs) + per-image BN partial sums ----
    conv_kernel = functools.partial(_conv_stats_kernel, H=H, W=W, Wp=Wp, K=K)
    conv, stats = pl.pallas_call(
        conv_kernel,
        out_shape=(jax.ShapeDtypeStruct((N, C_out, H, W), jnp.float32),
                   jax.ShapeDtypeStruct((N, C_out, 2), jnp.float32)),
        grid=(N,),
        in_specs=[pl.BlockSpec((1, C_in, l_pad), lambda n: (n, 0, 0)),
                  pl.BlockSpec((K * K, C_out, C_in), lambda n: (0, 0, 0))],
        out_specs=(pl.BlockSpec((1, C_out, H, W), lambda n: (n, 0, 0, 0)),
                   pl.BlockSpec((1, C_out, 2), lambda n: (n, 0, 0))),
        compiler_params=cparams,
    )(xflat, wk)

    # ---- fold BatchNorm (training-mode batch stats, biased variance) ----
    # O(C_out) scalar math only; the heavy reduction happened in-kernel.
    cnt = float(N * H * W)
    tot = jnp.sum(stats, axis=0)                  # (C_out, 2)
    mean = tot[:, 0] / cnt
    var = tot[:, 1] / cnt - mean * mean
    scale = gamma.astype(jnp.float32) * jax.lax.rsqrt(var + eps)
    shift = beta.astype(jnp.float32) - mean * scale
    scale3 = scale.reshape(C_out, 1, 1)
    shift3 = shift.reshape(C_out, 1, 1)

    # ---- pass 2: BN scale/shift + abs/activation + separable avg-pool ----
    pk, ps, pp = 5, 2, 2
    OH = (H + 2 * pp - pk) // ps + 1
    OW = (W + 2 * pp - pk) // ps + 1
    ow_i = np.arange(OW)[:, None]
    w_i = np.arange(W)[None, :]
    bm = (((w_i >= ps * ow_i - pp) & (w_i <= ps * ow_i - pp + pk - 1))
          .astype(np.float32) / float(pk))        # (OW, W) width-pool weights (1/5 each)
    bmT = jnp.asarray(bm.T)                       # (W, OW)

    pool_kernel = functools.partial(_bn_act_pool_kernel, use_abs=use_abs,
                                    activation=activation,
                                    pool_k=pk, pool_s=ps, pool_p=pp)
    out = pl.pallas_call(
        pool_kernel,
        out_shape=jax.ShapeDtypeStruct((N, C_out, OH, OW), jnp.float32),
        grid=(N,),
        in_specs=[pl.BlockSpec((1, C_out, H, W), lambda n: (n, 0, 0, 0)),
                  pl.BlockSpec((C_out, 1, 1), lambda n: (0, 0, 0)),
                  pl.BlockSpec((C_out, 1, 1), lambda n: (0, 0, 0)),
                  pl.BlockSpec((W, OW), lambda n: (0, 0))],
        out_specs=pl.BlockSpec((1, C_out, OH, OW), lambda n: (n, 0, 0, 0)),
        compiler_params=cparams,
    )(conv, scale3, shift3, bmT)
    return out


def conv_block_reference(x, w, gamma, beta, *, activation="relu",
                         use_abs=False, eps=1e-5):
    """Pure-JAX reference (matches the PyTorch module's forward)."""
    K = w.shape[-1]
    p = (K - 1) // 2
    conv = jax.lax.conv_general_dilated(
        x, w, window_strides=(1, 1), padding=((p, p), (p, p)),
        dimension_numbers=("NCHW", "OIHW", "NCHW"),
        precision=jax.lax.Precision.HIGHEST)
    mean = conv.mean(axis=(0, 2, 3), keepdims=True)
    var = jnp.mean(jnp.square(conv - mean), axis=(0, 2, 3), keepdims=True)
    y = (conv - mean) / jnp.sqrt(var + eps)
    y = y * gamma.reshape(1, -1, 1, 1) + beta.reshape(1, -1, 1, 1)
    if use_abs:
        y = jnp.abs(y)
    y = jnp.tanh(y) if activation == "tanh" else jnp.maximum(y, 0.0)
    s = jax.lax.reduce_window(
        y, 0.0, jax.lax.add,
        window_dimensions=(1, 1, 5, 5),
        window_strides=(1, 1, 2, 2),
        padding=((0, 0), (0, 0), (2, 2), (2, 2)))
    return s / 25.0  # count_include_pad=True


if __name__ == "__main__":
    N, C_in, C_out, H, W, K = 2, 4, 8, 16, 16, 5
    activation, use_abs = "tanh", True   # XuNet's first ConvBlock configuration

    key = jax.random.PRNGKey(0)
    kx, kw, kg, kb = jax.random.split(key, 4)
    x = jax.random.normal(kx, (N, C_in, H, W), jnp.float32)
    w = 0.1 * jax.random.normal(kw, (C_out, C_in, K, K), jnp.float32)
    gamma = 1.0 + 0.1 * jax.random.normal(kg, (C_out,), jnp.float32)
    beta = 0.1 * jax.random.normal(kb, (C_out,), jnp.float32)

    out = conv_block_forward(x, w, gamma, beta,
                             activation=activation, use_abs=use_abs)
    out = jax.block_until_ready(out)

    ref = conv_block_reference(x, w, gamma, beta,
                               activation=activation, use_abs=use_abs)
    assert out.shape == ref.shape == (N, C_out, 8, 8), (out.shape, ref.shape)
    max_err = float(jnp.max(jnp.abs(out - ref)))
    assert max_err < 5e-2, f"max abs err {max_err}"
    print("KERNEL_OK")
</pallas_src>

<mosaic_0001>
module attributes {stable_mosaic.version = 11 : i64} {
  func.func @_conv_stats_kernel(%arg0: i32, %arg1: memref<1x4x512xbf16, #tpu.memory_space<vmem>>, %arg2: memref<25x8x4xbf16, #tpu.memory_space<vmem>>, %arg3: memref<1x8x16x16xf32, #tpu.memory_space<vmem>>, %arg4: memref<1x8x2xf32, #tpu.memory_space<vmem>>) attributes {dimension_semantics = [#tpu.dimension_semantics<parallel>], iteration_bounds = array<i64: 2>, scalar_prefetch = 0 : i64, scratch_operands = 0 : i64, tpu.core_type = #tpu.core_type<tc>, window_params = [{transform_indices = @transform_0, window_bounds = array<i64: 1, 4, 512>}, {pipeline_mode = #tpu.pipeline_mode<synchronous>, transform_indices = @transform_1, window_bounds = array<i64: 25, 8, 4>}, {transform_indices = @transform_2, window_bounds = array<i64: 1, 8, 16, 16>}, {transform_indices = @transform_3, window_bounds = array<i64: 1, 8, 2>}]} {
    %c0 = arith.constant 0 : index
    %c0_0 = arith.constant 0 : index
    %c0_1 = arith.constant 0 : index
    %0 = vector.load %arg1[%c0, %c0_0, %c0_1] : memref<1x4x512xbf16, #tpu.memory_space<vmem>>, vector<1x4x320xbf16>
    %1 = vector.shape_cast %0 : vector<1x4x320xbf16> to vector<4x320xbf16>
    %c0_2 = arith.constant 0 : index
    %c0_3 = arith.constant 0 : index
    %c0_4 = arith.constant 0 : index
    %2 = vector.load %arg2[%c0_2, %c0_3, %c0_4] : memref<25x8x4xbf16, #tpu.memory_space<vmem>>, vector<1x8x4xbf16>
    %3 = vector.shape_cast %2 : vector<1x8x4xbf16> to vector<8x4xbf16>
    %cst = arith.constant dense<0.000000e+00> : vector<8x320xf32>
    %4 = tpu.matmul %3, %1, %cst {dimension_numbers = #tpu.dot_dimension_numbers<[1], [0], [0], [1], [0, 0, 1, 1], [], []>} : vector<8x4xbf16>, vector<4x320xbf16>, vector<8x320xf32> -> vector<8x320xf32>
    %c0_5 = arith.constant 0 : index
    %c0_6 = arith.constant 0 : index
    %c1 = arith.constant 1 : index
    %5 = vector.load %arg1[%c0_5, %c0_6, %c1] : memref<1x4x512xbf16, #tpu.memory_space<vmem>>, vector<1x4x320xbf16>
    %6 = vector.shape_cast %5 : vector<1x4x320xbf16> to vector<4x320xbf16>
    %c1_7 = arith.constant 1 : index
    %c0_8 = arith.constant 0 : index
    %c0_9 = arith.constant 0 : index
    %7 = vector.load %arg2[%c1_7, %c0_8, %c0_9] : memref<25x8x4xbf16, #tpu.memory_space<vmem>>, vector<1x8x4xbf16>
    %8 = vector.shape_cast %7 : vector<1x8x4xbf16> to vector<8x4xbf16>
    %cst_10 = arith.constant dense<0.000000e+00> : vector<8x320xf32>
    %9 = tpu.matmul %8, %6, %cst_10 {dimension_numbers = #tpu.dot_dimension_numbers<[1], [0], [0], [1], [0, 0, 1, 1], [], []>} : vector<8x4xbf16>, vector<4x320xbf16>, vector<8x320xf32> -> vector<8x320xf32>
    %10 = arith.addf %4, %9 : vector<8x320xf32>
    %c0_11 = arith.constant 0 : index
    %c0_12 = arith.constant 0 : index
    %c2 = arith.constant 2 : index
    %11 = vector.load %arg1[%c0_11, %c0_12, %c2] : memref<1x4x512xbf16, #tpu.memory_space<vmem>>, vector<1x4x320xbf16>
    %12 = vector.shape_cast %11 : vector<1x4x320xbf16> to vector<4x320xbf16>
    %c2_13 = arith.constant 2 : index
    %c0_14 = arith.constant 0 : index
    %c0_15 = arith.constant 0 : index
    %13 = vector.load %arg2[%c2_13, %c0_14, %c0_15] : memref<25x8x4xbf16, #tpu.memory_space<vmem>>, vector<1x8x4xbf16>
    %14 = vector.shape_cast %13 : vector<1x8x4xbf16> to vector<8x4xbf16>
    %cst_16 = arith.constant dense<0.000000e+00> : vector<8x320xf32>
    %15 = tpu.matmul %14, %12, %cst_16 {dimension_numbers = #tpu.dot_dimension_numbers<[1], [0], [0], [1], [0, 0, 1, 1], [], []>} : vector<8x4xbf16>, vector<4x320xbf16>, vector<8x320xf32> -> vector<8x320xf32>
    %16 = arith.addf %10, %15 : vector<8x320xf32>
    %c0_17 = arith.constant 0 : index
    %c0_18 = arith.constant 0 : index
    %c3 = arith.constant 3 : index
    %17 = vector.load %arg1[%c0_17, %c0_18, %c3] : memref<1x4x512xbf16, #tpu.memory_space<vmem>>, vector<1x4x320xbf16>
    %18 = vector.shape_cast %17 : vector<1x4x320xbf16> to vector<4x320xbf16>
    %c3_19 = arith.constant 3 : index
    %c0_20 = arith.constant 0 : index
    %c0_21 = arith.constant 0 : index
    %19 = vector.load %arg2[%c3_19, %c0_20, %c0_21] : memref<25x8x4xbf16, #tpu.memory_space<vmem>>, vector<1x8x4xbf16>
    %20 = vector.shape_cast %19 : vector<1x8x4xbf16> to vector<8x4xbf16>
    %cst_22 = arith.constant dense<0.000000e+00> : vector<8x320xf32>
    %21 = tpu.matmul %20, %18, %cst_22 {dimension_numbers = #tpu.dot_dimension_numbers<[1], [0], [0], [1], [0, 0, 1, 1], [], []>} : vector<8x4xbf16>, vector<4x320xbf16>, vector<8x320xf32> -> vector<8x320xf32>
    %22 = arith.addf %16, %21 : vector<8x320xf32>
    %c0_23 = arith.constant 0 : index
    %c0_24 = arith.constant 0 : index
    %c4 = arith.constant 4 : index
    %23 = vector.load %arg1[%c0_23, %c0_24, %c4] : memref<1x4x512xbf16, #tpu.memory_space<vmem>>, vector<1x4x320xbf16>
    %24 = vector.shape_cast %23 : vector<1x4x320xbf16> to vector<4x320xbf16>
    %c4_25 = arith.constant 4 : index
    %c0_26 = arith.constant 0 : index
    %c0_27 = arith.constant 0 : index
    %25 = vector.load %arg2[%c4_25, %c0_26, %c0_27] : memref<25x8x4xbf16, #tpu.memory_space<vmem>>, vector<1x8x4xbf16>
    %26 = vector.shape_cast %25 : vector<1x8x4xbf16> to vector<8x4xbf16>
    %cst_28 = arith.constant dense<0.000000e+00> : vector<8x320xf32>
    %27 = tpu.matmul %26, %24, %cst_28 {dimension_numbers = #tpu.dot_dimension_numbers<[1], [0], [0], [1], [0, 0, 1, 1], [], []>} : vector<8x4xbf16>, vector<4x320xbf16>, vector<8x320xf32> -> vector<8x320xf32>
    %28 = arith.addf %22, %27 : vector<8x320xf32>
    %c0_29 = arith.constant 0 : index
    %c0_30 = arith.constant 0 : index
    %c20 = arith.constant 20 : index
    %29 = vector.load %arg1[%c0_29, %c0_30, %c20] : memref<1x4x512xbf16, #tpu.memory_space<vmem>>, vector<1x4x320xbf16>
    %30 = vector.shape_cast %29 : vector<1x4x320xbf16> to vector<4x320xbf16>
    %c5 = arith.constant 5 : index
    %c0_31 = arith.constant 0 : index
    %c0_32 = arith.constant 0 : index
    %31 = vector.load %arg2[%c5, %c0_31, %c0_32] : memref<25x8x4xbf16, #tpu.memory_space<vmem>>, vector<1x8x4xbf16>
    %32 = vector.shape_cast %31 : vector<1x8x4xbf16> to vector<8x4xbf16>
    %cst_33 = arith.constant dense<0.000000e+00> : vector<8x320xf32>
    %33 = tpu.matmul %32, %30, %cst_33 {dimension_numbers = #tpu.dot_dimension_numbers<[1], [0], [0], [1], [0, 0, 1, 1], [], []>} : vector<8x4xbf16>, vector<4x320xbf16>, vector<8x320xf32> -> vector<8x320xf32>
    %34 = arith.addf %28, %33 : vector<8x320xf32>
    %c0_34 = arith.constant 0 : index
    %c0_35 = arith.constant 0 : index
    %c21 = arith.constant 21 : index
    %35 = vector.load %arg1[%c0_34, %c0_35, %c21] : memref<1x4x512xbf16, #tpu.memory_space<vmem>>, vector<1x4x320xbf16>
    %36 = vector.shape_cast %35 : vector<1x4x320xbf16> to vector<4x320xbf16>
    %c6 = arith.constant 6 : index
    %c0_36 = arith.constant 0 : index
    %c0_37 = arith.constant 0 : index
    %37 = vector.load %arg2[%c6, %c0_36, %c0_37] : memref<25x8x4xbf16, #tpu.memory_space<vmem>>, vector<1x8x4xbf16>
    %38 = vector.shape_cast %37 : vector<1x8x4xbf16> to vector<8x4xbf16>
    %cst_38 = arith.constant dense<0.000000e+00> : vector<8x320xf32>
    %39 = tpu.matmul %38, %36, %cst_38 {dimension_numbers = #tpu.dot_dimension_numbers<[1], [0], [0], [1], [0, 0, 1, 1], [], []>} : vector<8x4xbf16>, vector<4x320xbf16>, vector<8x320xf32> -> vector<8x320xf32>
    %40 = arith.addf %34, %39 : vector<8x320xf32>
    %c0_39 = arith.constant 0 : index
    %c0_40 = arith.constant 0 : index
    %c22 = arith.constant 22 : index
    %41 = vector.load %arg1[%c0_39, %c0_40, %c22] : memref<1x4x512xbf16, #tpu.memory_space<vmem>>, vector<1x4x320xbf16>
    %42 = vector.shape_cast %41 : vector<1x4x320xbf16> to vector<4x320xbf16>
    %c7 = arith.constant 7 : index
    %c0_41 = arith.constant 0 : index
    %c0_42 = arith.constant 0 : index
    %43 = vector.load %arg2[%c7, %c0_41, %c0_42] : memref<25x8x4xbf16, #tpu.memory_space<vmem>>, vector<1x8x4xbf16>
    %44 = vector.shape_cast %43 : vector<1x8x4xbf16> to vector<8x4xbf16>
    %cst_43 = arith.constant dense<0.000000e+00> : vector<8x320xf32>
    %45 = tpu.matmul %44, %42, %cst_43 {dimension_numbers = #tpu.dot_dimension_numbers<[1], [0], [0], [1], [0, 0, 1, 1], [], []>} : vector<8x4xbf16>, vector<4x320xbf16>, vector<8x320xf32> -> vector<8x320xf32>
    %46 = arith.addf %40, %45 : vector<8x320xf32>
    %c0_44 = arith.constant 0 : index
    %c0_45 = arith.constant 0 : index
    %c23 = arith.constant 23 : index
    %47 = vector.load %arg1[%c0_44, %c0_45, %c23] : memref<1x4x512xbf16, #tpu.memory_space<vmem>>, vector<1x4x320xbf16>
    %48 = vector.shape_cast %47 : vector<1x4x320xbf16> to vector<4x320xbf16>
    %c8 = arith.constant 8 : index
    %c0_46 = arith.constant 0 : index
    %c0_47 = arith.constant 0 : index
    %49 = vector.load %arg2[%c8, %c0_46, %c0_47] : memref<25x8x4xbf16, #tpu.memory_space<vmem>>, vector<1x8x4xbf16>
    %50 = vector.shape_cast %49 : vector<1x8x4xbf16> to vector<8x4xbf16>
    %cst_48 = arith.constant dense<0.000000e+00> : vector<8x320xf32>
    %51 = tpu.matmul %50, %48, %cst_48 {dimension_numbers = #tpu.dot_dimension_numbers<[1], [0], [0], [1], [0, 0, 1, 1], [], []>} : vector<8x4xbf16>, vector<4x320xbf16>, vector<8x320xf32> -> vector<8x320xf32>
    %52 = arith.addf %46, %51 : vector<8x320xf32>
    %c0_49 = arith.constant 0 : index
    %c0_50 = arith.constant 0 : index
    %c24 = arith.constant 24 : index
    %53 = vector.load %arg1[%c0_49, %c0_50, %c24] : memref<1x4x512xbf16, #tpu.memory_space<vmem>>, vector<1x4x320xbf16>
    %54 = vector.shape_cast %53 : vector<1x4x320xbf16> to vector<4x320xbf16>
    %c9 = arith.constant 9 : index
    %c0_51 = arith.constant 0 : index
    %c0_52 = arith.constant 0 : index
    %55 = vector.load %arg2[%c9, %c0_51, %c0_52] : memref<25x8x4xbf16, #tpu.memory_space<vmem>>, vector<1x8x4xbf16>
    %56 = vector.shape_cast %55 : vector<1x8x4xbf16> to vector<8x4xbf16>
    %cst_53 = arith.constant dense<0.000000e+00> : vector<8x320xf32>
    %57 = tpu.matmul %56, %54, %cst_53 {dimension_numbers = #tpu.dot_dimension_numbers<[1], [0], [0], [1], [0, 0, 1, 1], [], []>} : vector<8x4xbf16>, vector<4x320xbf16>, vector<8x320xf32> -> vector<8x320xf32>
    %58 = arith.addf %52, %57 : vector<8x320xf32>
    %c0_54 = arith.constant 0 : index
    %c0_55 = arith.constant 0 : index
    %c40 = arith.constant 40 : index
    %59 = vector.load %arg1[%c0_54, %c0_55, %c40] : memref<1x4x512xbf16, #tpu.memory_space<vmem>>, vector<1x4x320xbf16>
    %60 = vector.shape_cast %59 : vector<1x4x320xbf16> to vector<4x320xbf16>
    %c10 = arith.constant 10 : index
    %c0_56 = arith.constant 0 : index
    %c0_57 = arith.constant 0 : index
    %61 = vector.load %arg2[%c10, %c0_56, %c0_57] : memref<25x8x4xbf16, #tpu.memory_space<vmem>>, vector<1x8x4xbf16>
    %62 = vector.shape_cast %61 : vector<1x8x4xbf16> to vector<8x4xbf16>
    %cst_58 = arith.constant dense<0.000000e+00> : vector<8x320xf32>
    %63 = tpu.matmul %62, %60, %cst_58 {dimension_numbers = #tpu.dot_dimension_numbers<[1], [0], [0], [1], [0, 0, 1, 1], [], []>} : vector<8x4xbf16>, vector<4x320xbf16>, vector<8x320xf32> -> vector<8x320xf32>
    %64 = arith.addf %58, %63 : vector<8x320xf32>
    %c0_59 = arith.constant 0 : index
    %c0_60 = arith.constant 0 : index
    %c41 = arith.constant 41 : index
    %65 = vector.load %arg1[%c0_59, %c0_60, %c41] : memref<1x4x512xbf16, #tpu.memory_space<vmem>>, vector<1x4x320xbf16>
    %66 = vector.shape_cast %65 : vector<1x4x320xbf16> to vector<4x320xbf16>
    %c11 = arith.constant 11 : index
    %c0_61 = arith.constant 0 : index
    %c0_62 = arith.constant 0 : index
    %67 = vector.load %arg2[%c11, %c0_61, %c0_62] : memref<25x8x4xbf16, #tpu.memory_space<vmem>>, vector<1x8x4xbf16>
    %68 = vector.shape_cast %67 : vector<1x8x4xbf16> to vector<8x4xbf16>
    %cst_63 = arith.constant dense<0.000000e+00> : vector<8x320xf32>
    %69 = tpu.matmul %68, %66, %cst_63 {dimension_numbers = #tpu.dot_dimension_numbers<[1], [0], [0], [1], [0, 0, 1, 1], [], []>} : vector<8x4xbf16>, vector<4x320xbf16>, vector<8x320xf32> -> vector<8x320xf32>
    %70 = arith.addf %64, %69 : vector<8x320xf32>
    %c0_64 = arith.constant 0 : index
    %c0_65 = arith.constant 0 : index
    %c42 = arith.constant 42 : index
    %71 = vector.load %arg1[%c0_64, %c0_65, %c42] : memref<1x4x512xbf16, #tpu.memory_space<vmem>>, vector<1x4x320xbf16>
    %72 = vector.shape_cast %71 : vector<1x4x320xbf16> to vector<4x320xbf16>
    %c12 = arith.constant 12 : index
    %c0_66 = arith.constant 0 : index
    %c0_67 = arith.constant 0 : index
    %73 = vector.load %arg2[%c12, %c0_66, %c0_67] : memref<25x8x4xbf16, #tpu.memory_space<vmem>>, vector<1x8x4xbf16>
    %74 = vector.shape_cast %73 : vector<1x8x4xbf16> to vector<8x4xbf16>
    %cst_68 = arith.constant dense<0.000000e+00> : vector<8x320xf32>
    %75 = tpu.matmul %74, %72, %cst_68 {dimension_numbers = #tpu.dot_dimension_numbers<[1], [0], [0], [1], [0, 0, 1, 1], [], []>} : vector<8x4xbf16>, vector<4x320xbf16>, vector<8x320xf32> -> vector<8x320xf32>
    %76 = arith.addf %70, %75 : vector<8x320xf32>
    %c0_69 = arith.constant 0 : index
    %c0_70 = arith.constant 0 : index
    %c43 = arith.constant 43 : index
    %77 = vector.load %arg1[%c0_69, %c0_70, %c43] : memref<1x4x512xbf16, #tpu.memory_space<vmem>>, vector<1x4x320xbf16>
    %78 = vector.shape_cast %77 : vector<1x4x320xbf16> to vector<4x320xbf16>
    %c13 = arith.constant 13 : index
    %c0_71 = arith.constant 0 : index
    %c0_72 = arith.constant 0 : index
    %79 = vector.load %arg2[%c13, %c0_71, %c0_72] : memref<25x8x4xbf16, #tpu.memory_space<vmem>>, vector<1x8x4xbf16>
    %80 = vector.shape_cast %79 : vector<1x8x4xbf16> to vector<8x4xbf16>
    %cst_73 = arith.constant dense<0.000000e+00> : vector<8x320xf32>
    %81 = tpu.matmul %80, %78, %cst_73 {dimension_numbers = #tpu.dot_dimension_numbers<[1], [0], [0], [1], [0, 0, 1, 1], [], []>} : vector<8x4xbf16>, vector<4x320xbf16>, vector<8x320xf32> -> vector<8x320xf32>
    %82 = arith.addf %76, %81 : vector<8x320xf32>
    %c0_74 = arith.constant 0 : index
    %c0_75 = arith.constant 0 : index
    %c44 = arith.constant 44 : index
    %83 = vector.load %arg1[%c0_74, %c0_75, %c44] : memref<1x4x512xbf16, #tpu.memory_space<vmem>>, vector<1x4x320xbf16>
    %84 = vector.shape_cast %83 : vector<1x4x320xbf16> to vector<4x320xbf16>
    %c14 = arith.constant 14 : index
    %c0_76 = arith.constant 0 : index
    %c0_77 = arith.constant 0 : index
    %85 = vector.load %arg2[%c14, %c0_76, %c0_77] : memref<25x8x4xbf16, #tpu.memory_space<vmem>>, vector<1x8x4xbf16>
    %86 = vector.shape_cast %85 : vector<1x8x4xbf16> to vector<8x4xbf16>
    %cst_78 = arith.constant dense<0.000000e+00> : vector<8x320xf32>
    %87 = tpu.matmul %86, %84, %cst_78 {dimension_numbers = #tpu.dot_dimension_numbers<[1], [0], [0], [1], [0, 0, 1, 1], [], []>} : vector<8x4xbf16>, vector<4x320xbf16>, vector<8x320xf32> -> vector<8x320xf32>
    %88 = arith.addf %82, %87 : vector<8x320xf32>
    %c0_79 = arith.constant 0 : index
    %c0_80 = arith.constant 0 : index
    %c60 = arith.constant 60 : index
    %89 = vector.load %arg1[%c0_79, %c0_80, %c60] : memref<1x4x512xbf16, #tpu.memory_space<vmem>>, vector<1x4x320xbf16>
    %90 = vector.shape_cast %89 : vector<1x4x320xbf16> to vector<4x320xbf16>
    %c15 = arith.constant 15 : index
    %c0_81 = arith.constant 0 : index
    %c0_82 = arith.constant 0 : index
    %91 = vector.load %arg2[%c15, %c0_81, %c0_82] : memref<25x8x4xbf16, #tpu.memory_space<vmem>>, vector<1x8x4xbf16>
    %92 = vector.shape_cast %91 : vector<1x8x4xbf16> to vector<8x4xbf16>
    %cst_83 = arith.constant dense<0.000000e+00> : vector<8x320xf32>
    %93 = tpu.matmul %92, %90, %cst_83 {dimension_numbers = #tpu.dot_dimension_numbers<[1], [0], [0], [1], [0, 0, 1, 1], [], []>} : vector<8x4xbf16>, vector<4x320xbf16>, vector<8x320xf32> -> vector<8x320xf32>
    %94 = arith.addf %88, %93 : vector<8x320xf32>
    %c0_84 = arith.constant 0 : index
    %c0_85 = arith.constant 0 : index
    %c61 = arith.constant 61 : index
    %95 = vector.load %arg1[%c0_84, %c0_85, %c61] : memref<1x4x512xbf16, #tpu.memory_space<vmem>>, vector<1x4x320xbf16>
    %96 = vector.shape_cast %95 : vector<1x4x320xbf16> to vector<4x320xbf16>
    %c16 = arith.constant 16 : index
    %c0_86 = arith.constant 0 : index
    %c0_87 = arith.constant 0 : index
    %97 = vector.load %arg2[%c16, %c0_86, %c0_87] : memref<25x8x4xbf16, #tpu.memory_space<vmem>>, vector<1x8x4xbf16>
    %98 = vector.shape_cast %97 : vector<1x8x4xbf16> to vector<8x4xbf16>
    %cst_88 = arith.constant dense<0.000000e+00> : vector<8x320xf32>
    %99 = tpu.matmul %98, %96, %cst_88 {dimension_numbers = #tpu.dot_dimension_numbers<[1], [0], [0], [1], [0, 0, 1, 1], [], []>} : vector<8x4xbf16>, vector<4x320xbf16>, vector<8x320xf32> -> vector<8x320xf32>
    %100 = arith.addf %94, %99 : vector<8x320xf32>
    %c0_89 = arith.constant 0 : index
    %c0_90 = arith.constant 0 : index
    %c62 = arith.constant 62 : index
    %101 = vector.load %arg1[%c0_89, %c0_90, %c62] : memref<1x4x512xbf16, #tpu.memory_space<vmem>>, vector<1x4x320xbf16>
    %102 = vector.shape_cast %101 : vector<1x4x320xbf16> to vector<4x320xbf16>
    %c17 = arith.constant 17 : index
    %c0_91 = arith.constant 0 : index
    %c0_92 = arith.constant 0 : index
    %103 = vector.load %arg2[%c17, %c0_91, %c0_92] : memref<25x8x4xbf16, #tpu.memory_space<vmem>>, vector<1x8x4xbf16>
    %104 = vector.shape_cast %103 : vector<1x8x4xbf16> to vector<8x4xbf16>
    %cst_93 = arith.constant dense<0.000000e+00> : vector<8x320xf32>
    %105 = tpu.matmul %104, %102, %cst_93 {dimension_numbers = #tpu.dot_dimension_numbers<[1], [0], [0], [1], [0, 0, 1, 1], [], []>} : vector<8x4xbf16>, vector<4x320xbf16>, vector<8x320xf32> -> vector<8x320xf32>
    %106 = arith.addf %100, %105 : vector<8x320xf32>
    %c0_94 = arith.constant 0 : index
    %c0_95 = arith.constant 0 : index
    %c63 = arith.constant 63 : index
    %107 = vector.load %arg1[%c0_94, %c0_95, %c63] : memref<1x4x512xbf16, #tpu.memory_space<vmem>>, vector<1x4x320xbf16>
    %108 = vector.shape_cast %107 : vector<1x4x320xbf16> to vector<4x320xbf16>
    %c18 = arith.constant 18 : index
    %c0_96 = arith.constant 0 : index
    %c0_97 = arith.constant 0 : index
    %109 = vector.load %arg2[%c18, %c0_96, %c0_97] : memref<25x8x4xbf16, #tpu.memory_space<vmem>>, vector<1x8x4xbf16>
    %110 = vector.shape_cast %109 : vector<1x8x4xbf16> to vector<8x4xbf16>
    %cst_98 = arith.constant dense<0.000000e+00> : vector<8x320xf32>
    %111 = tpu.matmul %110, %108, %cst_98 {dimension_numbers = #tpu.dot_dimension_numbers<[1], [0], [0], [1], [0, 0, 1, 1], [], []>} : vector<8x4xbf16>, vector<4x320xbf16>, vector<8x320xf32> -> vector<8x320xf32>
    %112 = arith.addf %106, %111 : vector<8x320xf32>
    %c0_99 = arith.constant 0 : index
    %c0_100 = arith.constant 0 : index
    %c64 = arith.constant 64 : index
    %113 = vector.load %arg1[%c0_99, %c0_100, %c64] : memref<1x4x512xbf16, #tpu.memory_space<vmem>>, vector<1x4x320xbf16>
    %114 = vector.shape_cast %113 : vector<1x4x320xbf16> to vector<4x320xbf16>
    %c19 = arith.constant 19 : index
    %c0_101 = arith.constant 0 : index
    %c0_102 = arith.constant 0 : index
    %115 = vector.load %arg2[%c19, %c0_101, %c0_102] : memref<25x8x4xbf16, #tpu.memory_space<vmem>>, vector<1x8x4xbf16>
    %116 = vector.shape_cast %115 : vector<1x8x4xbf16> to vector<8x4xbf16>
    %cst_103 = arith.constant dense<0.000000e+00> : vector<8x320xf32>
    %117 = tpu.matmul %116, %114, %cst_103 {dimension_numbers = #tpu.dot_dimension_numbers<[1], [0], [0], [1], [0, 0, 1, 1], [], []>} : vector<8x4xbf16>, vector<4x320xbf16>, vector<8x320xf32> -> vector<8x320xf32>
    %118 = arith.addf %112, %117 : vector<8x320xf32>
    %c0_104 = arith.constant 0 : index
    %c0_105 = arith.constant 0 : index
    %c80 = arith.constant 80 : index
    %119 = vector.load %arg1[%c0_104, %c0_105, %c80] : memref<1x4x512xbf16, #tpu.memory_space<vmem>>, vector<1x4x320xbf16>
    %120 = vector.shape_cast %119 : vector<1x4x320xbf16> to vector<4x320xbf16>
    %c20_106 = arith.constant 20 : index
    %c0_107 = arith.constant 0 : index
    %c0_108 = arith.constant 0 : index
    %121 = vector.load %arg2[%c20_106, %c0_107, %c0_108] : memref<25x8x4xbf16, #tpu.memory_space<vmem>>, vector<1x8x4xbf16>
    %122 = vector.shape_cast %121 : vector<1x8x4xbf16> to vector<8x4xbf16>
    %cst_109 = arith.constant dense<0.000000e+00> : vector<8x320xf32>
    %123 = tpu.matmul %122, %120, %cst_109 {dimension_numbers = #tpu.dot_dimension_numbers<[1], [0], [0], [1], [0, 0, 1, 1], [], []>} : vector<8x4xbf16>, vector<4x320xbf16>, vector<8x320xf32> -> vector<8x320xf32>
    %124 = arith.addf %118, %123 : vector<8x320xf32>
    %c0_110 = arith.constant 0 : index
    %c0_111 = arith.constant 0 : index
    %c81 = arith.constant 81 : index
    %125 = vector.load %arg1[%c0_110, %c0_111, %c81] : memref<1x4x512xbf16, #tpu.memory_space<vmem>>, vector<1x4x320xbf16>
    %126 = vector.shape_cast %125 : vector<1x4x320xbf16> to vector<4x320xbf16>
    %c21_112 = arith.constant 21 : index
    %c0_113 = arith.constant 0 : index
    %c0_114 = arith.constant 0 : index
    %127 = vector.load %arg2[%c21_112, %c0_113, %c0_114] : memref<25x8x4xbf16, #tpu.memory_space<vmem>>, vector<1x8x4xbf16>
    %128 = vector.shape_cast %127 : vector<1x8x4xbf16> to vector<8x4xbf16>
    %cst_115 = arith.constant dense<0.000000e+00> : vector<8x320xf32>
    %129 = tpu.matmul %128, %126, %cst_115 {dimension_numbers = #tpu.dot_dimension_numbers<[1], [0], [0], [1], [0, 0, 1, 1], [], []>} : vector<8x4xbf16>, vector<4x320xbf16>, vector<8x320xf32> -> vector<8x320xf32>
    %130 = arith.addf %124, %129 : vector<8x320xf32>
    %c0_116 = arith.constant 0 : index
    %c0_117 = arith.constant 0 : index
    %c82 = arith.constant 82 : index
    %131 = vector.load %arg1[%c0_116, %c0_117, %c82] : memref<1x4x512xbf16, #tpu.memory_space<vmem>>, vector<1x4x320xbf16>
    %132 = vector.shape_cast %131 : vector<1x4x320xbf16> to vector<4x320xbf16>
    %c22_118 = arith.constant 22 : index
    %c0_119 = arith.constant 0 : index
    %c0_120 = arith.constant 0 : index
    %133 = vector.load %arg2[%c22_118, %c0_119, %c0_120] : memref<25x8x4xbf16, #tpu.memory_space<vmem>>, vector<1x8x4xbf16>
    %134 = vector.shape_cast %133 : vector<1x8x4xbf16> to vector<8x4xbf16>
    %cst_121 = arith.constant dense<0.000000e+00> : vector<8x320xf32>
    %135 = tpu.matmul %134, %132, %cst_121 {dimension_numbers = #tpu.dot_dimension_numbers<[1], [0], [0], [1], [0, 0, 1, 1], [], []>} : vector<8x4xbf16>, vector<4x320xbf16>, vector<8x320xf32> -> vector<8x320xf32>
    %136 = arith.addf %130, %135 : vector<8x320xf32>
    %c0_122 = arith.constant 0 : index
    %c0_123 = arith.constant 0 : index
    %c83 = arith.constant 83 : index
    %137 = vector.load %arg1[%c0_122, %c0_123, %c83] : memref<1x4x512xbf16, #tpu.memory_space<vmem>>, vector<1x4x320xbf16>
    %138 = vector.shape_cast %137 : vector<1x4x320xbf16> to vector<4x320xbf16>
    %c23_124 = arith.constant 23 : index
    %c0_125 = arith.constant 0 : index
    %c0_126 = arith.constant 0 : index
    %139 = vector.load %arg2[%c23_124, %c0_125, %c0_126] : memref<25x8x4xbf16, #tpu.memory_space<vmem>>, vector<1x8x4xbf16>
    %140 = vector.shape_cast %139 : vector<1x8x4xbf16> to vector<8x4xbf16>
    %cst_127 = arith.constant dense<0.000000e+00> : vector<8x320xf32>
    %141 = tpu.matmul %140, %138, %cst_127 {dimension_numbers = #tpu.dot_dimension_numbers<[1], [0], [0], [1], [0, 0, 1, 1], [], []>} : vector<8x4xbf16>, vector<4x320xbf16>, vector<8x320xf32> -> vector<8x320xf32>
    %142 = arith.addf %136, %141 : vector<8x320xf32>
    %c0_128 = arith.constant 0 : index
    %c0_129 = arith.constant 0 : index
    %c84 = arith.constant 84 : index
    %143 = vector.load %arg1[%c0_128, %c0_129, %c84] : memref<1x4x512xbf16, #tpu.memory_space<vmem>>, vector<1x4x320xbf16>
    %144 = vector.shape_cast %143 : vector<1x4x320xbf16> to vector<4x320xbf16>
    %c24_130 = arith.constant 24 : index
    %c0_131 = arith.constant 0 : index
    %c0_132 = arith.constant 0 : index
    %145 = vector.load %arg2[%c24_130, %c0_131, %c0_132] : memref<25x8x4xbf16, #tpu.memory_space<vmem>>, vector<1x8x4xbf16>
    %146 = vector.shape_cast %145 : vector<1x8x4xbf16> to vector<8x4xbf16>
    %cst_133 = arith.constant dense<0.000000e+00> : vector<8x320xf32>
    %147 = tpu.matmul %146, %144, %cst_133 {dimension_numbers = #tpu.dot_dimension_numbers<[1], [0], [0], [1], [0, 0, 1, 1], [], []>} : vector<8x4xbf16>, vector<4x320xbf16>, vector<8x320xf32> -> vector<8x320xf32>
    %148 = arith.addf %142, %147 : vector<8x320xf32>
    %149 = vector.extract_strided_slice %148 {offsets = [0, 0], sizes = [8, 16], strides = [1, 1]} : vector<8x320xf32> to vector<8x16xf32>
    %c0_134 = arith.constant 0 : index
    %c0_135 = arith.constant 0 : index
    %c0_136 = arith.constant 0 : index
    %c0_137 = arith.constant 0 : index
    %150 = vector.load %arg3[%c0_134, %c0_135, %c0_136, %c0_137] : memref<1x8x16x16xf32, #tpu.memory_space<vmem>>, vector<1x8x1x16xf32>
    %151 = vector.shape_cast %150 : vector<1x8x1x16xf32> to vector<8x16xf32>
    %152 = vector.shape_cast %149 : vector<8x16xf32> to vector<1x8x1x16xf32>
    tpu.vector_store %arg3[%c0_134, %c0_135, %c0_136, %c0_137], %152 {strides = array<i32>} : memref<1x8x16x16xf32, #tpu.memory_space<vmem>>, vector<1x8x1x16xf32>,
    %153 = arith.mulf %149, %149 : vector<8x16xf32>
    %154 = vector.extract_strided_slice %148 {offsets = [0, 20], sizes = [8, 16], strides = [1, 1]} : vector<8x320xf32> to vector<8x16xf32>
    %c0_138 = arith.constant 0 : index
    %c0_139 = arith.constant 0 : index
    %c1_140 = arith.constant 1 : index
    %c0_141 = arith.constant 0 : index
    %155 = vector.load %arg3[%c0_138, %c0_139, %c1_140, %c0_141] : memref<1x8x16x16xf32, #tpu.memory_space<vmem>>, vector<1x8x1x16xf32>
    %156 = vector.shape_cast %155 : vector<1x8x1x16xf32> to vector<8x16xf32>
    %157 = vector.shape_cast %154 : vector<8x16xf32> to vector<1x8x1x16xf32>
    tpu.vector_store %arg3[%c0_138, %c0_139, %c1_140, %c0_141], %157 {strides = array<i32>} : memref<1x8x16x16xf32, #tpu.memory_space<vmem>>, vector<1x8x1x16xf32>,
    %158 = arith.addf %149, %154 : vector<8x16xf32>
    %159 = arith.mulf %154, %154 : vector<8x16xf32>
    %160 = arith.addf %153, %159 : vector<8x16xf32>
    %161 = vector.extract_strided_slice %148 {offsets = [0, 40], sizes = [8, 16], strides = [1, 1]} : vector<8x320xf32> to vector<8x16xf32>
    %c0_142 = arith.constant 0 : index
    %c0_143 = arith.constant 0 : index
    %c2_144 = arith.constant 2 : index
    %c0_145 = arith.constant 0 : index
    %162 = vector.load %arg3[%c0_142, %c0_143, %c2_144, %c0_145] : memref<1x8x16x16xf32, #tpu.memory_space<vmem>>, vector<1x8x1x16xf32>
    %163 = vector.shape_cast %162 : vector<1x8x1x16xf32> to vector<8x16xf32>
    %164 = vector.shape_cast %161 : vector<8x16xf32> to vector<1x8x1x16xf32>
    tpu.vector_store %arg3[%c0_142, %c0_143, %c2_144, %c0_145], %164 {strides = array<i32>} : memref<1x8x16x16xf32, #tpu.memory_space<vmem>>, vector<1x8x1x16xf32>,
    %165 = arith.addf %158, %161 : vector<8x16xf32>
    %166 = arith.mulf %161, %161 : vector<8x16xf32>
    %167 = arith.addf %160, %166 : vector<8x16xf32>
    %168 = vector.extract_strided_slice %148 {offsets = [0, 60], sizes = [8, 16], strides = [1, 1]} : vector<8x320xf32> to vector<8x16xf32>
    %c0_146 = arith.constant 0 : index
    %c0_147 = arith.constant 0 : index
    %c3_148 = arith.constant 3 : index
    %c0_149 = arith.constant 0 : index
    %169 = vector.load %arg3[%c0_146, %c0_147, %c3_148, %c0_149] : memref<1x8x16x16xf32, #tpu.memory_space<vmem>>, vector<1x8x1x16xf32>
    %170 = vector.shape_cast %169 : vector<1x8x1x16xf32> to vector<8x16xf32>
    %171 = vector.shape_cast %168 : vector<8x16xf32> to vector<1x8x1x16xf32>
    tpu.vector_store %arg3[%c0_146, %c0_147, %c3_148, %c0_149], %171 {strides = array<i32>} : memref<1x8x16x16xf32, #tpu.memory_space<vmem>>, vector<1x8x1x16xf32>,
    %172 = arith.addf %165, %168 : vector<8x16xf32>
    %173 = arith.mulf %168, %168 : vector<8x16xf32>
    %174 = arith.addf %167, %173 : vector<8x16xf32>
    %175 = vector.extract_strided_slice %148 {offsets = [0, 80], sizes = [8, 16], strides = [1, 1]} : vector<8x320xf32> to vector<8x16xf32>
    %c0_150 = arith.constant 0 : index
    %c0_151 = arith.constant 0 : index
    %c4_152 = arith.constant 4 : index
    %c0_153 = arith.constant 0 : index
    %176 = vector.load %arg3[%c0_150, %c0_151, %c4_152, %c0_153] : memref<1x8x16x16xf32, #tpu.memory_space<vmem>>, vector<1x8x1x16xf32>
    %177 = vector.shape_cast %176 : vector<1x8x1x16xf32> to vector<8x16xf32>
    %178 = vector.shape_cast %175 : vector<8x16xf32> to vector<1x8x1x16xf32>
    tpu.vector_store %arg3[%c0_150, %c0_151, %c4_152, %c0_153], %178 {strides = array<i32>} : memref<1x8x16x16xf32, #tpu.memory_space<vmem>>, vector<1x8x1x16xf32>,
    %179 = arith.addf %172, %175 : vector<8x16xf32>
    %180 = arith.mulf %175, %175 : vector<8x16xf32>
    %181 = arith.addf %174, %180 : vector<8x16xf32>
    %182 = vector.extract_strided_slice %148 {offsets = [0, 100], sizes = [8, 16], strides = [1, 1]} : vector<8x320xf32> to vector<8x16xf32>
    %c0_154 = arith.constant 0 : index
    %c0_155 = arith.constant 0 : index
    %c5_156 = arith.constant 5 : index
    %c0_157 = arith.constant 0 : index
    %183 = vector.load %arg3[%c0_154, %c0_155, %c5_156, %c0_157] : memref<1x8x16x16xf32, #tpu.memory_space<vmem>>, vector<1x8x1x16xf32>
    %184 = vector.shape_cast %183 : vector<1x8x1x16xf32> to vector<8x16xf32>
    %185 = vector.shape_cast %182 : vector<8x16xf32> to vector<1x8x1x16xf32>
    tpu.vector_store %arg3[%c0_154, %c0_155, %c5_156, %c0_157], %185 {strides = array<i32>} : memref<1x8x16x16xf32, #tpu.memory_space<vmem>>, vector<1x8x1x16xf32>,
    %186 = arith.addf %179, %182 : vector<8x16xf32>
    %187 = arith.mulf %182, %182 : vector<8x16xf32>
    %188 = arith.addf %181, %187 : vector<8x16xf32>
    %189 = vector.extract_strided_slice %148 {offsets = [0, 120], sizes = [8, 16], strides = [1, 1]} : vector<8x320xf32> to vector<8x16xf32>
    %c0_158 = arith.constant 0 : index
    %c0_159 = arith.constant 0 : index
    %c6_160 = arith.constant 6 : index
    %c0_161 = arith.constant 0 : index
    %190 = vector.load %arg3[%c0_158, %c0_159, %c6_160, %c0_161] : memref<1x8x16x16xf32, #tpu.memory_space<vmem>>, vector<1x8x1x16xf32>
    %191 = vector.shape_cast %190 : vector<1x8x1x16xf32> to vector<8x16xf32>
    %192 = vector.shape_cast %189 : vector<8x16xf32> to vector<1x8x1x16xf32>
    tpu.vector_store %arg3[%c0_158, %c0_159, %c6_160, %c0_161], %192 {strides = array<i32>} : memref<1x8x16x16xf32, #tpu.memory_space<vmem>>, vector<1x8x1x16xf32>,
    %193 = arith.addf %186, %189 : vector<8x16xf32>
    %194 = arith.mulf %189, %189 : vector<8x16xf32>
    %195 = arith.addf %188, %194 : vector<8x16xf32>
    %196 = vector.extract_strided_slice %148 {offsets = [0, 140], sizes = [8, 16], strides = [1, 1]} : vector<8x320xf32> to vector<8x16xf32>
    %c0_162 = arith.constant 0 : index
    %c0_163 = arith.constant 0 : index
    %c7_164 = arith.constant 7 : index
    %c0_165 = arith.constant 0 : index
    %197 = vector.load %arg3[%c0_162, %c0_163, %c7_164, %c0_165] : memref<1x8x16x16xf32, #tpu.memory_space<vmem>>, vector<1x8x1x16xf32>
    %198 = vector.shape_cast %197 : vector<1x8x1x16xf32> to vector<8x16xf32>
    %199 = vector.shape_cast %196 : vector<8x16xf32> to vector<1x8x1x16xf32>
    tpu.vector_store %arg3[%c0_162, %c0_163, %c7_164, %c0_165], %199 {strides = array<i32>} : memref<1x8x16x16xf32, #tpu.memory_space<vmem>>, vector<1x8x1x16xf32>,
    %200 = arith.addf %193, %196 : vector<8x16xf32>
    %201 = arith.mulf %196, %196 : vector<8x16xf32>
    %202 = arith.addf %195, %201 : vector<8x16xf32>
    %203 = vector.extract_strided_slice %148 {offsets = [0, 160], sizes = [8, 16], strides = [1, 1]} : vector<8x320xf32> to vector<8x16xf32>
    %c0_166 = arith.constant 0 : index
    %c0_167 = arith.constant 0 : index
    %c8_168 = arith.constant 8 : index
    %c0_169 = arith.constant 0 : index
    %204 = vector.load %arg3[%c0_166, %c0_167, %c8_168, %c0_169] : memref<1x8x16x16xf32, #tpu.memory_space<vmem>>, vector<1x8x1x16xf32>
    %205 = vector.shape_cast %204 : vector<1x8x1x16xf32> to vector<8x16xf32>
    %206 = vector.shape_cast %203 : vector<8x16xf32> to vector<1x8x1x16xf32>
    tpu.vector_store %arg3[%c0_166, %c0_167, %c8_168, %c0_169], %206 {strides = array<i32>} : memref<1x8x16x16xf32, #tpu.memory_space<vmem>>, vector<1x8x1x16xf32>,
    %207 = arith.addf %200, %203 : vector<8x16xf32>
    %208 = arith.mulf %203, %203 : vector<8x16xf32>
    %209 = arith.addf %202, %208 : vector<8x16xf32>
    %210 = vector.extract_strided_slice %148 {offsets = [0, 180], sizes = [8, 16], strides = [1, 1]} : vector<8x320xf32> to vector<8x16xf32>
    %c0_170 = arith.constant 0 : index
    %c0_171 = arith.constant 0 : index
    %c9_172 = arith.constant 9 : index
    %c0_173 = arith.constant 0 : index
    %211 = vector.load %arg3[%c0_170, %c0_171, %c9_172, %c0_173] : memref<1x8x16x16xf32, #tpu.memory_space<vmem>>, vector<1x8x1x16xf32>
    %212 = vector.shape_cast %211 : vector<1x8x1x16xf32> to vector<8x16xf32>
    %213 = vector.shape_cast %210 : vector<8x16xf32> to vector<1x8x1x16xf32>
    tpu.vector_store %arg3[%c0_170, %c0_171, %c9_172, %c0_173], %213 {strides = array<i32>} : memref<1x8x16x16xf32, #tpu.memory_space<vmem>>, vector<1x8x1x16xf32>,
    %214 = arith.addf %207, %210 : vector<8x16xf32>
    %215 = arith.mulf %210, %210 : vector<8x16xf32>
    %216 = arith.addf %209, %215 : vector<8x16xf32>
    %217 = vector.extract_strided_slice %148 {offsets = [0, 200], sizes = [8, 16], strides = [1, 1]} : vector<8x320xf32> to vector<8x16xf32>
    %c0_174 = arith.constant 0 : index
    %c0_175 = arith.constant 0 : index
    %c10_176 = arith.constant 10 : index
    %c0_177 = arith.constant 0 : index
    %218 = vector.load %arg3[%c0_174, %c0_175, %c10_176, %c0_177] : memref<1x8x16x16xf32, #tpu.memory_space<vmem>>, vector<1x8x1x16xf32>
    %219 = vector.shape_cast %218 : vector<1x8x1x16xf32> to vector<8x16xf32>
    %220 = vector.shape_cast %217 : vector<8x16xf32> to vector<1x8x1x16xf32>
    tpu.vector_store %arg3[%c0_174, %c0_175, %c10_176, %c0_177], %220 {strides = array<i32>} : memref<1x8x16x16xf32, #tpu.memory_space<vmem>>, vector<1x8x1x16xf32>,
    %221 = arith.addf %214, %217 : vector<8x16xf32>
    %222 = arith.mulf %217, %217 : vector<8x16xf32>
    %223 = arith.addf %216, %222 : vector<8x16xf32>
    %224 = vector.extract_strided_slice %148 {offsets = [0, 220], sizes = [8, 16], strides = [1, 1]} : vector<8x320xf32> to vector<8x16xf32>
    %c0_178 = arith.constant 0 : index
    %c0_179 = arith.constant 0 : index
    %c11_180 = arith.constant 11 : index
    %c0_181 = arith.constant 0 : index
    %225 = vector.load %arg3[%c0_178, %c0_179, %c11_180, %c0_181] : memref<1x8x16x16xf32, #tpu.memory_space<vmem>>, vector<1x8x1x16xf32>
    %226 = vector.shape_cast %225 : vector<1x8x1x16xf32> to vector<8x16xf32>
    %227 = vector.shape_cast %224 : vector<8x16xf32> to vector<1x8x1x16xf32>
    tpu.vector_store %arg3[%c0_178, %c0_179, %c11_180, %c0_181], %227 {strides = array<i32>} : memref<1x8x16x16xf32, #tpu.memory_space<vmem>>, vector<1x8x1x16xf32>,
    %228 = arith.addf %221, %224 : vector<8x16xf32>
    %229 = arith.mulf %224, %224 : vector<8x16xf32>
    %230 = arith.addf %223, %229 : vector<8x16xf32>
    %231 = vector.extract_strided_slice %148 {offsets = [0, 240], sizes = [8, 16], strides = [1, 1]} : vector<8x320xf32> to vector<8x16xf32>
    %c0_182 = arith.constant 0 : index
    %c0_183 = arith.constant 0 : index
    %c12_184 = arith.constant 12 : index
    %c0_185 = arith.constant 0 : index
    %232 = vector.load %arg3[%c0_182, %c0_183, %c12_184, %c0_185] : memref<1x8x16x16xf32, #tpu.memory_space<vmem>>, vector<1x8x1x16xf32>
    %233 = vector.shape_cast %232 : vector<1x8x1x16xf32> to vector<8x16xf32>
    %234 = vector.shape_cast %231 : vector<8x16xf32> to vector<1x8x1x16xf32>
    tpu.vector_store %arg3[%c0_182, %c0_183, %c12_184, %c0_185], %234 {strides = array<i32>} : memref<1x8x16x16xf32, #tpu.memory_space<vmem>>, vector<1x8x1x16xf32>,
    %235 = arith.addf %228, %231 : vector<8x16xf32>
    %236 = arith.mulf %231, %231 : vector<8x16xf32>
    %237 = arith.addf %230, %236 : vector<8x16xf32>
    %238 = vector.extract_strided_slice %148 {offsets = [0, 260], sizes = [8, 16], strides = [1, 1]} : vector<8x320xf32> to vector<8x16xf32>
    %c0_186 = arith.constant 0 : index
    %c0_187 = arith.constant 0 : index
    %c13_188 = arith.constant 13 : index
    %c0_189 = arith.constant 0 : index
    %239 = vector.load %arg3[%c0_186, %c0_187, %c13_188, %c0_189] : memref<1x8x16x16xf32, #tpu.memory_space<vmem>>, vector<1x8x1x16xf32>
    %240 = vector.shape_cast %239 : vector<1x8x1x16xf32> to vector<8x16xf32>
    %241 = vector.shape_cast %238 : vector<8x16xf32> to vector<1x8x1x16xf32>
    tpu.vector_store %arg3[%c0_186, %c0_187, %c13_188, %c0_189], %241 {strides = array<i32>} : memref<1x8x16x16xf32, #tpu.memory_space<vmem>>, vector<1x8x1x16xf32>,
    %242 = arith.addf %235, %238 : vector<8x16xf32>
    %243 = arith.mulf %238, %238 : vector<8x16xf32>
    %244 = arith.addf %237, %243 : vector<8x16xf32>
    %245 = vector.extract_strided_slice %148 {offsets = [0, 280], sizes = [8, 16], strides = [1, 1]} : vector<8x320xf32> to vector<8x16xf32>
    %c0_190 = arith.constant 0 : index
    %c0_191 = arith.constant 0 : index
    %c14_192 = arith.constant 14 : index
    %c0_193 = arith.constant 0 : index
    %246 = vector.load %arg3[%c0_190, %c0_191, %c14_192, %c0_193] : memref<1x8x16x16xf32, #tpu.memory_space<vmem>>, vector<1x8x1x16xf32>
    %247 = vector.shape_cast %246 : vector<1x8x1x16xf32> to vector<8x16xf32>
    %248 = vector.shape_cast %245 : vector<8x16xf32> to vector<1x8x1x16xf32>
    tpu.vector_store %arg3[%c0_190, %c0_191, %c14_192, %c0_193], %248 {strides = array<i32>} : memref<1x8x16x16xf32, #tpu.memory_space<vmem>>, vector<1x8x1x16xf32>,
    %249 = arith.addf %242, %245 : vector<8x16xf32>
    %250 = arith.mulf %245, %245 : vector<8x16xf32>
    %251 = arith.addf %244, %250 : vector<8x16xf32>
    %252 = vector.extract_strided_slice %148 {offsets = [0, 300], sizes = [8, 16], strides = [1, 1]} : vector<8x320xf32> to vector<8x16xf32>
    %c0_194 = arith.constant 0 : index
    %c0_195 = arith.constant 0 : index
    %c15_196 = arith.constant 15 : index
    %c0_197 = arith.constant 0 : index
    %253 = vector.load %arg3[%c0_194, %c0_195, %c15_196, %c0_197] : memref<1x8x16x16xf32, #tpu.memory_space<vmem>>, vector<1x8x1x16xf32>
    %254 = vector.shape_cast %253 : vector<1x8x1x16xf32> to vector<8x16xf32>
    %255 = vector.shape_cast %252 : vector<8x16xf32> to vector<1x8x1x16xf32>
    tpu.vector_store %arg3[%c0_194, %c0_195, %c15_196, %c0_197], %255 {strides = array<i32>} : memref<1x8x16x16xf32, #tpu.memory_space<vmem>>, vector<1x8x1x16xf32>,
    %256 = arith.addf %249, %252 : vector<8x16xf32>
    %257 = arith.mulf %252, %252 : vector<8x16xf32>
    %258 = arith.addf %251, %257 : vector<8x16xf32>
    %cst_198 = arith.constant dense<0.000000e+00> : vector<8xf32>
    %259 = vector.multi_reduction <add>, %256, %cst_198 [1] : vector<8x16xf32> to vector<8xf32>
    %260 = vector.shape_cast %259 : vector<8xf32> to vector<8x1xf32>
    %c0_199 = arith.constant 0 : index
    %c0_200 = arith.constant 0 : index
    %c0_201 = arith.constant 0 : index
    %261 = vector.load %arg4[%c0_199, %c0_200, %c0_201] : memref<1x8x2xf32, #tpu.memory_space<vmem>>, vector<1x8x1xf32>
    %262 = vector.shape_cast %261 : vector<1x8x1xf32> to vector<8x1xf32>
    %263 = vector.shape_cast %260 : vector<8x1xf32> to vector<1x8x1xf32>
    tpu.vector_store %arg4[%c0_199, %c0_200, %c0_201], %263 {strides = array<i32>} : memref<1x8x2xf32, #tpu.memory_space<vmem>>, vector<1x8x1xf32>,
    %cst_202 = arith.constant dense<0.000000e+00> : vector<8xf32>
    %264 = vector.multi_reduction <add>, %258, %cst_202 [1] : vector<8x16xf32> to vector<8xf32>
    %265 = vector.shape_cast %264 : vector<8xf32> to vector<8x1xf32>
    %c0_203 = arith.constant 0 : index
    %c0_204 = arith.constant 0 : index
    %c1_205 = arith.constant 1 : index
    %266 = vector.load %arg4[%c0_203, %c0_204, %c1_205] : memref<1x8x2xf32, #tpu.memory_space<vmem>>, vector<1x8x1xf32>
    %267 = vector.shape_cast %266 : vector<1x8x1xf32> to vector<8x1xf32>
    %268 = vector.shape_cast %265 : vector<8x1xf32> to vector<1x8x1xf32>
    tpu.vector_store %arg4[%c0_203, %c0_204, %c1_205], %268 {strides = array<i32>} : memref<1x8x2xf32, #tpu.memory_space<vmem>>, vector<1x8x1xf32>,
    return
  }
  func.func @transform_0(%arg0: i32) -> (i32, i32, i32) {
    %c0_i32 = arith.constant 0 : i32
    %c0_i32_0 = arith.constant 0 : i32
    %c0_i32_1 = arith.constant 0 : i32
    return %arg0, %c0_i32, %c0_i32_0 : i32, i32, i32
  }
  func.func @transform_1(%arg0: i32) -> (i32, i32, i32) {
    %c0_i32 = arith.constant 0 : i32
    %c0_i32_0 = arith.constant 0 : i32
    %c0_i32_1 = arith.constant 0 : i32
    %c0_i32_2 = arith.constant 0 : i32
    return %c0_i32, %c0_i32_0, %c0_i32_1 : i32, i32, i32
  }
  func.func @transform_2(%arg0: i32) -> (i32, i32, i32, i32) {
    %c0_i32 = arith.constant 0 : i32
    %c0_i32_0 = arith.constant 0 : i32
    %c0_i32_1 = arith.constant 0 : i32
    %c0_i32_2 = arith.constant 0 : i32
    return %arg0, %c0_i32, %c0_i32_0, %c0_i32_1 : i32, i32, i32, i32
  }
  func.func @transform_3(%arg0: i32) -> (i32, i32, i32) {
    %c0_i32 = arith.constant 0 : i32
    %c0_i32_0 = arith.constant 0 : i32
    %c0_i32_1 = arith.constant 0 : i32
    return %arg0, %c0_i32, %c0_i32_0 : i32, i32, i32
  }
}

</mosaic_0001>

<llo_original>
// kernel: tpu_custom_call.1
$region0: #{tpu_custom_call.1}
  #allocation0 [shape = 'u32[]', space=smem, size = 0x4, offset = 0x4, fixed_abs, tag = 'smem constant byte address 0x4 - core index']
  #allocation1 [shape = 'u32[144,128]{1,0:T(1,128)}', space=vmem, size = 0x12000, scoped, tag = 'internal scratch']
  %s0 = inlined_call_operand.vmem [shape: bf16[2,4,512], index: 0, kind: input, shape index: {}]
  %s1 = inlined_call_operand.vmem [shape: bf16[25,8,4], index: 1, kind: input, shape index: {}]
  %s2 = inlined_call_operand.hbm [shape: f32[2,8,16,16], index: 2, kind: output, shape index: {0}]
  %s3 = inlined_call_operand.vmem [shape: f32[2,8,2], index: 3, kind: output, shape index: {1}]
  %4 = xla_tuple %s2, %s3
  %s5 = sld [smem:[#allocation0]]
  $region49: #{tpu_custom_call.1} parent=0
    _
  %s7 = ssub.s32 1, %s5
  %s8 = scalar_select 0, %s7, %s5
  $region1: #{tpu_custom_call.1} parent=0
    #allocation2 [shape = 'u8[131072]{0}', space=vmem, size = 0x20000, scoped, tag = 'output window, operand 0']
    #allocation3 [shape = 's32[2]{0}', space=sflag, size = 0x8, scoped, tag = 'scoped memory for tpu_custom_call.1']
    %9 = vsyncpa [#allocation3], 0
    %s10 = scalar_lea.sflag [#allocation3], 1
    %11 = vsyncpa %s10, 0
    loop: start=0, step=1, limit=4
    $region2: #{tpu_custom_call.1} parent=1 // loop_pre_header
      _
    $region3: #{tpu_custom_call.1} parent=1 // loop_header
      %s13 = sphi 0, %s17
      %p14 = scmp.ge.s32.totalorder %s13, 4
      %s23 = sphi 0, %s25
      %s26 = sphi 0, %s23
      %s27 = sphi 0, %s26
      %s43 = sphi 0, %s27
      %s47 = sphi 0, %s47
      %s49 = sphi 0, %s47
      %s50 = sphi 0, %s49
      %s64 = sphi 0, %s50
      %s70 = sphi 0, %s72
      %s73 = sphi 0, %s70
      %s74 = sphi 0, %s73
      %s90 = sphi 0, %s74
      %s96 = sphi 0, %s98
      %s99 = sphi 0, %s96
      %s100 = sphi 0, %s99
      %s116 = sphi 0, %s100
    $region4: #{tpu_custom_call.1} parent=1 // loop_header_branch
      %16 = sbr.rel (%p14) target = $region8
    $region5: #{tpu_custom_call.1} parent=1 // loop_body
      %s18 = ssub.s32 %s13, 1
      %s19 = ssub.s32 %s13, 2
      %s20 = sadd.s32 %s13, 1
      %s21 = ssub.s32 %s13, %s20
      %p22 = scmp.eq.s32.totalorder %s21, 0
      %s24 = sadd.s32 %s23, 1
      %s25 = scalar_select %p22, %s23, %s24
      %p28 = pneg %p22
      %p29 = scmp.eq.s32.totalorder %s13, 1
      %p30 = por %p28, %p29
      %p31 = scmp.ne.s32.totalorder %s23, %s26
      %p32 = scmp.eq.s32.totalorder %s13, 0
      %p33 = por %p31, %p32
      %p34 = scmp.ne.s32.totalorder %s23, %s26
      %p35 = scmp.eq.s32.totalorder %s18, 1
      %p36 = por %p34, %p35
      %p37 = scmp.ne.s32.totalorder %s26, %s27
      %p38 = scmp.eq.s32.totalorder %s18, 0
      %p39 = por %p37, %p38
      %p40 = scmp.ne.s32.totalorder %s26, %s27
      %p41 = scmp.eq.s32.totalorder %s19, 1
      %p42 = por %p40, %p41
      %p44 = scmp.ne.s32.totalorder %s27, %s43
      %p45 = scmp.eq.s32.totalorder %s19, 0
      %p46 = por %p44, %p45
      %s48 = sadd.s32 %s47, 1
      %p51 = scmp.eq.s32.totalorder %s13, 1
      %p52 = scmp.ne.s32.totalorder %s47, %s49
      %p53 = scmp.eq.s32.totalorder %s13, 0
      %p54 = por %p52, %p53
      %p55 = scmp.ne.s32.totalorder %s47, %s49
      %p56 = scmp.eq.s32.totalorder %s18, 1
      %p57 = por %p55, %p56
      %p58 = scmp.ne.s32.totalorder %s49, %s50
      %p59 = scmp.eq.s32.totalorder %s18, 0
      %p60 = por %p58, %p59
      %p61 = scmp.ne.s32.totalorder %s49, %s50
      %p62 = scmp.eq.s32.totalorder %s19, 1
      %p63 = por %p61, %p62
      %p65 = scmp.ne.s32.totalorder %s50, %s64
      %p66 = scmp.eq.s32.totalorder %s19, 0
      %p67 = por %p65, %p66
      %s68 = ssub.s32 %s13, %s20
      %p69 = scmp.eq.s32.totalorder %s68, 0
      %s71 = sadd.s32 %s70, 1
      %s72 = scalar_select %p69, %s70, %s71
      %p75 = pneg %p69
      %p76 = scmp.eq.s32.totalorder %s13, 1
      %p77 = por %p75, %p76
      %p78 = scmp.ne.s32.totalorder %s70, %s73
      %p79 = scmp.eq.s32.totalorder %s13, 0
      %p80 = por %p78, %p79
      %p81 = scmp.ne.s32.totalorder %s70, %s73
      %p82 = scmp.eq.s32.totalorder %s18, 1
      %p83 = por %p81, %p82
      %p84 = scmp.ne.s32.totalorder %s73, %s74
      %p85 = scmp.eq.s32.totalorder %s18, 0
      %p86 = por %p84, %p85
      %p87 = scmp.ne.s32.totalorder %s73, %s74
      %p88 = scmp.eq.s32.totalorder %s19, 1
      %p89 = por %p87, %p88
      %p91 = scmp.ne.s32.totalorder %s74, %s90
      %p92 = scmp.eq.s32.totalorder %s19, 0
      %p93 = por %p91, %p92
      %s94 = ssub.s32 %s13, %s20
      %p95 = scmp.eq.s32.totalorder %s94, 0
      %s97 = sadd.s32 %s96, 1
      %s98 = scalar_select %p95, %s96, %s97
      %p101 = pneg %p95
      %p102 = scmp.eq.s32.totalorder %s13, 1
      %p103 = por %p101, %p102
      %p104 = scmp.ne.s32.totalorder %s96, %s99
      %p105 = scmp.eq.s32.totalorder %s13, 0
      %p106 = por %p104, %p105
      %p107 = scmp.ne.s32.totalorder %s96, %s99
      %p108 = scmp.eq.s32.totalorder %s18, 1
      %p109 = por %p107, %p108
      %p110 = scmp.ne.s32.totalorder %s99, %s100
      %p111 = scmp.eq.s32.totalorder %s18, 0
      %p112 = por %p110, %p111
      %p113 = scmp.ne.s32.totalorder %s99, %s100
      %p114 = scmp.eq.s32.totalorder %s19, 1
      %p115 = por %p113, %p114
      %p117 = scmp.ne.s32.totalorder %s100, %s116
      %p118 = scmp.eq.s32.totalorder %s19, 0
      %p119 = por %p117, %p118
      %p120 = scmp.le.s32.totalorder 1, %s13
      %p121 = scmp.lt.s32.totalorder %s13, 3
      %p122 = pnand %p120, %p121
      %p123 = pneg %p122
      // Predicated region
      $region9: #{tpu_custom_call.1} parent=5 // pred_check
        _
      $region10: #{tpu_custom_call.1} parent=5 // pred_check_branch
        %125 = sbr.rel (%p122) target = $region12
      $region11: #{tpu_custom_call.1} parent=5 // pred_region
        %s126 = ssub.s32 %s13, 1
        // Predicated region
        $region13: #{tpu_custom_call.1} parent=11 // pred_check
          %p127 = pneg %p60
        $region14: #{tpu_custom_call.1} parent=11 // pred_check_branch
          %129 = sbr.rel (%p127) target = $region16
        $region15: #{tpu_custom_call.1} parent=11 // pred_region
          _
        $region16: #{tpu_custom_call.1} parent=11 // pred_fallthru
          _
      $region12: #{tpu_custom_call.1} parent=5 // pred_fallthru
        _
      %p130 = scmp.lt.s32.totalorder %s13, 2
      // Predicated region
      $region17: #{tpu_custom_call.1} parent=5 // pred_check
        %p131 = pneg %p130
      $region18: #{tpu_custom_call.1} parent=5 // pred_check_branch
        %133 = sbr.rel (%p131) target = $region20
      $region19: #{tpu_custom_call.1} parent=5 // pred_region
        // Predicated region
        $region21: #{tpu_custom_call.1} parent=19 // pred_check
          %p134 = pneg %p33
        $region22: #{tpu_custom_call.1} parent=19 // pred_check_branch
          %136 = sbr.rel (%p134) target = $region24
        $region23: #{tpu_custom_call.1} parent=19 // pred_region
          %p137 = scmp.lt.s32.totalorder %s13, 1
          %s138 = scalar_select %p137, %s13, 1
          %s139 = smul.addr %s138, 4
          %s140 = smul.addr %s139, 2
          %s141 = scalar_lea.vmem %s0, %s140
        $region24: #{tpu_custom_call.1} parent=19 // pred_fallthru
          _
      $region20: #{tpu_custom_call.1} parent=5 // pred_fallthru
        _
      %p142 = scmp.le.s32.totalorder 1, %s13
      %p143 = scmp.lt.s32.totalorder %s13, 3
      %p144 = pnand %p142, %p143
      %p145 = pneg %p144
      // Predicated region
      $region25: #{tpu_custom_call.1} parent=5 // pred_check
        _
      $region26: #{tpu_custom_call.1} parent=5 // pred_check_branch
        %147 = sbr.rel (%p144) target = $region28
      $region27: #{tpu_custom_call.1} parent=5 // pred_region
        %s148 = ssub.s32 %s13, 1
        %p149 = scmp.lt.s32.totalorder %s18, 1
        %s150 = scalar_select %p149, %s18, 1
        %s151 = smul.addr %s150, 4
        %s152 = smul.addr %s151, 2
        %s153 = scalar_lea.vmem %s0, %s152
        %p154 = pneg %p39
        %p155 = pneg %p36
        %p156 = pneg %p60
        %p157 = pneg %p57
        %p158 = pneg %p86
        %p159 = pneg %p83
        %s160 = sand.u32 %s73, 1
        %s161 = scalar_lea.sflag [#allocation3], %s160
        %s162 = sand.u32 %s73, 1
        %s163 = smul.addr %s162, 128
        %s164 = scalar_lea.vmem [#allocation2], %s163
        %p165 = pneg %p112
        %p166 = pneg %p109
        %p167 = scmp.lt.s32.totalorder %s18, 1
        %s168 = scalar_select %p167, %s18, 1
        %s169 = smul.addr %s168, 8
        %s170 = scalar_lea.vmem %s3, %s169
        %p171 = scmp.lt.s32.totalorder %s18, 1
        %s172 = scalar_select %p171, %s18, 1
        %s173 = smul.addr %s172, 4
        %s174 = smul.addr %s173, 2
        %s175 = scalar_lea.vmem %s0, %s174
        %p176 = scmp.lt.s32.totalorder %s18, 1
        %s177 = scalar_select %p176, %s18, 1
        %s178 = smul.addr %s177, 8
        %s179 = scalar_lea.vmem %s3, %s178
        %v181 = vld [vmem:[%s175] sm:$0x3f]
        %v182 = vld [vmem:[%s1] sm:$0xf]
        %s183 = scalar_lea.vmem %s1, 4
        %v184 = vld [vmem:[%s183] sm:$0xf]
        %v186 = vcombine.high %v181, %v181
        %v188 = vunpack.c.l.s4 1983009808
        %v189 = vunpack.c.0.s8 %v188
        %v190 = vlaneseq
        %v191 = vshrl.u32 %v190, 7
        %v192 = vsub.s32 %v189, %v191
        %v193 = vrot.slane %v181, %v192
        %v195 = vunpack.c.l.s4 1983009808
        %v196 = vunpack.c.0.s8 %v195
        %v197 = vlaneseq
        %v198 = vshrl.u32 %v197, 7
        %v199 = vsub.s32 %v196, %v198
        %v200 = vrot.slane %v186, %v199
        %v201 = vcombine.high %v193, %v193
        %202 = vrot.lane.b32.xlu0 %v193, 127
        %v203 = vpop.permute.xlu0 %202
        %204 = vrot.lane.b32.xlu0 %v201, 127
        %v205 = vpop.permute.xlu0 %204
        %206 = vrot.lane.b32.xlu0 %v200, 127
        %v207 = vpop.permute.xlu0 %206
        %vm208 = vcmask 1039360
        %v209 = vsel %vm208, %v203, %v205
        %v210 = vsel %vm208, %v205, %v207
        %vm211 = vcmask 31744
        %v213 = vsel %vm211, %v184, 0
        %vm215 = vcmask 1041408
        %v217 = vsel %vm215, %v209, 0
        %v220 = vsel %vm215, %v210, 0
        %v223 = vsel %vm215, %v207, 0
        %225 = vmatprep.subr.bf16.mxu0 0
        %226 = vmatpush1.bf16.msra.mxu0 0
        %227 = vmatprep.subr.bf16.mxu0 0
        %228 = vmatpush1.bf16.msra.mxu0 0
        %229 = vmatprep.subr.bf16.mxu0 0
        %230 = vmatpush1.bf16.msra.mxu0 0
        %231 = vmatprep.subr.bf16.mxu0 0
        %232 = vmatpush1.bf16.msra.mxu0 0
        %233 = vmatprep.subr.bf16.mxu0 0
        %234 = vmatpush1.bf16.msra.mxu0 0
        %235 = vmatprep.subr.bf16.mxu0 0
        %236 = vmatpush1.bf16.msra.mxu0 0
        %237 = vmatprep.subr.bf16.mxu0 0
        %238 = vmatpush1.bf16.msra.mxu0 0
        %239 = vmatprep.subr.bf16.mxu0 %v220
        %240 = vmatpush1.bf16.msra.mxu0 %v217
        %241 = vmatprep.subr.bf16.mxu0 0
        %242 = vmatpush2.bf16.msra.mxu0 0
        %243 = vmatprep.subr.bf16.mxu0 0
        %244 = vmatpush2.bf16.msra.mxu0 0
        %245 = vmatprep.subr.bf16.mxu0 0
        %246 = vmatpush2.bf16.msra.mxu0 0
        %247 = vmatprep.subr.bf16.mxu0 0
        %248 = vmatpush2.bf16.msra.mxu0 0
        %249 = vmatprep.subr.bf16.mxu0 0
        %250 = vmatpush2.bf16.msra.mxu0 0
        %251 = vmatprep.subr.bf16.mxu0 0
        %252 = vmatpush2.bf16.msra.mxu0 0
        %253 = vmatprep.subr.bf16.mxu0 0
        %254 = vmatpush2.bf16.msra.mxu0 0
        %255 = vmatprep.subr.bf16.mxu0 0
        %256 = vmatpush2.bf16.msra.mxu0 0
        %257 = vmatprep.mubr.bf16.mxu0 0
        %258 = vmatmul.mubr.bf16.gmra.mxu0 %v213
        %v259 = vpop.f32.mrf.mxu0
        %v260 = vadd.f32 0.0, %v259
        %v261 = vpop.f32.mrf.mxu0
        %v262 = vadd.f32 0.0, %v261
        %v263 = vpop.f32.mrf.mxu0
        %v264 = vpop.f32.mrf.mxu0
        %265 = vdwg.mxu0
        %266 = vmatprep.subr.bf16.mxu0 0
        %267 = vmatpush1.bf16.msra.mxu0 0
        %268 = vmatprep.subr.bf16.mxu0 0
        %269 = vmatpush1.bf16.msra.mxu0 0
        %270 = vmatprep.subr.bf16.mxu0 0
        %271 = vmatpush1.bf16.msra.mxu0 0
        %272 = vmatprep.subr.bf16.mxu0 0
        %273 = vmatpush1.bf16.msra.mxu0 0
        %274 = vmatprep.subr.bf16.mxu0 0
        %275 = vmatpush1.bf16.msra.mxu0 0
        %276 = vmatprep.subr.bf16.mxu0 0
        %277 = vmatpush1.bf16.msra.mxu0 0
        %278 = vmatprep.subr.bf16.mxu0 0
        %279 = vmatpush1.bf16.msra.mxu0 0
        %280 = vmatprep.subr.bf16.mxu0 0
        %281 = vmatpush1.bf16.msra.mxu0 %v223
        %282 = vmatprep.subr.bf16.mxu0 0
        %283 = vmatpush2.bf16.msra.mxu0 0
        %284 = vmatprep.subr.bf16.mxu0 0
        %285 = vmatpush2.bf16.msra.mxu0 0
        %286 = vmatprep.subr.bf16.mxu0 0
        %287 = vmatpush2.bf16.msra.mxu0 0
        %288 = vmatprep.subr.bf16.mxu0 0
        %289 = vmatpush2.bf16.msra.mxu0 0
        %290 = vmatprep.subr.bf16.mxu0 0
        %291 = vmatpush2.bf16.msra.mxu0 0
        %292 = vmatprep.subr.bf16.mxu0 0
        %293 = vmatpush2.bf16.msra.mxu0 0
        %294 = vmatprep.subr.bf16.mxu0 0
        %295 = vmatpush2.bf16.msra.mxu0 0
        %296 = vmatprep.subr.bf16.mxu0 0
        %297 = vmatpush2.bf16.msra.mxu0 0
        %298 = vmatprep.mubr.bf16.mxu0 0
        %299 = vmatmul.mubr.bf16.gmra.mxu0 %v213
        %v300 = vpop.f32.mrf.mxu0
        %v301 = vadd.f32 0.0, %v300
        %v302 = vpop.f32.mrf.mxu0
        %v303 = vpop.f32.mrf.mxu0
        %v304 = vpop.f32.mrf.mxu0
        %305 = vdwg.mxu0
        %v307 = vsel %vm211, %v182, 0
        %v310 = vsel %vm215, %v193, 0
        %v313 = vsel %vm215, %v201, 0
        %v316 = vsel %vm215, %v200, 0
        %318 = vmatprep.subr.bf16.mxu0 0
        %319 = vmatpush1.bf16.msra.mxu0 0
        %320 = vmatprep.subr.bf16.mxu0 0
        %321 = vmatpush1.bf16.msra.mxu0 0
        %322 = vmatprep.subr.bf16.mxu0 0
        %323 = vmatpush1.bf16.msra.mxu0 0
        %324 = vmatprep.subr.bf16.mxu0 0
        %325 = vmatpush1.bf16.msra.mxu0 0
        %326 = vmatprep.subr.bf16.mxu0 0
        %327 = vmatpush1.bf16.msra.mxu0 0
        %328 = vmatprep.subr.bf16.mxu0 0
        %329 = vmatpush1.bf16.msra.mxu0 0
        %330 = vmatprep.subr.bf16.mxu0 0
        %331 = vmatpush1.bf16.msra.mxu0 0
        %332 = vmatprep.subr.bf16.mxu0 %v313
        %333 = vmatpush1.bf16.msra.mxu0 %v310
        %334 = vmatprep.subr.bf16.mxu0 0
        %335 = vmatpush2.bf16.msra.mxu0 0
        %336 = vmatprep.subr.bf16.mxu0 0
        %337 = vmatpush2.bf16.msra.mxu0 0
        %338 = vmatprep.subr.bf16.mxu0 0
        %339 = vmatpush2.bf16.msra.mxu0 0
        %340 = vmatprep.subr.bf16.mxu0 0
        %341 = vmatpush2.bf16.msra.mxu0 0
        %342 = vmatprep.subr.bf16.mxu0 0
        %343 = vmatpush2.bf16.msra.mxu0 0
        %344 = vmatprep.subr.bf16.mxu0 0
        %345 = vmatpush2.bf16.msra.mxu0 0
        %346 = vmatprep.subr.bf16.mxu0 0
        %347 = vmatpush2.bf16.msra.mxu0 0
        %348 = vmatprep.subr.bf16.mxu0 0
        %349 = vmatpush2.bf16.msra.mxu0 0
        %350 = vmatprep.mubr.bf16.mxu0 0
        %351 = vmatmul.mubr.bf16.gmra.mxu0 %v307
        %v352 = vpop.f32.mrf.mxu0
        %v353 = vadd.f32 %v260, %v352
        %v354 = vpop.f32.mrf.mxu0
        %v355 = vadd.f32 %v262, %v354
        %v356 = vpop.f32.mrf.mxu0
        %v357 = vpop.f32.mrf.mxu0
        %358 = vdwg.mxu0
        %359 = vmatprep.subr.bf16.mxu0 0
        %360 = vmatpush1.bf16.msra.mxu0 0
        %361 = vmatprep.subr.bf16.mxu0 0
        %362 = vmatpush1.bf16.msra.mxu0 0
        %363 = vmatprep.subr.bf16.mxu0 0
        %364 = vmatpush1.bf16.msra.mxu0 0
        %365 = vmatprep.subr.bf16.mxu0 0
        %366 = vmatpush1.bf16.msra.mxu0 0
        %367 = vmatprep.subr.bf16.mxu0 0
        %368 = vmatpush1.bf16.msra.mxu0 0
        %369 = vmatprep.subr.bf16.mxu0 0
        %370 = vmatpush1.bf16.msra.mxu0 0
        %371 = vmatprep.subr.bf16.mxu0 0
        %372 = vmatpush1.bf16.msra.mxu0 0
        %373 = vmatprep.subr.bf16.mxu0 0
        %374 = vmatpush1.bf16.msra.mxu0 %v316
        %375 = vmatprep.subr.bf16.mxu0 0
        %376 = vmatpush2.bf16.msra.mxu0 0
        %377 = vmatprep.subr.bf16.mxu0 0
        %378 = vmatpush2.bf16.msra.mxu0 0
        %379 = vmatprep.subr.bf16.mxu0 0
        %380 = vmatpush2.bf16.msra.mxu0 0
        %381 = vmatprep.subr.bf16.mxu0 0
        %382 = vmatpush2.bf16.msra.mxu0 0
        %383 = vmatprep.subr.bf16.mxu0 0
        %384 = vmatpush2.bf16.msra.mxu0 0
        %385 = vmatprep.subr.bf16.mxu0 0
        %386 = vmatpush2.bf16.msra.mxu0 0
        %387 = vmatprep.subr.bf16.mxu0 0
        %388 = vmatpush2.bf16.msra.mxu0 0
        %389 = vmatprep.subr.bf16.mxu0 0
        %390 = vmatpush2.bf16.msra.mxu0 0
        %391 = vmatprep.mubr.bf16.mxu0 0
        %392 = vmatmul.mubr.bf16.gmra.mxu0 %v307
        %v393 = vpop.f32.mrf.mxu0
        %v394 = vadd.f32 %v301, %v393
        %v395 = vpop.f32.mrf.mxu0
        %v396 = vpop.f32.mrf.mxu0
        %v397 = vpop.f32.mrf.mxu0
        %398 = vdwg.mxu0
        %v399 = vld [vmem:[%s175] sm:$0x3f]
        %s400 = scalar_lea.vmem %s1, 8
        %v401 = vld [vmem:[%s400] sm:$0xf]
        %v403 = vcombine.high %v399, %v399
        %v405 = vunpack.c.l.s4 1983009808
        %v406 = vunpack.c.0.s8 %v405
        %v407 = vlaneseq
        %v408 = vshrl.u32 %v407, 7
        %v409 = vsub.s32 %v406, %v408
        %v410 = vrot.slane %v399, %v409
        %v412 = vunpack.c.l.s4 1983009808
        %v413 = vunpack.c.0.s8 %v412
        %v414 = vlaneseq
        %v415 = vshrl.u32 %v414, 7
        %v416 = vsub.s32 %v413, %v415
        %v417 = vrot.slane %v403, %v416
        %v418 = vcombine.high %v410, %v410
        %419 = vrot.lane.b32.xlu0 %v410, 126
        %v420 = vpop.permute.xlu0 %419
        %421 = vrot.lane.b32.xlu0 %v418, 126
        %v422 = vpop.permute.xlu0 %421
        %423 = vrot.lane.b32.xlu0 %v417, 126
        %v424 = vpop.permute.xlu0 %423
        %vm425 = vcmask 1031168
        %v426 = vsel %vm425, %v420, %v422
        %v427 = vsel %vm425, %v422, %v424
        %v429 = vsel %vm211, %v401, 0
        %v432 = vsel %vm215, %v426, 0
        %v435 = vsel %vm215, %v427, 0
        %v438 = vsel %vm215, %v424, 0
        %440 = vmatprep.subr.bf16.mxu0 0
        %441 = vmatpush1.bf16.msra.mxu0 0
        %442 = vmatprep.subr.bf16.mxu0 0
        %443 = vmatpush1.bf16.msra.mxu0 0
        %444 = vmatprep.subr.bf16.mxu0 0
        %445 = vmatpush1.bf16.msra.mxu0 0
        %446 = vmatprep.subr.bf16.mxu0 0
        %447 = vmatpush1.bf16.msra.mxu0 0
        %448 = vmatprep.subr.bf16.mxu0 0
        %449 = vmatpush1.bf16.msra.mxu0 0
        %450 = vmatprep.subr.bf16.mxu0 0
        %451 = vmatpush1.bf16.msra.mxu0 0
        %452 = vmatprep.subr.bf16.mxu0 0
        %453 = vmatpush1.bf16.msra.mxu0 0
        %454 = vmatprep.subr.bf16.mxu0 %v435
        %455 = vmatpush1.bf16.msra.mxu0 %v432
        %456 = vmatprep.subr.bf16.mxu0 0
        %457 = vmatpush2.bf16.msra.mxu0 0
        %458 = vmatprep.subr.bf16.mxu0 0
        %459 = vmatpush2.bf16.msra.mxu0 0
        %460 = vmatprep.subr.bf16.mxu0 0
        %461 = vmatpush2.bf16.msra.mxu0 0
        %462 = vmatprep.subr.bf16.mxu0 0
        %463 = vmatpush2.bf16.msra.mxu0 0
        %464 = vmatprep.subr.bf16.mxu0 0
        %465 = vmatpush2.bf16.msra.mxu0 0
        %466 = vmatprep.subr.bf16.mxu0 0
        %467 = vmatpush2.bf16.msra.mxu0 0
        %468 = vmatprep.subr.bf16.mxu0 0
        %469 = vmatpush2.bf16.msra.mxu0 0
        %470 = vmatprep.subr.bf16.mxu0 0
        %471 = vmatpush2.bf16.msra.mxu0 0
        %472 = vmatprep.mubr.bf16.mxu0 0
        %473 = vmatmul.mubr.bf16.gmra.mxu0 %v429
        %v474 = vpop.f32.mrf.mxu0
        %v475 = vadd.f32 0.0, %v474
        %v476 = vpop.f32.mrf.mxu0
        %v477 = vadd.f32 0.0, %v476
        %v478 = vpop.f32.mrf.mxu0
        %v479 = vpop.f32.mrf.mxu0
        %480 = vdwg.mxu0
        %481 = vmatprep.subr.bf16.mxu0 0
        %482 = vmatpush1.bf16.msra.mxu0 0
        %483 = vmatprep.subr.bf16.mxu0 0
        %484 = vmatpush1.bf16.msra.mxu0 0
        %485 = vmatprep.subr.bf16.mxu0 0
        %486 = vmatpush1.bf16.msra.mxu0 0
        %487 = vmatprep.subr.bf16.mxu0 0
        %488 = vmatpush1.bf16.msra.mxu0 0
        %489 = vmatprep.subr.bf16.mxu0 0
        %490 = vmatpush1.bf16.msra.mxu0 0
        %491 = vmatprep.subr.bf16.mxu0 0
        %492 = vmatpush1.bf16.msra.mxu0 0
        %493 = vmatprep.subr.bf16.mxu0 0
        %494 = vmatpush1.bf16.msra.mxu0 0
        %495 = vmatprep.subr.bf16.mxu0 0
        %496 = vmatpush1.bf16.msra.mxu0 %v438
        %497 = vmatprep.subr.bf16.mxu0 0
        %498 = vmatpush2.bf16.msra.mxu0 0
        %499 = vmatprep.subr.bf16.mxu0 0
        %500 = vmatpush2.bf16.msra.mxu0 0
        %501 = vmatprep.subr.bf16.mxu0 0
        %502 = vmatpush2.bf16.msra.mxu0 0
        %503 = vmatprep.subr.bf16.mxu0 0
        %504 = vmatpush2.bf16.msra.mxu0 0
        %505 = vmatprep.subr.bf16.mxu0 0
        %506 = vmatpush2.bf16.msra.mxu0 0
        %507 = vmatprep.subr.bf16.mxu0 0
        %508 = vmatpush2.bf16.msra.mxu0 0
        %509 = vmatprep.subr.bf16.mxu0 0
        %510 = vmatpush2.bf16.msra.mxu0 0
        %511 = vmatprep.subr.bf16.mxu0 0
        %512 = vmatpush2.bf16.msra.mxu0 0
        %513 = vmatprep.mubr.bf16.mxu0 0
        %514 = vmatmul.mubr.bf16.gmra.mxu0 %v429
        %v515 = vpop.f32.mrf.mxu0
        %v516 = vadd.f32 0.0, %v515
        %v517 = vpop.f32.mrf.mxu0
        %v518 = vpop.f32.mrf.mxu0
        %v519 = vpop.f32.mrf.mxu0
        %520 = vdwg.mxu0
        %v521 = vadd.f32 %v353, %v475
        %v522 = vadd.f32 %v355, %v477
        %v523 = vadd.f32 %v394, %v516
        %v524 = vld [vmem:[%s175] sm:$0x3f]
        %s525 = scalar_lea.vmem %s1, 12
        %v526 = vld [vmem:[%s525] sm:$0xf]
        %v528 = vcombine.high %v524, %v524
        %v530 = vunpack.c.l.s4 1983009808
        %v531 = vunpack.c.0.s8 %v530
        %v532 = vlaneseq
        %v533 = vshrl.u32 %v532, 7
        %v534 = vsub.s32 %v531, %v533
        %v535 = vrot.slane %v524, %v534
        %v537 = vunpack.c.l.s4 1983009808
        %v538 = vunpack.c.0.s8 %v537
        %v539 = vlaneseq
        %v540 = vshrl.u32 %v539, 7
        %v541 = vsub.s32 %v538, %v540
        %v542 = vrot.slane %v528, %v541
        %v543 = vcombine.high %v535, %v535
        %544 = vrot.lane.b32.xlu0 %v535, 125
        %v545 = vpop.permute.xlu0 %544
        %546 = vrot.lane.b32.xlu0 %v543, 125
        %v547 = vpop.permute.xlu0 %546
        %548 = vrot.lane.b32.xlu0 %v542, 125
        %v549 = vpop.permute.xlu0 %548
        %vm550 = vcmask 1022976
        %v551 = vsel %vm550, %v545, %v547
        %v552 = vsel %vm550, %v547, %v549
        %v554 = vsel %vm211, %v526, 0
        %v557 = vsel %vm215, %v551, 0
        %v560 = vsel %vm215, %v552, 0
        %v563 = vsel %vm215, %v549, 0
        %565 = vmatprep.subr.bf16.mxu0 0
        %566 = vmatpush1.bf16.msra.mxu0 0
        %567 = vmatprep.subr.bf16.mxu0 0
        %568 = vmatpush1.bf16.msra.mxu0 0
        %569 = vmatprep.subr.bf16.mxu0 0
        %570 = vmatpush1.bf16.msra.mxu0 0
        %571 = vmatprep.subr.bf16.mxu0 0
        %572 = vmatpush1.bf16.msra.mxu0 0
        %573 = vmatprep.subr.bf16.mxu0 0
        %574 = vmatpush1.bf16.msra.mxu0 0
        %575 = vmatprep.subr.bf16.mxu0 0
        %576 = vmatpush1.bf16.msra.mxu0 0
        %577 = vmatprep.subr.bf16.mxu0 0
        %578 = vmatpush1.bf16.msra.mxu0 0
        %579 = vmatprep.subr.bf16.mxu0 %v560
        %580 = vmatpush1.bf16.msra.mxu0 %v557
        %581 = vmatprep.subr.bf16.mxu0 0
        %582 = vmatpush2.bf16.msra.mxu0 0
        %583 = vmatprep.subr.bf16.mxu0 0
        %584 = vmatpush2.bf16.msra.mxu0 0
        %585 = vmatprep.subr.bf16.mxu0 0
        %586 = vmatpush2.bf16.msra.mxu0 0
        %587 = vmatprep.subr.bf16.mxu0 0
        %588 = vmatpush2.bf16.msra.mxu0 0
        %589 = vmatprep.subr.bf16.mxu0 0
        %590 = vmatpush2.bf16.msra.mxu0 0
        %591 = vmatprep.subr.bf16.mxu0 0
        %592 = vmatpush2.bf16.msra.mxu0 0
        %593 = vmatprep.subr.bf16.mxu0 0
        %594 = vmatpush2.bf16.msra.mxu0 0
        %595 = vmatprep.subr.bf16.mxu0 0
        %596 = vmatpush2.bf16.msra.mxu0 0
        %597 = vmatprep.mubr.bf16.mxu0 0
        %598 = vmatmul.mubr.bf16.gmra.mxu0 %v554
        %v599 = vpop.f32.mrf.mxu0
        %v600 = vadd.f32 0.0, %v599
        %v601 = vpop.f32.mrf.mxu0
        %v602 = vadd.f32 0.0, %v601
        %v603 = vpop.f32.mrf.mxu0
        %v604 = vpop.f32.mrf.mxu0
        %605 = vdwg.mxu0
        %606 = vmatprep.subr.bf16.mxu0 0
        %607 = vmatpush1.bf16.msra.mxu0 0
        %608 = vmatprep.subr.bf16.mxu0 0
        %609 = vmatpush1.bf16.msra.mxu0 0
        %610 = vmatprep.subr.bf16.mxu0 0
        %611 = vmatpush1.bf16.msra.mxu0 0
        %612 = vmatprep.subr.bf16.mxu0 0
        %613 = vmatpush1.bf16.msra.mxu0 0
        %614 = vmatprep.subr.bf16.mxu0 0
        %615 = vmatpush1.bf16.msra.mxu0 0
        %616 = vmatprep.subr.bf16.mxu0 0
        %617 = vmatpush1.bf16.msra.mxu0 0
        %618 = vmatprep.subr.bf16.mxu0 0
        %619 = vmatpush1.bf16.msra.mxu0 0
        %620 = vmatprep.subr.bf16.mxu0 0
        %621 = vmatpush1.bf16.msra.mxu0 %v563
        %622 = vmatprep.subr.bf16.mxu0 0
        %623 = vmatpush2.bf16.msra.mxu0 0
        %624 = vmatprep.subr.bf16.mxu0 0
        %625 = vmatpush2.bf16.msra.mxu0 0
        %626 = vmatprep.subr.bf16.mxu0 0
        %627 = vmatpush2.bf16.msra.mxu0 0
        %628 = vmatprep.subr.bf16.mxu0 0
        %629 = vmatpush2.bf16.msra.mxu0 0
        %630 = vmatprep.subr.bf16.mxu0 0
        %631 = vmatpush2.bf16.msra.mxu0 0
        %632 = vmatprep.subr.bf16.mxu0 0
        %633 = vmatpush2.bf16.msra.mxu0 0
        %634 = vmatprep.subr.bf16.mxu0 0
        %635 = vmatpush2.bf16.msra.mxu0 0
        %636 = vmatprep.subr.bf16.mxu0 0
        %637 = vmatpush2.bf16.msra.mxu0 0
        %638 = vmatprep.mubr.bf16.mxu0 0
        %639 = vmatmul.mubr.bf16.gmra.mxu0 %v554
        %v640 = vpop.f32.mrf.mxu0
        %v641 = vadd.f32 0.0, %v640
        %v642 = vpop.f32.mrf.mxu0
        %v643 = vpop.f32.mrf.mxu0
        %v644 = vpop.f32.mrf.mxu0
        %645 = vdwg.mxu0
        %v646 = vadd.f32 %v521, %v600
        %v647 = vadd.f32 %v522, %v602
        %v648 = vadd.f32 %v523, %v641
        %v649 = vld [vmem:[%s175] sm:$0x3f]
        %s650 = scalar_lea.vmem %s1, 16
        %v651 = vld [vmem:[%s650] sm:$0xf]
        %v653 = vcombine.high %v649, %v649
        %v655 = vunpack.c.l.s4 1983009808
        %v656 = vunpack.c.0.s8 %v655
        %v657 = vlaneseq
        %v658 = vshrl.u32 %v657, 7
        %v659 = vsub.s32 %v656, %v658
        %v660 = vrot.slane %v649, %v659
        %v662 = vunpack.c.l.s4 1983009808
        %v663 = vunpack.c.0.s8 %v662
        %v664 = vlaneseq
        %v665 = vshrl.u32 %v664, 7
        %v666 = vsub.s32 %v663, %v665
        %v667 = vrot.slane %v653, %v666
        %v668 = vcombine.high %v660, %v660
        %669 = vrot.lane.b32.xlu0 %v660, 124
        %v670 = vpop.permute.xlu0 %669
        %671 = vrot.lane.b32.xlu0 %v668, 124
        %v672 = vpop.permute.xlu0 %671
        %673 = vrot.lane.b32.xlu0 %v667, 124
        %v674 = vpop.permute.xlu0 %673
        %vm675 = vcmask 1014784
        %v676 = vsel %vm675, %v670, %v672
        %v677 = vsel %vm675, %v672, %v674
        %v679 = vsel %vm211, %v651, 0
        %v682 = vsel %vm215, %v676, 0
        %v685 = vsel %vm215, %v677, 0
        %v688 = vsel %vm215, %v674, 0
        %690 = vmatprep.subr.bf16.mxu0 0
        %691 = vmatpush1.bf16.msra.mxu0 0
        %692 = vmatprep.subr.bf16.mxu0 0
        %693 = vmatpush1.bf16.msra.mxu0 0
        %694 = vmatprep.subr.bf16.mxu0 0
        %695 = vmatpush1.bf16.msra.mxu0 0
        %696 = vmatprep.subr.bf16.mxu0 0
        %697 = vmatpush1.bf16.msra.mxu0 0
        %698 = vmatprep.subr.bf16.mxu0 0
        %699 = vmatpush1.bf16.msra.mxu0 0
        %700 = vmatprep.subr.bf16.mxu0 0
        %701 = vmatpush1.bf16.msra.mxu0 0
        %702 = vmatprep.subr.bf16.mxu0 0
        %703 = vmatpush1.bf16.msra.mxu0 0
        %704 = vmatprep.subr.bf16.mxu0 %v685
        %705 = vmatpush1.bf16.msra.mxu0 %v682
        %706 = vmatprep.subr.bf16.mxu0 0
        %707 = vmatpush2.bf16.msra.mxu0 0
        %708 = vmatprep.subr.bf16.mxu0 0
        %709 = vmatpush2.bf16.msra.mxu0 0
        %710 = vmatprep.subr.bf16.mxu0 0
        %711 = vmatpush2.bf16.msra.mxu0 0
        %712 = vmatprep.subr.bf16.mxu0 0
        %713 = vmatpush2.bf16.msra.mxu0 0
        %714 = vmatprep.subr.bf16.mxu0 0
        %715 = vmatpush2.bf16.msra.mxu0 0
        %716 = vmatprep.subr.bf16.mxu0 0
        %717 = vmatpush2.bf16.msra.mxu0 0
        %718 = vmatprep.subr.bf16.mxu0 0
        %719 = vmatpush2.bf16.msra.mxu0 0
        %720 = vmatprep.subr.bf16.mxu0 0
        %721 = vmatpush2.bf16.msra.mxu0 0
        %722 = vmatprep.mubr.bf16.mxu0 0
        %723 = vmatmul.mubr.bf16.gmra.mxu0 %v679
        %v724 = vpop.f32.mrf.mxu0
        %v725 = vadd.f32 0.0, %v724
        %v726 = vpop.f32.mrf.mxu0
        %v727 = vadd.f32 0.0, %v726
        %v728 = vpop.f32.mrf.mxu0
        %v729 = vpop.f32.mrf.mxu0
        %730 = vdwg.mxu0
        %731 = vmatprep.subr.bf16.mxu0 0
        %732 = vmatpush1.bf16.msra.mxu0 0
        %733 = vmatprep.subr.bf16.mxu0 0
        %734 = vmatpush1.bf16.msra.mxu0 0
        %735 = vmatprep.subr.bf16.mxu0 0
        %736 = vmatpush1.bf16.msra.mxu0 0
        %737 = vmatprep.subr.bf16.mxu0 0
        %738 = vmatpush1.bf16.msra.mxu0 0
        %739 = vmatprep.subr.bf16.mxu0 0
        %740 = vmatpush1.bf16.msra.mxu0 0
        %741 = vmatprep.subr.bf16.mxu0 0
        %742 = vmatpush1.bf16.msra.mxu0 0
        %743 = vmatprep.subr.bf16.mxu0 0
        %744 = vmatpush1.bf16.msra.mxu0 0
        %745 = vmatprep.subr.bf16.mxu0 0
        %746 = vmatpush1.bf16.msra.mxu0 %v688
        %747 = vmatprep.subr.bf16.mxu0 0
        %748 = vmatpush2.bf16.msra.mxu0 0
        %749 = vmatprep.subr.bf16.mxu0 0
        %750 = vmatpush2.bf16.msra.mxu0 0
        %751 = vmatprep.subr.bf16.mxu0 0
        %752 = vmatpush2.bf16.msra.mxu0 0
        %753 = vmatprep.subr.bf16.mxu0 0
        %754 = vmatpush2.bf16.msra.mxu0 0
        %755 = vmatprep.subr.bf16.mxu0 0
        %756 = vmatpush2.bf16.msra.mxu0 0
        %757 = vmatprep.subr.bf16.mxu0 0
        %758 = vmatpush2.bf16.msra.mxu0 0
        %759 = vmatprep.subr.bf16.mxu0 0
        %760 = vmatpush2.bf16.msra.mxu0 0
        %761 = vmatprep.subr.bf16.mxu0 0
        %762 = vmatpush2.bf16.msra.mxu0 0
        %763 = vmatprep.mubr.bf16.mxu0 0
        %764 = vmatmul.mubr.bf16.gmra.mxu0 %v679
        %v765 = vpop.f32.mrf.mxu0
        %v766 = vadd.f32 0.0, %v765
        %v767 = vpop.f32.mrf.mxu0
        %v768 = vpop.f32.mrf.mxu0
        %v769 = vpop.f32.mrf.mxu0
        %770 = vdwg.mxu0
        %v771 = vadd.f32 %v646, %v725
        %v772 = vadd.f32 %v647, %v727
        %v773 = vadd.f32 %v648, %v766
        %v774 = vld [vmem:[%s175] sm:$0x3f]
        %s775 = scalar_lea.vmem %s1, 20
        %v776 = vld [vmem:[%s775] sm:$0xf]
        %v778 = vcombine.high %v774, %v774
        %v780 = vunpack.c.l.s4 1983009808
        %v781 = vunpack.c.0.s8 %v780
        %v782 = vlaneseq
        %v783 = vshrl.u32 %v782, 7
        %v784 = vsub.s32 %v781, %v783
        %v785 = vrot.slane %v774, %v784
        %v787 = vunpack.c.l.s4 1983009808
        %v788 = vunpack.c.0.s8 %v787
        %v789 = vlaneseq
        %v790 = vshrl.u32 %v789, 7
        %v791 = vsub.s32 %v788, %v790
        %v792 = vrot.slane %v778, %v791
        %v793 = vcombine.high %v785, %v785
        %794 = vrot.lane.b32.xlu0 %v785, 108
        %v795 = vpop.permute.xlu0 %794
        %796 = vrot.lane.b32.xlu0 %v793, 108
        %v797 = vpop.permute.xlu0 %796
        %798 = vrot.lane.b32.xlu0 %v792, 108
        %v799 = vpop.permute.xlu0 %798
        %vm800 = vcmask 883712
        %v801 = vsel %vm800, %v795, %v797
        %v802 = vsel %vm800, %v797, %v799
        %v804 = vsel %vm211, %v776, 0
        %v807 = vsel %vm215, %v801, 0
        %v810 = vsel %vm215, %v802, 0
        %v813 = vsel %vm215, %v799, 0
        %815 = vmatprep.subr.bf16.mxu0 0
        %816 = vmatpush1.bf16.msra.mxu0 0
        %817 = vmatprep.subr.bf16.mxu0 0
        %818 = vmatpush1.bf16.msra.mxu0 0
        %819 = vmatprep.subr.bf16.mxu0 0
        %820 = vmatpush1.bf16.msra.mxu0 0
        %821 = vmatprep.subr.bf16.mxu0 0
        %822 = vmatpush1.bf16.msra.mxu0 0
        %823 = vmatprep.subr.bf16.mxu0 0
        %824 = vmatpush1.bf16.msra.mxu0 0
        %825 = vmatprep.subr.bf16.mxu0 0
        %826 = vmatpush1.bf16.msra.mxu0 0
        %827 = vmatprep.subr.bf16.mxu0 0
        %828 = vmatpush1.bf16.msra.mxu0 0
        %829 = vmatprep.subr.bf16.mxu0 %v810
        %830 = vmatpush1.bf16.msra.mxu0 %v807
        %831 = vmatprep.subr.bf16.mxu0 0
        %832 = vmatpush2.bf16.msra.mxu0 0
        %833 = vmatprep.subr.bf16.mxu0 0
        %834 = vmatpush2.bf16.msra.mxu0 0
        %835 = vmatprep.subr.bf16.mxu0 0
        %836 = vmatpush2.bf16.msra.mxu0 0
        %837 = vmatprep.subr.bf16.mxu0 0
        %838 = vmatpush2.bf16.msra.mxu0 0
        %839 = vmatprep.subr.bf16.mxu0 0
        %840 = vmatpush2.bf16.msra.mxu0 0
        %841 = vmatprep.subr.bf16.mxu0 0
        %842 = vmatpush2.bf16.msra.mxu0 0
        %843 = vmatprep.subr.bf16.mxu0 0
        %844 = vmatpush2.bf16.msra.mxu0 0
        %845 = vmatprep.subr.bf16.mxu0 0
        %846 = vmatpush2.bf16.msra.mxu0 0
        %847 = vmatprep.mubr.bf16.mxu0 0
        %848 = vmatmul.mubr.bf16.gmra.mxu0 %v804
        %v849 = vpop.f32.mrf.mxu0
        %v850 = vadd.f32 0.0, %v849
        %v851 = vpop.f32.mrf.mxu0
        %v852 = vadd.f32 0.0, %v851
        %v853 = vpop.f32.mrf.mxu0
        %v854 = vpop.f32.mrf.mxu0
        %855 = vdwg.mxu0
        %856 = vmatprep.subr.bf16.mxu0 0
        %857 = vmatpush1.bf16.msra.mxu0 0
        %858 = vmatprep.subr.bf16.mxu0 0
        %859 = vmatpush1.bf16.msra.mxu0 0
        %860 = vmatprep.subr.bf16.mxu0 0
        %861 = vmatpush1.bf16.msra.mxu0 0
        %862 = vmatprep.subr.bf16.mxu0 0
        %863 = vmatpush1.bf16.msra.mxu0 0
        %864 = vmatprep.subr.bf16.mxu0 0
        %865 = vmatpush1.bf16.msra.mxu0 0
        %866 = vmatprep.subr.bf16.mxu0 0
        %867 = vmatpush1.bf16.msra.mxu0 0
        %868 = vmatprep.subr.bf16.mxu0 0
        %869 = vmatpush1.bf16.msra.mxu0 0
        %870 = vmatprep.subr.bf16.mxu0 0
        %871 = vmatpush1.bf16.msra.mxu0 %v813
        %872 = vmatprep.subr.bf16.mxu0 0
        %873 = vmatpush2.bf16.msra.mxu0 0
        %874 = vmatprep.subr.bf16.mxu0 0
        %875 = vmatpush2.bf16.msra.mxu0 0
        %876 = vmatprep.subr.bf16.mxu0 0
        %877 = vmatpush2.bf16.msra.mxu0 0
        %878 = vmatprep.subr.bf16.mxu0 0
        %879 = vmatpush2.bf16.msra.mxu0 0
        %880 = vmatprep.subr.bf16.mxu0 0
        %881 = vmatpush2.bf16.msra.mxu0 0
        %882 = vmatprep.subr.bf16.mxu0 0
        %883 = vmatpush2.bf16.msra.mxu0 0
        %884 = vmatprep.subr.bf16.mxu0 0
        %885 = vmatpush2.bf16.msra.mxu0 0
        %886 = vmatprep.subr.bf16.mxu0 0
        %887 = vmatpush2.bf16.msra.mxu0 0
        %888 = vmatprep.mubr.bf16.mxu0 0
        %889 = vmatmul.mubr.bf16.gmra.mxu0 %v804
        %v890 = vpop.f32.mrf.mxu0
        %v891 = vadd.f32 0.0, %v890
        %v892 = vpop.f32.mrf.mxu0
        %v893 = vpop.f32.mrf.mxu0
        %v894 = vpop.f32.mrf.mxu0
        %895 = vdwg.mxu0
        %v896 = vadd.f32 %v771, %v850
        %v897 = vadd.f32 %v772, %v852
        %v898 = vadd.f32 %v773, %v891
        %v899 = vld [vmem:[%s175] sm:$0x3f]
        %s900 = scalar_lea.vmem %s1, 24
        %v901 = vld [vmem:[%s900] sm:$0xf]
        %v903 = vcombine.high %v899, %v899
        %v905 = vunpack.c.l.s4 1983009808
        %v906 = vunpack.c.0.s8 %v905
        %v907 = vlaneseq
        %v908 = vshrl.u32 %v907, 7
        %v909 = vsub.s32 %v906, %v908
        %v910 = vrot.slane %v899, %v909
        %v912 = vunpack.c.l.s4 1983009808
        %v913 = vunpack.c.0.s8 %v912
        %v914 = vlaneseq
        %v915 = vshrl.u32 %v914, 7
        %v916 = vsub.s32 %v913, %v915
        %v917 = vrot.slane %v903, %v916
        %v918 = vcombine.high %v910, %v910
        %919 = vrot.lane.b32.xlu0 %v910, 107
        %v920 = vpop.permute.xlu0 %919
        %921 = vrot.lane.b32.xlu0 %v918, 107
        %v922 = vpop.permute.xlu0 %921
        %923 = vrot.lane.b32.xlu0 %v917, 107
        %v924 = vpop.permute.xlu0 %923
        %vm925 = vcmask 875520
        %v926 = vsel %vm925, %v920, %v922
        %v927 = vsel %vm925, %v922, %v924
        %v929 = vsel %vm211, %v901, 0
        %v932 = vsel %vm215, %v926, 0
        %v935 = vsel %vm215, %v927, 0
        %v938 = vsel %vm215, %v924, 0
        %940 = vmatprep.subr.bf16.mxu0 0
        %941 = vmatpush1.bf16.msra.mxu0 0
        %942 = vmatprep.subr.bf16.mxu0 0
        %943 = vmatpush1.bf16.msra.mxu0 0
        %944 = vmatprep.subr.bf16.mxu0 0
        %945 = vmatpush1.bf16.msra.mxu0 0
        %946 = vmatprep.subr.bf16.mxu0 0
        %947 = vmatpush1.bf16.msra.mxu0 0
        %948 = vmatprep.subr.bf16.mxu0 0
        %949 = vmatpush1.bf16.msra.mxu0 0
        %950 = vmatprep.subr.bf16.mxu0 0
        %951 = vmatpush1.bf16.msra.mxu0 0
        %952 = vmatprep.subr.bf16.mxu0 0
        %953 = vmatpush1.bf16.msra.mxu0 0
        %954 = vmatprep.subr.bf16.mxu0 %v935
        %955 = vmatpush1.bf16.msra.mxu0 %v932
        %956 = vmatprep.subr.bf16.mxu0 0
        %957 = vmatpush2.bf16.msra.mxu0 0
        %958 = vmatprep.subr.bf16.mxu0 0
        %959 = vmatpush2.bf16.msra.mxu0 0
        %960 = vmatprep.subr.bf16.mxu0 0
        %961 = vmatpush2.bf16.msra.mxu0 0
        %962 = vmatprep.subr.bf16.mxu0 0
        %963 = vmatpush2.bf16.msra.mxu0 0
        %964 = vmatprep.subr.bf16.mxu0 0
        %965 = vmatpush2.bf16.msra.mxu0 0
        %966 = vmatprep.subr.bf16.mxu0 0
        %967 = vmatpush2.bf16.msra.mxu0 0
        %968 = vmatprep.subr.bf16.mxu0 0
        %969 = vmatpush2.bf16.msra.mxu0 0
        %970 = vmatprep.subr.bf16.mxu0 0
        %971 = vmatpush2.bf16.msra.mxu0 0
        %972 = vmatprep.mubr.bf16.mxu0 0
        %973 = vmatmul.mubr.bf16.gmra.mxu0 %v929
        %v974 = vpop.f32.mrf.mxu0
        %v975 = vadd.f32 0.0, %v974
        %v976 = vpop.f32.mrf.mxu0
        %v977 = vadd.f32 0.0, %v976
        %v978 = vpop.f32.mrf.mxu0
        %v979 = vpop.f32.mrf.mxu0
        %980 = vdwg.mxu0
        %981 = vmatprep.subr.bf16.mxu0 0
        %982 = vmatpush1.bf16.msra.mxu0 0
        %983 = vmatprep.subr.bf16.mxu0 0
        %984 = vmatpush1.bf16.msra.mxu0 0
        %985 = vmatprep.subr.bf16.mxu0 0
        %986 = vmatpush1.bf16.msra.mxu0 0
        %987 = vmatprep.subr.bf16.mxu0 0
        %988 = vmatpush1.bf16.msra.mxu0 0
        %989 = vmatprep.subr.bf16.mxu0 0
        %990 = vmatpush1.bf16.msra.mxu0 0
        %991 = vmatprep.subr.bf16.mxu0 0
        %992 = vmatpush1.bf16.msra.mxu0 0
        %993 = vmatprep.subr.bf16.mxu0 0
        %994 = vmatpush1.bf16.msra.mxu0 0
        %995 = vmatprep.subr.bf16.mxu0 0
        %996 = vmatpush1.bf16.msra.mxu0 %v938
        %997 = vmatprep.subr.bf16.mxu0 0
        %998 = vmatpush2.bf16.msra.mxu0 0
        %999 = vmatprep.subr.bf16.mxu0 0
        %1000 = vmatpush2.bf16.msra.mxu0 0
        %1001 = vmatprep.subr.bf16.mxu0 0
        %1002 = vmatpush2.bf16.msra.mxu0 0
        %1003 = vmatprep.subr.bf16.mxu0 0
        %1004 = vmatpush2.bf16.msra.mxu0 0
        %1005 = vmatprep.subr.bf16.mxu0 0
        %1006 = vmatpush2.bf16.msra.mxu0 0
        %1007 = vmatprep.subr.bf16.mxu0 0
        %1008 = vmatpush2.bf16.msra.mxu0 0
        %1009 = vmatprep.subr.bf16.mxu0 0
        %1010 = vmatpush2.bf16.msra.mxu0 0
        %1011 = vmatprep.subr.bf16.mxu0 0
        %1012 = vmatpush2.bf16.msra.mxu0 0
        %1013 = vmatprep.mubr.bf16.mxu0 0
        %1014 = vmatmul.mubr.bf16.gmra.mxu0 %v929
        %v1015 = vpop.f32.mrf.mxu0
        %v1016 = vadd.f32 0.0, %v1015
        %v1017 = vpop.f32.mrf.mxu0
        %v1018 = vpop.f32.mrf.mxu0
        %v1019 = vpop.f32.mrf.mxu0
        %1020 = vdwg.mxu0
        %v1021 = vadd.f32 %v896, %v975
        %v1022 = vadd.f32 %v897, %v977
        %v1023 = vadd.f32 %v898, %v1016
        %v1024 = vld [vmem:[%s175] sm:$0x3f]
        %s1025 = scalar_lea.vmem %s1, 28
        %v1026 = vld [vmem:[%s1025] sm:$0xf]
        %v1028 = vcombine.high %v1024, %v1024
        %v1030 = vunpack.c.l.s4 1983009808
        %v1031 = vunpack.c.0.s8 %v1030
        %v1032 = vlaneseq
        %v1033 = vshrl.u32 %v1032, 7
        %v1034 = vsub.s32 %v1031, %v1033
        %v1035 = vrot.slane %v1024, %v1034
        %v1037 = vunpack.c.l.s4 1983009808
        %v1038 = vunpack.c.0.s8 %v1037
        %v1039 = vlaneseq
        %v1040 = vshrl.u32 %v1039, 7
        %v1041 = vsub.s32 %v1038, %v1040
        %v1042 = vrot.slane %v1028, %v1041
        %v1043 = vcombine.high %v1035, %v1035
        %1044 = vrot.lane.b32.xlu0 %v1035, 106
        %v1045 = vpop.permute.xlu0 %1044
        %1046 = vrot.lane.b32.xlu0 %v1043, 106
        %v1047 = vpop.permute.xlu0 %1046
        %1048 = vrot.lane.b32.xlu0 %v1042, 106
        %v1049 = vpop.permute.xlu0 %1048
        %vm1050 = vcmask 867328
        %v1051 = vsel %vm1050, %v1045, %v1047
        %v1052 = vsel %vm1050, %v1047, %v1049
        %v1054 = vsel %vm211, %v1026, 0
        %v1057 = vsel %vm215, %v1051, 0
        %v1060 = vsel %vm215, %v1052, 0
        %v1063 = vsel %vm215, %v1049, 0
        %1065 = vmatprep.subr.bf16.mxu0 0
        %1066 = vmatpush1.bf16.msra.mxu0 0
        %1067 = vmatprep.subr.bf16.mxu0 0
        %1068 = vmatpush1.bf16.msra.mxu0 0
        %1069 = vmatprep.subr.bf16.mxu0 0
        %1070 = vmatpush1.bf16.msra.mxu0 0
        %1071 = vmatprep.subr.bf16.mxu0 0
        %1072 = vmatpush1.bf16.msra.mxu0 0
        %1073 = vmatprep.subr.bf16.mxu0 0
        %1074 = vmatpush1.bf16.msra.mxu0 0
        %1075 = vmatprep.subr.bf16.mxu0 0
        %1076 = vmatpush1.bf16.msra.mxu0 0
        %1077 = vmatprep.subr.bf16.mxu0 0
        %1078 = vmatpush1.bf16.msra.mxu0 0
        %1079 = vmatprep.subr.bf16.mxu0 %v1060
        %1080 = vmatpush1.bf16.msra.mxu0 %v1057
        %1081 = vmatprep.subr.bf16.mxu0 0
        %1082 = vmatpush2.bf16.msra.mxu0 0
        %1083 = vmatprep.subr.bf16.mxu0 0
        %1084 = vmatpush2.bf16.msra.mxu0 0
        %1085 = vmatprep.subr.bf16.mxu0 0
        %1086 = vmatpush2.bf16.msra.mxu0 0
        %1087 = vmatprep.subr.bf16.mxu0 0
        %1088 = vmatpush2.bf16.msra.mxu0 0
        %1089 = vmatprep.subr.bf16.mxu0 0
        %1090 = vmatpush2.bf16.msra.mxu0 0
        %1091 = vmatprep.subr.bf16.mxu0 0
        %1092 = vmatpush2.bf16.msra.mxu0 0
        %1093 = vmatprep.subr.bf16.mxu0 0
        %1094 = vmatpush2.bf16.msra.mxu0 0
        %1095 = vmatprep.subr.bf16.mxu0 0
        %1096 = vmatpush2.bf16.msra.mxu0 0
        %1097 = vmatprep.mubr.bf16.mxu0 0
        %1098 = vmatmul.mubr.bf16.gmra.mxu0 %v1054
        %v1099 = vpop.f32.mrf.mxu0
        %v1100 = vadd.f32 0.0, %v1099
        %v1101 = vpop.f32.mrf.mxu0
        %v1102 = vadd.f32 0.0, %v1101
        %v1103 = vpop.f32.mrf.mxu0
        %v1104 = vpop.f32.mrf.mxu0
        %1105 = vdwg.mxu0
        %1106 = vmatprep.subr.bf16.mxu0 0
        %1107 = vmatpush1.bf16.msra.mxu0 0
        %1108 = vmatprep.subr.bf16.mxu0 0
        %1109 = vmatpush1.bf16.msra.mxu0 0
        %1110 = vmatprep.subr.bf16.mxu0 0
        %1111 = vmatpush1.bf16.msra.mxu0 0
        %1112 = vmatprep.subr.bf16.mxu0 0
        %1113 = vmatpush1.bf16.msra.mxu0 0
        %1114 = vmatprep.subr.bf16.mxu0 0
        %1115 = vmatpush1.bf16.msra.mxu0 0
        %1116 = vmatprep.subr.bf16.mxu0 0
        %1117 = vmatpush1.bf16.msra.mxu0 0
        %1118 = vmatprep.subr.bf16.mxu0 0
        %1119 = vmatpush1.bf16.msra.mxu0 0
        %1120 = vmatprep.subr.bf16.mxu0 0
        %1121 = vmatpush1.bf16.msra.mxu0 %v1063
        %1122 = vmatprep.subr.bf16.mxu0 0
        %1123 = vmatpush2.bf16.msra.mxu0 0
        %1124 = vmatprep.subr.bf16.mxu0 0
        %1125 = vmatpush2.bf16.msra.mxu0 0
        %1126 = vmatprep.subr.bf16.mxu0 0
        %1127 = vmatpush2.bf16.msra.mxu0 0
        %1128 = vmatprep.subr.bf16.mxu0 0
        %1129 = vmatpush2.bf16.msra.mxu0 0
        %1130 = vmatprep.subr.bf16.mxu0 0
        %1131 = vmatpush2.bf16.msra.mxu0 0
        %1132 = vmatprep.subr.bf16.mxu0 0
        %1133 = vmatpush2.bf16.msra.mxu0 0
        %1134 = vmatprep.subr.bf16.mxu0 0
        %1135 = vmatpush2.bf16.msra.mxu0 0
        %1136 = vmatprep.subr.bf16.mxu0 0
        %1137 = vmatpush2.bf16.msra.mxu0 0
        %1138 = vmatprep.mubr.bf16.mxu0 0
        %1139 = vmatmul.mubr.bf16.gmra.mxu0 %v1054
        %v1140 = vpop.f32.mrf.mxu0
        %v1141 = vadd.f32 0.0, %v1140
        %v1142 = vpop.f32.mrf.mxu0
        %v1143 = vpop.f32.mrf.mxu0
        %v1144 = vpop.f32.mrf.mxu0
        %1145 = vdwg.mxu0
        %v1146 = vadd.f32 %v1021, %v1100
        %v1147 = vadd.f32 %v1022, %v1102
        %v1148 = vadd.f32 %v1023, %v1141
        %v1149 = vld [vmem:[%s175] sm:$0x3f]
        %s1150 = scalar_lea.vmem %s1, 32
        %v1151 = vld [vmem:[%s1150] sm:$0xf]
        %v1153 = vcombine.high %v1149, %v1149
        %v1155 = vunpack.c.l.s4 1983009808
        %v1156 = vunpack.c.0.s8 %v1155
        %v1157 = vlaneseq
        %v1158 = vshrl.u32 %v1157, 7
        %v1159 = vsub.s32 %v1156, %v1158
        %v1160 = vrot.slane %v1149, %v1159
        %v1162 = vunpack.c.l.s4 1983009808
        %v1163 = vunpack.c.0.s8 %v1162
        %v1164 = vlaneseq
        %v1165 = vshrl.u32 %v1164, 7
        %v1166 = vsub.s32 %v1163, %v1165
        %v1167 = vrot.slane %v1153, %v1166
        %v1168 = vcombine.high %v1160, %v1160
        %1169 = vrot.lane.b32.xlu0 %v1160, 105
        %v1170 = vpop.permute.xlu0 %1169
        %1171 = vrot.lane.b32.xlu0 %v1168, 105
        %v1172 = vpop.permute.xlu0 %1171
        %1173 = vrot.lane.b32.xlu0 %v1167, 105
        %v1174 = vpop.permute.xlu0 %1173
        %vm1175 = vcmask 859136
        %v1176 = vsel %vm1175, %v1170, %v1172
        %v1177 = vsel %vm1175, %v1172, %v1174
        %v1179 = vsel %vm211, %v1151, 0
        %v1182 = vsel %vm215, %v1176, 0
        %v1185 = vsel %vm215, %v1177, 0
        %v1188 = vsel %vm215, %v1174, 0
        %1190 = vmatprep.subr.bf16.mxu0 0
        %1191 = vmatpush1.bf16.msra.mxu0 0
        %1192 = vmatprep.subr.bf16.mxu0 0
        %1193 = vmatpush1.bf16.msra.mxu0 0
        %1194 = vmatprep.subr.bf16.mxu0 0
        %1195 = vmatpush1.bf16.msra.mxu0 0
        %1196 = vmatprep.subr.bf16.mxu0 0
        %1197 = vmatpush1.bf16.msra.mxu0 0
        %1198 = vmatprep.subr.bf16.mxu0 0
        %1199 = vmatpush1.bf16.msra.mxu0 0
        %1200 = vmatprep.subr.bf16.mxu0 0
        %1201 = vmatpush1.bf16.msra.mxu0 0
        %1202 = vmatprep.subr.bf16.mxu0 0
        %1203 = vmatpush1.bf16.msra.mxu0 0
        %1204 = vmatprep.subr.bf16.mxu0 %v1185
        %1205 = vmatpush1.bf16.msra.mxu0 %v1182
        %1206 = vmatprep.subr.bf16.mxu0 0
        %1207 = vmatpush2.bf16.msra.mxu0 0
        %1208 = vmatprep.subr.bf16.mxu0 0
        %1209 = vmatpush2.bf16.msra.mxu0 0
        %1210 = vmatprep.subr.bf16.mxu0 0
        %1211 = vmatpush2.bf16.msra.mxu0 0
        %1212 = vmatprep.subr.bf16.mxu0 0
        %1213 = vmatpush2.bf16.msra.mxu0 0
        %1214 = vmatprep.subr.bf16.mxu0 0
        %1215 = vmatpush2.bf16.msra.mxu0 0
        %1216 = vmatprep.subr.bf16.mxu0 0
        %1217 = vmatpush2.bf16.msra.mxu0 0
        %1218 = vmatprep.subr.bf16.mxu0 0
        %1219 = vmatpush2.bf16.msra.mxu0 0
        %1220 = vmatprep.subr.bf16.mxu0 0
        %1221 = vmatpush2.bf16.msra.mxu0 0
        %1222 = vmatprep.mubr.bf16.mxu0 0
        %1223 = vmatmul.mubr.bf16.gmra.mxu0 %v1179
        %v1224 = vpop.f32.mrf.mxu0
        %v1225 = vadd.f32 0.0, %v1224
        %v1226 = vpop.f32.mrf.mxu0
        %v1227 = vadd.f32 0.0, %v1226
        %v1228 = vpop.f32.mrf.mxu0
        %v1229 = vpop.f32.mrf.mxu0
        %1230 = vdwg.mxu0
        %1231 = vmatprep.subr.bf16.mxu0 0
        %1232 = vmatpush1.bf16.msra.mxu0 0
        %1233 = vmatprep.subr.bf16.mxu0 0
        %1234 = vmatpush1.bf16.msra.mxu0 0
        %1235 = vmatprep.subr.bf16.mxu0 0
        %1236 = vmatpush1.bf16.msra.mxu0 0
        %1237 = vmatprep.subr.bf16.mxu0 0
        %1238 = vmatpush1.bf16.msra.mxu0 0
        %1239 = vmatprep.subr.bf16.mxu0 0
        %1240 = vmatpush1.bf16.msra.mxu0 0
        %1241 = vmatprep.subr.bf16.mxu0 0
        %1242 = vmatpush1.bf16.msra.mxu0 0
        %1243 = vmatprep.subr.bf16.mxu0 0
        %1244 = vmatpush1.bf16.msra.mxu0 0
        %1245 = vmatprep.subr.bf16.mxu0 0
        %1246 = vmatpush1.bf16.msra.mxu0 %v1188
        %1247 = vmatprep.subr.bf16.mxu0 0
        %1248 = vmatpush2.bf16.msra.mxu0 0
        %1249 = vmatprep.subr.bf16.mxu0 0
        %1250 = vmatpush2.bf16.msra.mxu0 0
        %1251 = vmatprep.subr.bf16.mxu0 0
        %1252 = vmatpush2.bf16.msra.mxu0 0
        %1253 = vmatprep.subr.bf16.mxu0 0
        %1254 = vmatpush2.bf16.msra.mxu0 0
        %1255 = vmatprep.subr.bf16.mxu0 0
        %1256 = vmatpush2.bf16.msra.mxu0 0
        %1257 = vmatprep.subr.bf16.mxu0 0
        %1258 = vmatpush2.bf16.msra.mxu0 0
        %1259 = vmatprep.subr.bf16.mxu0 0
        %1260 = vmatpush2.bf16.msra.mxu0 0
        %1261 = vmatprep.subr.bf16.mxu0 0
        %1262 = vmatpush2.bf16.msra.mxu0 0
        %1263 = vmatprep.mubr.bf16.mxu0 0
        %1264 = vmatmul.mubr.bf16.gmra.mxu0 %v1179
        %v1265 = vpop.f32.mrf.mxu0
        %v1266 = vadd.f32 0.0, %v1265
        %v1267 = vpop.f32.mrf.mxu0
        %v1268 = vpop.f32.mrf.mxu0
        %v1269 = vpop.f32.mrf.mxu0
        %1270 = vdwg.mxu0
        %v1271 = vadd.f32 %v1146, %v1225
        %v1272 = vadd.f32 %v1147, %v1227
        %v1273 = vadd.f32 %v1148, %v1266
        %v1274 = vld [vmem:[%s175] sm:$0x3f]
        %s1275 = scalar_lea.vmem %s1, 36
        %v1276 = vld [vmem:[%s1275] sm:$0xf]
        %v1278 = vcombine.high %v1274, %v1274
        %v1280 = vunpack.c.l.s4 1983009808
        %v1281 = vunpack.c.0.s8 %v1280
        %v1282 = vlaneseq
        %v1283 = vshrl.u32 %v1282, 7
        %v1284 = vsub.s32 %v1281, %v1283
        %v1285 = vrot.slane %v1274, %v1284
        %v1287 = vunpack.c.l.s4 1983009808
        %v1288 = vunpack.c.0.s8 %v1287
        %v1289 = vlaneseq
        %v1290 = vshrl.u32 %v1289, 7
        %v1291 = vsub.s32 %v1288, %v1290
        %v1292 = vrot.slane %v1278, %v1291
        %v1293 = vcombine.high %v1285, %v1285
        %1294 = vrot.lane.b32.xlu0 %v1285, 104
        %v1295 = vpop.permute.xlu0 %1294
        %1296 = vrot.lane.b32.xlu0 %v1293, 104
        %v1297 = vpop.permute.xlu0 %1296
        %1298 = vrot.lane.b32.xlu0 %v1292, 104
        %v1299 = vpop.permute.xlu0 %1298
        %vm1300 = vcmask 850944
        %v1301 = vsel %vm1300, %v1295, %v1297
        %v1302 = vsel %vm1300, %v1297, %v1299
        %v1304 = vsel %vm211, %v1276, 0
        %v1307 = vsel %vm215, %v1301, 0
        %v1310 = vsel %vm215, %v1302, 0
        %v1313 = vsel %vm215, %v1299, 0
        %1315 = vmatprep.subr.bf16.mxu0 0
        %1316 = vmatpush1.bf16.msra.mxu0 0
        %1317 = vmatprep.subr.bf16.mxu0 0
        %1318 = vmatpush1.bf16.msra.mxu0 0
        %1319 = vmatprep.subr.bf16.mxu0 0
        %1320 = vmatpush1.bf16.msra.mxu0 0
        %1321 = vmatprep.subr.bf16.mxu0 0
        %1322 = vmatpush1.bf16.msra.mxu0 0
        %1323 = vmatprep.subr.bf16.mxu0 0
        %1324 = vmatpush1.bf16.msra.mxu0 0
        %1325 = vmatprep.subr.bf16.mxu0 0
        %1326 = vmatpush1.bf16.msra.mxu0 0
        %1327 = vmatprep.subr.bf16.mxu0 0
        %1328 = vmatpush1.bf16.msra.mxu0 0
        %1329 = vmatprep.subr.bf16.mxu0 %v1310
        %1330 = vmatpush1.bf16.msra.mxu0 %v1307
        %1331 = vmatprep.subr.bf16.mxu0 0
        %1332 = vmatpush2.bf16.msra.mxu0 0
        %1333 = vmatprep.subr.bf16.mxu0 0
        %1334 = vmatpush2.bf16.msra.mxu0 0
        %1335 = vmatprep.subr.bf16.mxu0 0
        %1336 = vmatpush2.bf16.msra.mxu0 0
        %1337 = vmatprep.subr.bf16.mxu0 0
        %1338 = vmatpush2.bf16.msra.mxu0 0
        %1339 = vmatprep.subr.bf16.mxu0 0
        %1340 = vmatpush2.bf16.msra.mxu0 0
        %1341 = vmatprep.subr.bf16.mxu0 0
        %1342 = vmatpush2.bf16.msra.mxu0 0
        %1343 = vmatprep.subr.bf16.mxu0 0
        %1344 = vmatpush2.bf16.msra.mxu0 0
        %1345 = vmatprep.subr.bf16.mxu0 0
        %1346 = vmatpush2.bf16.msra.mxu0 0
        %1347 = vmatprep.mubr.bf16.mxu0 0
        %1348 = vmatmul.mubr.bf16.gmra.mxu0 %v1304
        %v1349 = vpop.f32.mrf.mxu0
        %v1350 = vadd.f32 0.0, %v1349
        %v1351 = vpop.f32.mrf.mxu0
        %v1352 = vadd.f32 0.0, %v1351
        %v1353 = vpop.f32.mrf.mxu0
        %v1354 = vpop.f32.mrf.mxu0
        %1355 = vdwg.mxu0
        %1356 = vmatprep.subr.bf16.mxu0 0
        %1357 = vmatpush1.bf16.msra.mxu0 0
        %1358 = vmatprep.subr.bf16.mxu0 0
        %1359 = vmatpush1.bf16.msra.mxu0 0
        %1360 = vmatprep.subr.bf16.mxu0 0
        %1361 = vmatpush1.bf16.msra.mxu0 0
        %1362 = vmatprep.subr.bf16.mxu0 0
        %1363 = vmatpush1.bf16.msra.mxu0 0
        %1364 = vmatprep.subr.bf16.mxu0 0
        %1365 = vmatpush1.bf16.msra.mxu0 0
        %1366 = vmatprep.subr.bf16.mxu0 0
        %1367 = vmatpush1.bf16.msra.mxu0 0
        %1368 = vmatprep.subr.bf16.mxu0 0
        %1369 = vmatpush1.bf16.msra.mxu0 0
        %1370 = vmatprep.subr.bf16.mxu0 0
        %1371 = vmatpush1.bf16.msra.mxu0 %v1313
        %1372 = vmatprep.subr.bf16.mxu0 0
        %1373 = vmatpush2.bf16.msra.mxu0 0
        %1374 = vmatprep.subr.bf16.mxu0 0
        %1375 = vmatpush2.bf16.msra.mxu0 0
        %1376 = vmatprep.subr.bf16.mxu0 0
        %1377 = vmatpush2.bf16.msra.mxu0 0
        %1378 = vmatprep.subr.bf16.mxu0 0
        %1379 = vmatpush2.bf16.msra.mxu0 0
        %1380 = vmatprep.subr.bf16.mxu0 0
        %1381 = vmatpush2.bf16.msra.mxu0 0
        %1382 = vmatprep.subr.bf16.mxu0 0
        %1383 = vmatpush2.bf16.msra.mxu0 0
        %1384 = vmatprep.subr.bf16.mxu0 0
        %1385 = vmatpush2.bf16.msra.mxu0 0
        %1386 = vmatprep.subr.bf16.mxu0 0
        %1387 = vmatpush2.bf16.msra.mxu0 0
        %1388 = vmatprep.mubr.bf16.mxu0 0
        %1389 = vmatmul.mubr.bf16.gmra.mxu0 %v1304
        %v1390 = vpop.f32.mrf.mxu0
        %v1391 = vadd.f32 0.0, %v1390
        %v1392 = vpop.f32.mrf.mxu0
        %v1393 = vpop.f32.mrf.mxu0
        %v1394 = vpop.f32.mrf.mxu0
        %1395 = vdwg.mxu0
        %v1396 = vadd.f32 %v1271, %v1350
        %v1397 = vadd.f32 %v1272, %v1352
        %v1398 = vadd.f32 %v1273, %v1391
        %v1399 = vld [vmem:[%s175] sm:$0x3f]
        %s1400 = scalar_lea.vmem %s1, 40
        %v1401 = vld [vmem:[%s1400] sm:$0xf]
        %v1403 = vcombine.high %v1399, %v1399
        %v1405 = vunpack.c.l.s4 1983009808
        %v1406 = vunpack.c.0.s8 %v1405
        %v1407 = vlaneseq
        %v1408 = vshrl.u32 %v1407, 7
        %v1409 = vsub.s32 %v1406, %v1408
        %v1410 = vrot.slane %v1399, %v1409
        %v1412 = vunpack.c.l.s4 1983009808
        %v1413 = vunpack.c.0.s8 %v1412
        %v1414 = vlaneseq
        %v1415 = vshrl.u32 %v1414, 7
        %v1416 = vsub.s32 %v1413, %v1415
        %v1417 = vrot.slane %v1403, %v1416
        %v1418 = vcombine.high %v1410, %v1410
        %1419 = vrot.lane.b32.xlu0 %v1410, 88
        %v1420 = vpop.permute.xlu0 %1419
        %1421 = vrot.lane.b32.xlu0 %v1418, 88
        %v1422 = vpop.permute.xlu0 %1421
        %1423 = vrot.lane.b32.xlu0 %v1417, 88
        %v1424 = vpop.permute.xlu0 %1423
        %vm1425 = vcmask 719872
        %v1426 = vsel %vm1425, %v1420, %v1422
        %v1427 = vsel %vm1425, %v1422, %v1424
        %v1429 = vsel %vm211, %v1401, 0
        %v1432 = vsel %vm215, %v1426, 0
        %v1435 = vsel %vm215, %v1427, 0
        %v1438 = vsel %vm215, %v1424, 0
        %1440 = vmatprep.subr.bf16.mxu0 0
        %1441 = vmatpush1.bf16.msra.mxu0 0
        %1442 = vmatprep.subr.bf16.mxu0 0
        %1443 = vmatpush1.bf16.msra.mxu0 0
        %1444 = vmatprep.subr.bf16.mxu0 0
        %1445 = vmatpush1.bf16.msra.mxu0 0
        %1446 = vmatprep.subr.bf16.mxu0 0
        %1447 = vmatpush1.bf16.msra.mxu0 0
        %1448 = vmatprep.subr.bf16.mxu0 0
        %1449 = vmatpush1.bf16.msra.mxu0 0
        %1450 = vmatprep.subr.bf16.mxu0 0
        %1451 = vmatpush1.bf16.msra.mxu0 0
        %1452 = vmatprep.subr.bf16.mxu0 0
        %1453 = vmatpush1.bf16.msra.mxu0 0
        %1454 = vmatprep.subr.bf16.mxu0 %v1435
        %1455 = vmatpush1.bf16.msra.mxu0 %v1432
        %1456 = vmatprep.subr.bf16.mxu0 0
        %1457 = vmatpush2.bf16.msra.mxu0 0
        %1458 = vmatprep.subr.bf16.mxu0 0
        %1459 = vmatpush2.bf16.msra.mxu0 0
        %1460 = vmatprep.subr.bf16.mxu0 0
        %1461 = vmatpush2.bf16.msra.mxu0 0
        %1462 = vmatprep.subr.bf16.mxu0 0
        %1463 = vmatpush2.bf16.msra.mxu0 0
        %1464 = vmatprep.subr.bf16.mxu0 0
        %1465 = vmatpush2.bf16.msra.mxu0 0
        %1466 = vmatprep.subr.bf16.mxu0 0
        %1467 = vmatpush2.bf16.msra.mxu0 0
        %1468 = vmatprep.subr.bf16.mxu0 0
        %1469 = vmatpush2.bf16.msra.mxu0 0
        %1470 = vmatprep.subr.bf16.mxu0 0
        %1471 = vmatpush2.bf16.msra.mxu0 0
        %1472 = vmatprep.mubr.bf16.mxu0 0
        %1473 = vmatmul.mubr.bf16.gmra.mxu0 %v1429
        %v1474 = vpop.f32.mrf.mxu0
        %v1475 = vadd.f32 0.0, %v1474
        %v1476 = vpop.f32.mrf.mxu0
        %v1477 = vadd.f32 0.0, %v1476
        %v1478 = vpop.f32.mrf.mxu0
        %v1479 = vpop.f32.mrf.mxu0
        %1480 = vdwg.mxu0
        %1481 = vmatprep.subr.bf16.mxu0 0
        %1482 = vmatpush1.bf16.msra.mxu0 0
        %1483 = vmatprep.subr.bf16.mxu0 0
        %1484 = vmatpush1.bf16.msra.mxu0 0
        %1485 = vmatprep.subr.bf16.mxu0 0
        %1486 = vmatpush1.bf16.msra.mxu0 0
        %1487 = vmatprep.subr.bf16.mxu0 0
        %1488 = vmatpush1.bf16.msra.mxu0 0
        %1489 = vmatprep.subr.bf16.mxu0 0
        %1490 = vmatpush1.bf16.msra.mxu0 0
        %1491 = vmatprep.subr.bf16.mxu0 0
        %1492 = vmatpush1.bf16.msra.mxu0 0
        %1493 = vmatprep.subr.bf16.mxu0 0
        %1494 = vmatpush1.bf16.msra.mxu0 0
        %1495 = vmatprep.subr.bf16.mxu0 0
        %1496 = vmatpush1.bf16.msra.mxu0 %v1438
        %1497 = vmatprep.subr.bf16.mxu0 0
        %1498 = vmatpush2.bf16.msra.mxu0 0
        %1499 = vmatprep.subr.bf16.mxu0 0
        %1500 = vmatpush2.bf16.msra.mxu0 0
        %1501 = vmatprep.subr.bf16.mxu0 0
        %1502 = vmatpush2.bf16.msra.mxu0 0
        %1503 = vmatprep.subr.bf16.mxu0 0
        %1504 = vmatpush2.bf16.msra.mxu0 0
        %1505 = vmatprep.subr.bf16.mxu0 0
        %1506 = vmatpush2.bf16.msra.mxu0 0
        %1507 = vmatprep.subr.bf16.mxu0 0
        %1508 = vmatpush2.bf16.msra.mxu0 0
        %1509 = vmatprep.subr.bf16.mxu0 0
        %1510 = vmatpush2.bf16.msra.mxu0 0
        %1511 = vmatprep.subr.bf16.mxu0 0
        %1512 = vmatpush2.bf16.msra.mxu0 0
        %1513 = vmatprep.mubr.bf16.mxu0 0
        %1514 = vmatmul.mubr.bf16.gmra.mxu0 %v1429
        %v1515 = vpop.f32.mrf.mxu0
        %v1516 = vadd.f32 0.0, %v1515
        %v1517 = vpop.f32.mrf.mxu0
        %v1518 = vpop.f32.mrf.mxu0
        %v1519 = vpop.f32.mrf.mxu0
        %1520 = vdwg.mxu0
        %v1521 = vadd.f32 %v1396, %v1475
        %v1522 = vadd.f32 %v1397, %v1477
        %v1523 = vadd.f32 %v1398, %v1516
        %v1524 = vld [vmem:[%s175] sm:$0x3f]
        %s1525 = scalar_lea.vmem %s1, 44
        %v1526 = vld [vmem:[%s1525] sm:$0xf]
        %v1528 = vcombine.high %v1524, %v1524
        %v1530 = vunpack.c.l.s4 1983009808
        %v1531 = vunpack.c.0.s8 %v1530
        %v1532 = vlaneseq
        %v1533 = vshrl.u32 %v1532, 7
        %v1534 = vsub.s32 %v1531, %v1533
        %v1535 = vrot.slane %v1524, %v1534
        %v1537 = vunpack.c.l.s4 1983009808
        %v1538 = vunpack.c.0.s8 %v1537
        %v1539 = vlaneseq
        %v1540 = vshrl.u32 %v1539, 7
        %v1541 = vsub.s32 %v1538, %v1540
        %v1542 = vrot.slane %v1528, %v1541
        %v1543 = vcombine.high %v1535, %v1535
        %1544 = vrot.lane.b32.xlu0 %v1535, 87
        %v1545 = vpop.permute.xlu0 %1544
        %1546 = vrot.lane.b32.xlu0 %v1543, 87
        %v1547 = vpop.permute.xlu0 %1546
        %1548 = vrot.lane.b32.xlu0 %v1542, 87
        %v1549 = vpop.permute.xlu0 %1548
        %vm1550 = vcmask 711680
        %v1551 = vsel %vm1550, %v1545, %v1547
        %v1552 = vsel %vm1550, %v1547, %v1549
        %v1554 = vsel %vm211, %v1526, 0
        %v1557 = vsel %vm215, %v1551, 0
        %v1560 = vsel %vm215, %v1552, 0
        %v1563 = vsel %vm215, %v1549, 0
        %1565 = vmatprep.subr.bf16.mxu0 0
        %1566 = vmatpush1.bf16.msra.mxu0 0
        %1567 = vmatprep.subr.bf16.mxu0 0
        %1568 = vmatpush1.bf16.msra.mxu0 0
        %1569 = vmatprep.subr.bf16.mxu0 0
        %1570 = vmatpush1.bf16.msra.mxu0 0
        %1571 = vmatprep.subr.bf16.mxu0 0
        %1572 = vmatpush1.bf16.msra.mxu0 0
        %1573 = vmatprep.subr.bf16.mxu0 0
        %1574 = vmatpush1.bf16.msra.mxu0 0
        %1575 = vmatprep.subr.bf16.mxu0 0
        %1576 = vmatpush1.bf16.msra.mxu0 0
        %1577 = vmatprep.subr.bf16.mxu0 0
        %1578 = vmatpush1.bf16.msra.mxu0 0
        %1579 = vmatprep.subr.bf16.mxu0 %v1560
        %1580 = vmatpush1.bf16.msra.mxu0 %v1557
        %1581 = vmatprep.subr.bf16.mxu0 0
        %1582 = vmatpush2.bf16.msra.mxu0 0
        %1583 = vmatprep.subr.bf16.mxu0 0
        %1584 = vmatpush2.bf16.msra.mxu0 0
        %1585 = vmatprep.subr.bf16.mxu0 0
        %1586 = vmatpush2.bf16.msra.mxu0 0
        %1587 = vmatprep.subr.bf16.mxu0 0
        %1588 = vmatpush2.bf16.msra.mxu0 0
        %1589 = vmatprep.subr.bf16.mxu0 0
        %1590 = vmatpush2.bf16.msra.mxu0 0
        %1591 = vmatprep.subr.bf16.mxu0 0
        %1592 = vmatpush2.bf16.msra.mxu0 0
        %1593 = vmatprep.subr.bf16.mxu0 0
        %1594 = vmatpush2.bf16.msra.mxu0 0
        %1595 = vmatprep.subr.bf16.mxu0 0
        %1596 = vmatpush2.bf16.msra.mxu0 0
        %1597 = vmatprep.mubr.bf16.mxu0 0
        %1598 = vmatmul.mubr.bf16.gmra.mxu0 %v1554
        %v1599 = vpop.f32.mrf.mxu0
        %v1600 = vadd.f32 0.0, %v1599
        %v1601 = vpop.f32.mrf.mxu0
        %v1602 = vadd.f32 0.0, %v1601
        %v1603 = vpop.f32.mrf.mxu0
        %v1604 = vpop.f32.mrf.mxu0
        %1605 = vdwg.mxu0
        %1606 = vmatprep.subr.bf16.mxu0 0
        %1607 = vmatpush1.bf16.msra.mxu0 0
        %1608 = vmatprep.subr.bf16.mxu0 0
        %1609 = vmatpush1.bf16.msra.mxu0 0
        %1610 = vmatprep.subr.bf16.mxu0 0
        %1611 = vmatpush1.bf16.msra.mxu0 0
        %1612 = vmatprep.subr.bf16.mxu0 0
        %1613 = vmatpush1.bf16.msra.mxu0 0
        %1614 = vmatprep.subr.bf16.mxu0 0
        %1615 = vmatpush1.bf16.msra.mxu0 0
        %1616 = vmatprep.subr.bf16.mxu0 0
        %1617 = vmatpush1.bf16.msra.mxu0 0
        %1618 = vmatprep.subr.bf16.mxu0 0
        %1619 = vmatpush1.bf16.msra.mxu0 0
        %1620 = vmatprep.subr.bf16.mxu0 0
        %1621 = vmatpush1.bf16.msra.mxu0 %v1563
        %1622 = vmatprep.subr.bf16.mxu0 0
        %1623 = vmatpush2.bf16.msra.mxu0 0
        %1624 = vmatprep.subr.bf16.mxu0 0
        %1625 = vmatpush2.bf16.msra.mxu0 0
        %1626 = vmatprep.subr.bf16.mxu0 0
        %1627 = vmatpush2.bf16.msra.mxu0 0
        %1628 = vmatprep.subr.bf16.mxu0 0
        %1629 = vmatpush2.bf16.msra.mxu0 0
        %1630 = vmatprep.subr.bf16.mxu0 0
        %1631 = vmatpush2.bf16.msra.mxu0 0
        %1632 = vmatprep.subr.bf16.mxu0 0
        %1633 = vmatpush2.bf16.msra.mxu0 0
        %1634 = vmatprep.subr.bf16.mxu0 0
        %1635 = vmatpush2.bf16.msra.mxu0 0
        %1636 = vmatprep.subr.bf16.mxu0 0
        %1637 = vmatpush2.bf16.msra.mxu0 0
        %1638 = vmatprep.mubr.bf16.mxu0 0
        %1639 = vmatmul.mubr.bf16.gmra.mxu0 %v1554
        %v1640 = vpop.f32.mrf.mxu0
        %v1641 = vadd.f32 0.0, %v1640
        %v1642 = vpop.f32.mrf.mxu0
        %v1643 = vpop.f32.mrf.mxu0
        %v1644 = vpop.f32.mrf.mxu0
        %1645 = vdwg.mxu0
        %v1646 = vadd.f32 %v1521, %v1600
        %v1647 = vadd.f32 %v1522, %v1602
        %v1648 = vadd.f32 %v1523, %v1641
        %v1649 = vld [vmem:[%s175] sm:$0x3f]
        %s1650 = scalar_lea.vmem %s1, 48
        %v1651 = vld [vmem:[%s1650] sm:$0xf]
        %v1653 = vcombine.high %v1649, %v1649
        %v1655 = vunpack.c.l.s4 1983009808
        %v1656 = vunpack.c.0.s8 %v1655
        %v1657 = vlaneseq
        %v1658 = vshrl.u32 %v1657, 7
        %v1659 = vsub.s32 %v1656, %v1658
        %v1660 = vrot.slane %v1649, %v1659
        %v1662 = vunpack.c.l.s4 1983009808
        %v1663 = vunpack.c.0.s8 %v1662
        %v1664 = vlaneseq
        %v1665 = vshrl.u32 %v1664, 7
        %v1666 = vsub.s32 %v1663, %v1665
        %v1667 = vrot.slane %v1653, %v1666
        %v1668 = vcombine.high %v1660, %v1660
        %1669 = vrot.lane.b32.xlu0 %v1660, 86
        %v1670 = vpop.permute.xlu0 %1669
        %1671 = vrot.lane.b32.xlu0 %v1668, 86
        %v1672 = vpop.permute.xlu0 %1671
        %1673 = vrot.lane.b32.xlu0 %v1667, 86
        %v1674 = vpop.permute.xlu0 %1673
        %vm1675 = vcmask 703488
        %v1676 = vsel %vm1675, %v1670, %v1672
        %v1677 = vsel %vm1675, %v1672, %v1674
        %v1679 = vsel %vm211, %v1651, 0
        %v1682 = vsel %vm215, %v1676, 0
        %v1685 = vsel %vm215, %v1677, 0
        %v1688 = vsel %vm215, %v1674, 0
        %1690 = vmatprep.subr.bf16.mxu0 0
        %1691 = vmatpush1.bf16.msra.mxu0 0
        %1692 = vmatprep.subr.bf16.mxu0 0
        %1693 = vmatpush1.bf16.msra.mxu0 0
        %1694 = vmatprep.subr.bf16.mxu0 0
        %1695 = vmatpush1.bf16.msra.mxu0 0
        %1696 = vmatprep.subr.bf16.mxu0 0
        %1697 = vmatpush1.bf16.msra.mxu0 0
        %1698 = vmatprep.subr.bf16.mxu0 0
        %1699 = vmatpush1.bf16.msra.mxu0 0
        %1700 = vmatprep.subr.bf16.mxu0 0
        %1701 = vmatpush1.bf16.msra.mxu0 0
        %1702 = vmatprep.subr.bf16.mxu0 0
        %1703 = vmatpush1.bf16.msra.mxu0 0
        %1704 = vmatprep.subr.bf16.mxu0 %v1685
        %1705 = vmatpush1.bf16.msra.mxu0 %v1682
        %1706 = vmatprep.subr.bf16.mxu0 0
        %1707 = vmatpush2.bf16.msra.mxu0 0
        %1708 = vmatprep.subr.bf16.mxu0 0
        %1709 = vmatpush2.bf16.msra.mxu0 0
        %1710 = vmatprep.subr.bf16.mxu0 0
        %1711 = vmatpush2.bf16.msra.mxu0 0
        %1712 = vmatprep.subr.bf16.mxu0 0
        %1713 = vmatpush2.bf16.msra.mxu0 0
        %1714 = vmatprep.subr.bf16.mxu0 0
        %1715 = vmatpush2.bf16.msra.mxu0 0
        %1716 = vmatprep.subr.bf16.mxu0 0
        %1717 = vmatpush2.bf16.msra.mxu0 0
        %1718 = vmatprep.subr.bf16.mxu0 0
        %1719 = vmatpush2.bf16.msra.mxu0 0
        %1720 = vmatprep.subr.bf16.mxu0 0
        %1721 = vmatpush2.bf16.msra.mxu0 0
        %1722 = vmatprep.mubr.bf16.mxu0 0
        %1723 = vmatmul.mubr.bf16.gmra.mxu0 %v1679
        %v1724 = vpop.f32.mrf.mxu0
        %v1725 = vadd.f32 0.0, %v1724
        %v1726 = vpop.f32.mrf.mxu0
        %v1727 = vadd.f32 0.0, %v1726
        %v1728 = vpop.f32.mrf.mxu0
        %v1729 = vpop.f32.mrf.mxu0
        %1730 = vdwg.mxu0
        %1731 = vmatprep.subr.bf16.mxu0 0
        %1732 = vmatpush1.bf16.msra.mxu0 0
        %1733 = vmatprep.subr.bf16.mxu0 0
        %1734 = vmatpush1.bf16.msra.mxu0 0
        %1735 = vmatprep.subr.bf16.mxu0 0
        %1736 = vmatpush1.bf16.msra.mxu0 0
        %1737 = vmatprep.subr.bf16.mxu0 0
        %1738 = vmatpush1.bf16.msra.mxu0 0
        %1739 = vmatprep.subr.bf16.mxu0 0
        %1740 = vmatpush1.bf16.msra.mxu0 0
        %1741 = vmatprep.subr.bf16.mxu0 0
        %1742 = vmatpush1.bf16.msra.mxu0 0
        %1743 = vmatprep.subr.bf16.mxu0 0
        %1744 = vmatpush1.bf16.msra.mxu0 0
        %1745 = vmatprep.subr.bf16.mxu0 0
        %1746 = vmatpush1.bf16.msra.mxu0 %v1688
        %1747 = vmatprep.subr.bf16.mxu0 0
        %1748 = vmatpush2.bf16.msra.mxu0 0
        %1749 = vmatprep.subr.bf16.mxu0 0
        %1750 = vmatpush2.bf16.msra.mxu0 0
        %1751 = vmatprep.subr.bf16.mxu0 0
        %1752 = vmatpush2.bf16.msra.mxu0 0
        %1753 = vmatprep.subr.bf16.mxu0 0
        %1754 = vmatpush2.bf16.msra.mxu0 0
        %1755 = vmatprep.subr.bf16.mxu0 0
        %1756 = vmatpush2.bf16.msra.mxu0 0
        %1757 = vmatprep.subr.bf16.mxu0 0
        %1758 = vmatpush2.bf16.msra.mxu0 0
        %1759 = vmatprep.subr.bf16.mxu0 0
        %1760 = vmatpush2.bf16.msra.mxu0 0
        %1761 = vmatprep.subr.bf16.mxu0 0
        %1762 = vmatpush2.bf16.msra.mxu0 0
        %1763 = vmatprep.mubr.bf16.mxu0 0
        %1764 = vmatmul.mubr.bf16.gmra.mxu0 %v1679
        %v1765 = vpop.f32.mrf.mxu0
        %v1766 = vadd.f32 0.0, %v1765
        %v1767 = vpop.f32.mrf.mxu0
        %v1768 = vpop.f32.mrf.mxu0
        %v1769 = vpop.f32.mrf.mxu0
        %1770 = vdwg.mxu0
        %v1771 = vadd.f32 %v1646, %v1725
        %v1772 = vadd.f32 %v1647, %v1727
        %v1773 = vadd.f32 %v1648, %v1766
        %v1774 = vld [vmem:[%s175] sm:$0x3f]
        %s1775 = scalar_lea.vmem %s1, 52
        %v1776 = vld [vmem:[%s1775] sm:$0xf]
        %v1778 = vcombine.high %v1774, %v1774
        %v1780 = vunpack.c.l.s4 1983009808
        %v1781 = vunpack.c.0.s8 %v1780
        %v1782 = vlaneseq
        %v1783 = vshrl.u32 %v1782, 7
        %v1784 = vsub.s32 %v1781, %v1783
        %v1785 = vrot.slane %v1774, %v1784
        %v1787 = vunpack.c.l.s4 1983009808
        %v1788 = vunpack.c.0.s8 %v1787
        %v1789 = vlaneseq
        %v1790 = vshrl.u32 %v1789, 7
        %v1791 = vsub.s32 %v1788, %v1790
        %v1792 = vrot.slane %v1778, %v1791
        %v1793 = vcombine.high %v1785, %v1785
        %1794 = vrot.lane.b32.xlu0 %v1785, 85
        %v1795 = vpop.permute.xlu0 %1794
        %1796 = vrot.lane.b32.xlu0 %v1793, 85
        %v1797 = vpop.permute.xlu0 %1796
        %1798 = vrot.lane.b32.xlu0 %v1792, 85
        %v1799 = vpop.permute.xlu0 %1798
        %vm1800 = vcmask 695296
        %v1801 = vsel %vm1800, %v1795, %v1797
        %v1802 = vsel %vm1800, %v1797, %v1799
        %v1804 = vsel %vm211, %v1776, 0
        %v1807 = vsel %vm215, %v1801, 0
        %v1810 = vsel %vm215, %v1802, 0
        %v1813 = vsel %vm215, %v1799, 0
        %1815 = vmatprep.subr.bf16.mxu0 0
        %1816 = vmatpush1.bf16.msra.mxu0 0
        %1817 = vmatprep.subr.bf16.mxu0 0
        %1818 = vmatpush1.bf16.msra.mxu0 0
        %1819 = vmatprep.subr.bf16.mxu0 0
        %1820 = vmatpush1.bf16.msra.mxu0 0
        %1821 = vmatprep.subr.bf16.mxu0 0
        %1822 = vmatpush1.bf16.msra.mxu0 0
        %1823 = vmatprep.subr.bf16.mxu0 0
        %1824 = vmatpush1.bf16.msra.mxu0 0
        %1825 = vmatprep.subr.bf16.mxu0 0
        %1826 = vmatpush1.bf16.msra.mxu0 0
        %1827 = vmatprep.subr.bf16.mxu0 0
        %1828 = vmatpush1.bf16.msra.mxu0 0
        %1829 = vmatprep.subr.bf16.mxu0 %v1810
        %1830 = vmatpush1.bf16.msra.mxu0 %v1807
        %1831 = vmatprep.subr.bf16.mxu0 0
        %1832 = vmatpush2.bf16.msra.mxu0 0
        %1833 = vmatprep.subr.bf16.mxu0 0
        %1834 = vmatpush2.bf16.msra.mxu0 0
        %1835 = vmatprep.subr.bf16.mxu0 0
        %1836 = vmatpush2.bf16.msra.mxu0 0
        %1837 = vmatprep.subr.bf16.mxu0 0
        %1838 = vmatpush2.bf16.msra.mxu0 0
        %1839 = vmatprep.subr.bf16.mxu0 0
        %1840 = vmatpush2.bf16.msra.mxu0 0
        %1841 = vmatprep.subr.bf16.mxu0 0
        %1842 = vmatpush2.bf16.msra.mxu0 0
        %1843 = vmatprep.subr.bf16.mxu0 0
        %1844 = vmatpush2.bf16.msra.mxu0 0
        %1845 = vmatprep.subr.bf16.mxu0 0
        %1846 = vmatpush2.bf16.msra.mxu0 0
        %1847 = vmatprep.mubr.bf16.mxu0 0
        %1848 = vmatmul.mubr.bf16.gmra.mxu0 %v1804
        %v1849 = vpop.f32.mrf.mxu0
        %v1850 = vadd.f32 0.0, %v1849
        %v1851 = vpop.f32.mrf.mxu0
        %v1852 = vadd.f32 0.0, %v1851
        %v1853 = vpop.f32.mrf.mxu0
        %v1854 = vpop.f32.mrf.mxu0
        %1855 = vdwg.mxu0
        %1856 = vmatprep.subr.bf16.mxu0 0
        %1857 = vmatpush1.bf16.msra.mxu0 0
        %1858 = vmatprep.subr.bf16.mxu0 0
        %1859 = vmatpush1.bf16.msra.mxu0 0
        %1860 = vmatprep.subr.bf16.mxu0 0
        %1861 = vmatpush1.bf16.msra.mxu0 0
        %1862 = vmatprep.subr.bf16.mxu0 0
        %1863 = vmatpush1.bf16.msra.mxu0 0
        %1864 = vmatprep.subr.bf16.mxu0 0
        %1865 = vmatpush1.bf16.msra.mxu0 0
        %1866 = vmatprep.subr.bf16.mxu0 0
        %1867 = vmatpush1.bf16.msra.mxu0 0
        %1868 = vmatprep.subr.bf16.mxu0 0
        %1869 = vmatpush1.bf16.msra.mxu0 0
        %1870 = vmatprep.subr.bf16.mxu0 0
        %1871 = vmatpush1.bf16.msra.mxu0 %v1813
        %1872 = vmatprep.subr.bf16.mxu0 0
        %1873 = vmatpush2.bf16.msra.mxu0 0
        %1874 = vmatprep.subr.bf16.mxu0 0
        %1875 = vmatpush2.bf16.msra.mxu0 0
        %1876 = vmatprep.subr.bf16.mxu0 0
        %1877 = vmatpush2.bf16.msra.mxu0 0
        %1878 = vmatprep.subr.bf16.mxu0 0
        %1879 = vmatpush2.bf16.msra.mxu0 0
        %1880 = vmatprep.subr.bf16.mxu0 0
        %1881 = vmatpush2.bf16.msra.mxu0 0
        %1882 = vmatprep.subr.bf16.mxu0 0
        %1883 = vmatpush2.bf16.msra.mxu0 0
        %1884 = vmatprep.subr.bf16.mxu0 0
        %1885 = vmatpush2.bf16.msra.mxu0 0
        %1886 = vmatprep.subr.bf16.mxu0 0
        %1887 = vmatpush2.bf16.msra.mxu0 0
        %1888 = vmatprep.mubr.bf16.mxu0 0
        %1889 = vmatmul.mubr.bf16.gmra.mxu0 %v1804
        %v1890 = vpop.f32.mrf.mxu0
        %v1891 = vadd.f32 0.0, %v1890
        %v1892 = vpop.f32.mrf.mxu0
        %v1893 = vpop.f32.mrf.mxu0
        %v1894 = vpop.f32.mrf.mxu0
        %1895 = vdwg.mxu0
        %v1896 = vadd.f32 %v1771, %v1850
        %v1897 = vadd.f32 %v1772, %v1852
        %v1898 = vadd.f32 %v1773, %v1891
        %v1899 = vld [vmem:[%s175] sm:$0x3f]
        %s1900 = scalar_lea.vmem %s1, 56
        %v1901 = vld [vmem:[%s1900] sm:$0xf]
        %v1903 = vcombine.high %v1899, %v1899
        %v1905 = vunpack.c.l.s4 1983009808
        %v1906 = vunpack.c.0.s8 %v1905
        %v1907 = vlaneseq
        %v1908 = vshrl.u32 %v1907, 7
        %v1909 = vsub.s32 %v1906, %v1908
        %v1910 = vrot.slane %v1899, %v1909
        %v1912 = vunpack.c.l.s4 1983009808
        %v1913 = vunpack.c.0.s8 %v1912
        %v1914 = vlaneseq
        %v1915 = vshrl.u32 %v1914, 7
        %v1916 = vsub.s32 %v1913, %v1915
        %v1917 = vrot.slane %v1903, %v1916
        %v1918 = vcombine.high %v1910, %v1910
        %1919 = vrot.lane.b32.xlu0 %v1910, 84
        %v1920 = vpop.permute.xlu0 %1919
        %1921 = vrot.lane.b32.xlu0 %v1918, 84
        %v1922 = vpop.permute.xlu0 %1921
        %1923 = vrot.lane.b32.xlu0 %v1917, 84
        %v1924 = vpop.permute.xlu0 %1923
        %vm1925 = vcmask 687104
        %v1926 = vsel %vm1925, %v1920, %v1922
        %v1927 = vsel %vm1925, %v1922, %v1924
        %v1929 = vsel %vm211, %v1901, 0
        %v1932 = vsel %vm215, %v1926, 0
        %v1935 = vsel %vm215, %v1927, 0
        %v1938 = vsel %vm215, %v1924, 0
        %1940 = vmatprep.subr.bf16.mxu0 0
        %1941 = vmatpush1.bf16.msra.mxu0 0
        %1942 = vmatprep.subr.bf16.mxu0 0
        %1943 = vmatpush1.bf16.msra.mxu0 0
        %1944 = vmatprep.subr.bf16.mxu0 0
        %1945 = vmatpush1.bf16.msra.mxu0 0
        %1946 = vmatprep.subr.bf16.mxu0 0
        %1947 = vmatpush1.bf16.msra.mxu0 0
        %1948 = vmatprep.subr.bf16.mxu0 0
        %1949 = vmatpush1.bf16.msra.mxu0 0
        %1950 = vmatprep.subr.bf16.mxu0 0
        %1951 = vmatpush1.bf16.msra.mxu0 0
        %1952 = vmatprep.subr.bf16.mxu0 0
        %1953 = vmatpush1.bf16.msra.mxu0 0
        %1954 = vmatprep.subr.bf16.mxu0 %v1935
        %1955 = vmatpush1.bf16.msra.mxu0 %v1932
        %1956 = vmatprep.subr.bf16.mxu0 0
        %1957 = vmatpush2.bf16.msra.mxu0 0
        %1958 = vmatprep.subr.bf16.mxu0 0
        %1959 = vmatpush2.bf16.msra.mxu0 0
        %1960 = vmatprep.subr.bf16.mxu0 0
        %1961 = vmatpush2.bf16.msra.mxu0 0
        %1962 = vmatprep.subr.bf16.mxu0 0
        %1963 = vmatpush2.bf16.msra.mxu0 0
        %1964 = vmatprep.subr.bf16.mxu0 0
        %1965 = vmatpush2.bf16.msra.mxu0 0
        %1966 = vmatprep.subr.bf16.mxu0 0
        %1967 = vmatpush2.bf16.msra.mxu0 0
        %1968 = vmatprep.subr.bf16.mxu0 0
        %1969 = vmatpush2.bf16.msra.mxu0 0
        %1970 = vmatprep.subr.bf16.mxu0 0
        %1971 = vmatpush2.bf16.msra.mxu0 0
        %1972 = vmatprep.mubr.bf16.mxu0 0
        %1973 = vmatmul.mubr.bf16.gmra.mxu0 %v1929
        %v1974 = vpop.f32.mrf.mxu0
        %v1975 = vadd.f32 0.0, %v1974
        %v1976 = vpop.f32.mrf.mxu0
        %v1977 = vadd.f32 0.0, %v1976
        %v1978 = vpop.f32.mrf.mxu0
        %v1979 = vpop.f32.mrf.mxu0
        %1980 = vdwg.mxu0
        %1981 = vmatprep.subr.bf16.mxu0 0
        %1982 = vmatpush1.bf16.msra.mxu0 0
        %1983 = vmatprep.subr.bf16.mxu0 0
        %1984 = vmatpush1.bf16.msra.mxu0 0
        %1985 = vmatprep.subr.bf16.mxu0 0
        %1986 = vmatpush1.bf16.msra.mxu0 0
        %1987 = vmatprep.subr.bf16.mxu0 0
        %1988 = vmatpush1.bf16.msra.mxu0 0
        %1989 = vmatprep.subr.bf16.mxu0 0
        %1990 = vmatpush1.bf16.msra.mxu0 0
        %1991 = vmatprep.subr.bf16.mxu0 0
        %1992 = vmatpush1.bf16.msra.mxu0 0
        %1993 = vmatprep.subr.bf16.mxu0 0
        %1994 = vmatpush1.bf16.msra.mxu0 0
        %1995 = vmatprep.subr.bf16.mxu0 0
        %1996 = vmatpush1.bf16.msra.mxu0 %v1938
        %1997 = vmatprep.subr.bf16.mxu0 0
        %1998 = vmatpush2.bf16.msra.mxu0 0
        %1999 = vmatprep.subr.bf16.mxu0 0
        %2000 = vmatpush2.bf16.msra.mxu0 0
        %2001 = vmatprep.subr.bf16.mxu0 0
        %2002 = vmatpush2.bf16.msra.mxu0 0
        %2003 = vmatprep.subr.bf16.mxu0 0
        %2004 = vmatpush2.bf16.msra.mxu0 0
        %2005 = vmatprep.subr.bf16.mxu0 0
        %2006 = vmatpush2.bf16.msra.mxu0 0
        %2007 = vmatprep.subr.bf16.mxu0 0
        %2008 = vmatpush2.bf16.msra.mxu0 0
        %2009 = vmatprep.subr.bf16.mxu0 0
        %2010 = vmatpush2.bf16.msra.mxu0 0
        %2011 = vmatprep.subr.bf16.mxu0 0
        %2012 = vmatpush2.bf16.msra.mxu0 0
        %2013 = vmatprep.mubr.bf16.mxu0 0
        %2014 = vmatmul.mubr.bf16.gmra.mxu0 %v1929
        %v2015 = vpop.f32.mrf.mxu0
        %v2016 = vadd.f32 0.0, %v2015
        %v2017 = vpop.f32.mrf.mxu0
        %v2018 = vpop.f32.mrf.mxu0
        %v2019 = vpop.f32.mrf.mxu0
        %2020 = vdwg.mxu0
        %v2021 = vadd.f32 %v1896, %v1975
        %v2022 = vadd.f32 %v1897, %v1977
        %v2023 = vadd.f32 %v1898, %v2016
        %v2024 = vld [vmem:[%s175] sm:$0x3f]
        %s2025 = scalar_lea.vmem %s1, 60
        %v2026 = vld [vmem:[%s2025] sm:$0xf]
        %v2028 = vcombine.high %v2024, %v2024
        %v2030 = vunpack.c.l.s4 1983009808
        %v2031 = vunpack.c.0.s8 %v2030
        %v2032 = vlaneseq
        %v2033 = vshrl.u32 %v2032, 7
        %v2034 = vsub.s32 %v2031, %v2033
        %v2035 = vrot.slane %v2024, %v2034
        %v2037 = vunpack.c.l.s4 1983009808
        %v2038 = vunpack.c.0.s8 %v2037
        %v2039 = vlaneseq
        %v2040 = vshrl.u32 %v2039, 7
        %v2041 = vsub.s32 %v2038, %v2040
        %v2042 = vrot.slane %v2028, %v2041
        %v2043 = vcombine.high %v2035, %v2035
        %2044 = vrot.lane.b32.xlu0 %v2035, 68
        %v2045 = vpop.permute.xlu0 %2044
        %2046 = vrot.lane.b32.xlu0 %v2043, 68
        %v2047 = vpop.permute.xlu0 %2046
        %2048 = vrot.lane.b32.xlu0 %v2042, 68
        %v2049 = vpop.permute.xlu0 %2048
        %vm2050 = vcmask 556032
        %v2051 = vsel %vm2050, %v2045, %v2047
        %v2052 = vsel %vm2050, %v2047, %v2049
        %v2054 = vsel %vm211, %v2026, 0
        %v2057 = vsel %vm215, %v2051, 0
        %v2060 = vsel %vm215, %v2052, 0
        %v2063 = vsel %vm215, %v2049, 0
        %2065 = vmatprep.subr.bf16.mxu0 0
        %2066 = vmatpush1.bf16.msra.mxu0 0
        %2067 = vmatprep.subr.bf16.mxu0 0
        %2068 = vmatpush1.bf16.msra.mxu0 0
        %2069 = vmatprep.subr.bf16.mxu0 0
        %2070 = vmatpush1.bf16.msra.mxu0 0
        %2071 = vmatprep.subr.bf16.mxu0 0
        %2072 = vmatpush1.bf16.msra.mxu0 0
        %2073 = vmatprep.subr.bf16.mxu0 0
        %2074 = vmatpush1.bf16.msra.mxu0 0
        %2075 = vmatprep.subr.bf16.mxu0 0
        %2076 = vmatpush1.bf16.msra.mxu0 0
        %2077 = vmatprep.subr.bf16.mxu0 0
        %2078 = vmatpush1.bf16.msra.mxu0 0
        %2079 = vmatprep.subr.bf16.mxu0 %v2060
        %2080 = vmatpush1.bf16.msra.mxu0 %v2057
        %2081 = vmatprep.subr.bf16.mxu0 0
        %2082 = vmatpush2.bf16.msra.mxu0 0
        %2083 = vmatprep.subr.bf16.mxu0 0
        %2084 = vmatpush2.bf16.msra.mxu0 0
        %2085 = vmatprep.subr.bf16.mxu0 0
        %2086 = vmatpush2.bf16.msra.mxu0 0
        %2087 = vmatprep.subr.bf16.mxu0 0
        %2088 = vmatpush2.bf16.msra.mxu0 0
        %2089 = vmatprep.subr.bf16.mxu0 0
        %2090 = vmatpush2.bf16.msra.mxu0 0
        %2091 = vmatprep.subr.bf16.mxu0 0
        %2092 = vmatpush2.bf16.msra.mxu0 0
        %2093 = vmatprep.subr.bf16.mxu0 0
        %2094 = vmatpush2.bf16.msra.mxu0 0
        %2095 = vmatprep.subr.bf16.mxu0 0
        %2096 = vmatpush2.bf16.msra.mxu0 0
        %2097 = vmatprep.mubr.bf16.mxu0 0
        %2098 = vmatmul.mubr.bf16.gmra.mxu0 %v2054
        %v2099 = vpop.f32.mrf.mxu0
        %v2100 = vadd.f32 0.0, %v2099
        %v2101 = vpop.f32.mrf.mxu0
        %v2102 = vadd.f32 0.0, %v2101
        %v2103 = vpop.f32.mrf.mxu0
        %v2104 = vpop.f32.mrf.mxu0
        %2105 = vdwg.mxu0
        %2106 = vmatprep.subr.bf16.mxu0 0
        %2107 = vmatpush1.bf16.msra.mxu0 0
        %2108 = vmatprep.subr.bf16.mxu0 0
        %2109 = vmatpush1.bf16.msra.mxu0 0
        %2110 = vmatprep.subr.bf16.mxu0 0
        %2111 = vmatpush1.bf16.msra.mxu0 0
        %2112 = vmatprep.subr.bf16.mxu0 0
        %2113 = vmatpush1.bf16.msra.mxu0 0
        %2114 = vmatprep.subr.bf16.mxu0 0
        %2115 = vmatpush1.bf16.msra.mxu0 0
        %2116 = vmatprep.subr.bf16.mxu0 0
        %2117 = vmatpush1.bf16.msra.mxu0 0
        %2118 = vmatprep.subr.bf16.mxu0 0
        %2119 = vmatpush1.bf16.msra.mxu0 0
        %2120 = vmatprep.subr.bf16.mxu0 0
        %2121 = vmatpush1.bf16.msra.mxu0 %v2063
        %2122 = vmatprep.subr.bf16.mxu0 0
        %2123 = vmatpush2.bf16.msra.mxu0 0
        %2124 = vmatprep.subr.bf16.mxu0 0
        %2125 = vmatpush2.bf16.msra.mxu0 0
        %2126 = vmatprep.subr.bf16.mxu0 0
        %2127 = vmatpush2.bf16.msra.mxu0 0
        %2128 = vmatprep.subr.bf16.mxu0 0
        %2129 = vmatpush2.bf16.msra.mxu0 0
        %2130 = vmatprep.subr.bf16.mxu0 0
        %2131 = vmatpush2.bf16.msra.mxu0 0
        %2132 = vmatprep.subr.bf16.mxu0 0
        %2133 = vmatpush2.bf16.msra.mxu0 0
        %2134 = vmatprep.subr.bf16.mxu0 0
        %2135 = vmatpush2.bf16.msra.mxu0 0
        %2136 = vmatprep.subr.bf16.mxu0 0
        %2137 = vmatpush2.bf16.msra.mxu0 0
        %2138 = vmatprep.mubr.bf16.mxu0 0
        %2139 = vmatmul.mubr.bf16.gmra.mxu0 %v2054
        %v2140 = vpop.f32.mrf.mxu0
        %v2141 = vadd.f32 0.0, %v2140
        %v2142 = vpop.f32.mrf.mxu0
        %v2143 = vpop.f32.mrf.mxu0
        %v2144 = vpop.f32.mrf.mxu0
        %2145 = vdwg.mxu0
        %v2146 = vadd.f32 %v2021, %v2100
        %v2147 = vadd.f32 %v2022, %v2102
        %v2148 = vadd.f32 %v2023, %v2141
        %v2149 = vld [vmem:[%s175] sm:$0x3f]
        %s2150 = scalar_lea.vmem %s1, 64
        %v2151 = vld [vmem:[%s2150] sm:$0xf]
        %v2153 = vcombine.high %v2149, %v2149
        %v2155 = vunpack.c.l.s4 1983009808
        %v2156 = vunpack.c.0.s8 %v2155
        %v2157 = vlaneseq
        %v2158 = vshrl.u32 %v2157, 7
        %v2159 = vsub.s32 %v2156, %v2158
        %v2160 = vrot.slane %v2149, %v2159
        %v2162 = vunpack.c.l.s4 1983009808
        %v2163 = vunpack.c.0.s8 %v2162
        %v2164 = vlaneseq
        %v2165 = vshrl.u32 %v2164, 7
        %v2166 = vsub.s32 %v2163, %v2165
        %v2167 = vrot.slane %v2153, %v2166
        %v2168 = vcombine.high %v2160, %v2160
        %2169 = vrot.lane.b32.xlu0 %v2160, 67
        %v2170 = vpop.permute.xlu0 %2169
        %2171 = vrot.lane.b32.xlu0 %v2168, 67
        %v2172 = vpop.permute.xlu0 %2171
        %2173 = vrot.lane.b32.xlu0 %v2167, 67
        %v2174 = vpop.permute.xlu0 %2173
        %vm2175 = vcmask 547840
        %v2176 = vsel %vm2175, %v2170, %v2172
        %v2177 = vsel %vm2175, %v2172, %v2174
        %v2179 = vsel %vm211, %v2151, 0
        %v2182 = vsel %vm215, %v2176, 0
        %v2185 = vsel %vm215, %v2177, 0
        %v2188 = vsel %vm215, %v2174, 0
        %2190 = vmatprep.subr.bf16.mxu0 0
        %2191 = vmatpush1.bf16.msra.mxu0 0
        %2192 = vmatprep.subr.bf16.mxu0 0
        %2193 = vmatpush1.bf16.msra.mxu0 0
        %2194 = vmatprep.subr.bf16.mxu0 0
        %2195 = vmatpush1.bf16.msra.mxu0 0
        %2196 = vmatprep.subr.bf16.mxu0 0
        %2197 = vmatpush1.bf16.msra.mxu0 0
        %2198 = vmatprep.subr.bf16.mxu0 0
        %2199 = vmatpush1.bf16.msra.mxu0 0
        %2200 = vmatprep.subr.bf16.mxu0 0
        %2201 = vmatpush1.bf16.msra.mxu0 0
        %2202 = vmatprep.subr.bf16.mxu0 0
        %2203 = vmatpush1.bf16.msra.mxu0 0
        %2204 = vmatprep.subr.bf16.mxu0 %v2185
        %2205 = vmatpush1.bf16.msra.mxu0 %v2182
        %2206 = vmatprep.subr.bf16.mxu0 0
        %2207 = vmatpush2.bf16.msra.mxu0 0
        %2208 = vmatprep.subr.bf16.mxu0 0
        %2209 = vmatpush2.bf16.msra.mxu0 0
        %2210 = vmatprep.subr.bf16.mxu0 0
        %2211 = vmatpush2.bf16.msra.mxu0 0
        %2212 = vmatprep.subr.bf16.mxu0 0
        %2213 = vmatpush2.bf16.msra.mxu0 0
        %2214 = vmatprep.subr.bf16.mxu0 0
        %2215 = vmatpush2.bf16.msra.mxu0 0
        %2216 = vmatprep.subr.bf16.mxu0 0
        %2217 = vmatpush2.bf16.msra.mxu0 0
        %2218 = vmatprep.subr.bf16.mxu0 0
        %2219 = vmatpush2.bf16.msra.mxu0 0
        %2220 = vmatprep.subr.bf16.mxu0 0
        %2221 = vmatpush2.bf16.msra.mxu0 0
        %2222 = vmatprep.mubr.bf16.mxu0 0
        %2223 = vmatmul.mubr.bf16.gmra.mxu0 %v2179
        %v2224 = vpop.f32.mrf.mxu0
        %v2225 = vadd.f32 0.0, %v2224
        %v2226 = vpop.f32.mrf.mxu0
        %v2227 = vadd.f32 0.0, %v2226
        %v2228 = vpop.f32.mrf.mxu0
        %v2229 = vpop.f32.mrf.mxu0
        %2230 = vdwg.mxu0
        %2231 = vmatprep.subr.bf16.mxu0 0
        %2232 = vmatpush1.bf16.msra.mxu0 0
        %2233 = vmatprep.subr.bf16.mxu0 0
        %2234 = vmatpush1.bf16.msra.mxu0 0
        %2235 = vmatprep.subr.bf16.mxu0 0
        %2236 = vmatpush1.bf16.msra.mxu0 0
        %2237 = vmatprep.subr.bf16.mxu0 0
        %2238 = vmatpush1.bf16.msra.mxu0 0
        %2239 = vmatprep.subr.bf16.mxu0 0
        %2240 = vmatpush1.bf16.msra.mxu0 0
        %2241 = vmatprep.subr.bf16.mxu0 0
        %2242 = vmatpush1.bf16.msra.mxu0 0
        %2243 = vmatprep.subr.bf16.mxu0 0
        %2244 = vmatpush1.bf16.msra.mxu0 0
        %2245 = vmatprep.subr.bf16.mxu0 0
        %2246 = vmatpush1.bf16.msra.mxu0 %v2188
        %2247 = vmatprep.subr.bf16.mxu0 0
        %2248 = vmatpush2.bf16.msra.mxu0 0
        %2249 = vmatprep.subr.bf16.mxu0 0
        %2250 = vmatpush2.bf16.msra.mxu0 0
        %2251 = vmatprep.subr.bf16.mxu0 0
        %2252 = vmatpush2.bf16.msra.mxu0 0
        %2253 = vmatprep.subr.bf16.mxu0 0
        %2254 = vmatpush2.bf16.msra.mxu0 0
        %2255 = vmatprep.subr.bf16.mxu0 0
        %2256 = vmatpush2.bf16.msra.mxu0 0
        %2257 = vmatprep.subr.bf16.mxu0 0
        %2258 = vmatpush2.bf16.msra.mxu0 0
        %2259 = vmatprep.subr.bf16.mxu0 0
        %2260 = vmatpush2.bf16.msra.mxu0 0
        %2261 = vmatprep.subr.bf16.mxu0 0
        %2262 = vmatpush2.bf16.msra.mxu0 0
        %2263 = vmatprep.mubr.bf16.mxu0 0
        %2264 = vmatmul.mubr.bf16.gmra.mxu0 %v2179
        %v2265 = vpop.f32.mrf.mxu0
        %v2266 = vadd.f32 0.0, %v2265
        %v2267 = vpop.f32.mrf.mxu0
        %v2268 = vpop.f32.mrf.mxu0
        %v2269 = vpop.f32.mrf.mxu0
        %2270 = vdwg.mxu0
        %v2271 = vadd.f32 %v2146, %v2225
        %v2272 = vadd.f32 %v2147, %v2227
        %v2273 = vadd.f32 %v2148, %v2266
        %v2274 = vld [vmem:[%s175] sm:$0x3f]
        %s2275 = scalar_lea.vmem %s1, 68
        %v2276 = vld [vmem:[%s2275] sm:$0xf]
        %v2278 = vcombine.high %v2274, %v2274
        %v2280 = vunpack.c.l.s4 1983009808
        %v2281 = vunpack.c.0.s8 %v2280
        %v2282 = vlaneseq
        %v2283 = vshrl.u32 %v2282, 7
        %v2284 = vsub.s32 %v2281, %v2283
        %v2285 = vrot.slane %v2274, %v2284
        %v2287 = vunpack.c.l.s4 1983009808
        %v2288 = vunpack.c.0.s8 %v2287
        %v2289 = vlaneseq
        %v2290 = vshrl.u32 %v2289, 7
        %v2291 = vsub.s32 %v2288, %v2290
        %v2292 = vrot.slane %v2278, %v2291
        %v2293 = vcombine.high %v2285, %v2285
        %2294 = vrot.lane.b32.xlu0 %v2285, 66
        %v2295 = vpop.permute.xlu0 %2294
        %2296 = vrot.lane.b32.xlu0 %v2293, 66
        %v2297 = vpop.permute.xlu0 %2296
        %2298 = vrot.lane.b32.xlu0 %v2292, 66
        %v2299 = vpop.permute.xlu0 %2298
        %vm2300 = vcmask 539648
        %v2301 = vsel %vm2300, %v2295, %v2297
        %v2302 = vsel %vm2300, %v2297, %v2299
        %v2304 = vsel %vm211, %v2276, 0
        %v2307 = vsel %vm215, %v2301, 0
        %v2310 = vsel %vm215, %v2302, 0
        %v2313 = vsel %vm215, %v2299, 0
        %2315 = vmatprep.subr.bf16.mxu0 0
        %2316 = vmatpush1.bf16.msra.mxu0 0
        %2317 = vmatprep.subr.bf16.mxu0 0
        %2318 = vmatpush1.bf16.msra.mxu0 0
        %2319 = vmatprep.subr.bf16.mxu0 0
        %2320 = vmatpush1.bf16.msra.mxu0 0
        %2321 = vmatprep.subr.bf16.mxu0 0
        %2322 = vmatpush1.bf16.msra.mxu0 0
        %2323 = vmatprep.subr.bf16.mxu0 0
        %2324 = vmatpush1.bf16.msra.mxu0 0
        %2325 = vmatprep.subr.bf16.mxu0 0
        %2326 = vmatpush1.bf16.msra.mxu0 0
        %2327 = vmatprep.subr.bf16.mxu0 0
        %2328 = vmatpush1.bf16.msra.mxu0 0
        %2329 = vmatprep.subr.bf16.mxu0 %v2310
        %2330 = vmatpush1.bf16.msra.mxu0 %v2307
        %2331 = vmatprep.subr.bf16.mxu0 0
        %2332 = vmatpush2.bf16.msra.mxu0 0
        %2333 = vmatprep.subr.bf16.mxu0 0
        %2334 = vmatpush2.bf16.msra.mxu0 0
        %2335 = vmatprep.subr.bf16.mxu0 0
        %2336 = vmatpush2.bf16.msra.mxu0 0
        %2337 = vmatprep.subr.bf16.mxu0 0
        %2338 = vmatpush2.bf16.msra.mxu0 0
        %2339 = vmatprep.subr.bf16.mxu0 0
        %2340 = vmatpush2.bf16.msra.mxu0 0
        %2341 = vmatprep.subr.bf16.mxu0 0
        %2342 = vmatpush2.bf16.msra.mxu0 0
        %2343 = vmatprep.subr.bf16.mxu0 0
        %2344 = vmatpush2.bf16.msra.mxu0 0
        %2345 = vmatprep.subr.bf16.mxu0 0
        %2346 = vmatpush2.bf16.msra.mxu0 0
        %2347 = vmatprep.mubr.bf16.mxu0 0
        %2348 = vmatmul.mubr.bf16.gmra.mxu0 %v2304
        %v2349 = vpop.f32.mrf.mxu0
        %v2350 = vadd.f32 0.0, %v2349
        %v2351 = vpop.f32.mrf.mxu0
        %v2352 = vadd.f32 0.0, %v2351
        %v2353 = vpop.f32.mrf.mxu0
        %v2354 = vpop.f32.mrf.mxu0
        %2355 = vdwg.mxu0
        %2356 = vmatprep.subr.bf16.mxu0 0
        %2357 = vmatpush1.bf16.msra.mxu0 0
        %2358 = vmatprep.subr.bf16.mxu0 0
        %2359 = vmatpush1.bf16.msra.mxu0 0
        %2360 = vmatprep.subr.bf16.mxu0 0
        %2361 = vmatpush1.bf16.msra.mxu0 0
        %2362 = vmatprep.subr.bf16.mxu0 0
        %2363 = vmatpush1.bf16.msra.mxu0 0
        %2364 = vmatprep.subr.bf16.mxu0 0
        %2365 = vmatpush1.bf16.msra.mxu0 0
        %2366 = vmatprep.subr.bf16.mxu0 0
        %2367 = vmatpush1.bf16.msra.mxu0 0
        %2368 = vmatprep.subr.bf16.mxu0 0
        %2369 = vmatpush1.bf16.msra.mxu0 0
        %2370 = vmatprep.subr.bf16.mxu0 0
        %2371 = vmatpush1.bf16.msra.mxu0 %v2313
        %2372 = vmatprep.subr.bf16.mxu0 0
        %2373 = vmatpush2.bf16.msra.mxu0 0
        %2374 = vmatprep.subr.bf16.mxu0 0
        %2375 = vmatpush2.bf16.msra.mxu0 0
        %2376 = vmatprep.subr.bf16.mxu0 0
        %2377 = vmatpush2.bf16.msra.mxu0 0
        %2378 = vmatprep.subr.bf16.mxu0 0
        %2379 = vmatpush2.bf16.msra.mxu0 0
        %2380 = vmatprep.subr.bf16.mxu0 0
        %2381 = vmatpush2.bf16.msra.mxu0 0
        %2382 = vmatprep.subr.bf16.mxu0 0
        %2383 = vmatpush2.bf16.msra.mxu0 0
        %2384 = vmatprep.subr.bf16.mxu0 0
        %2385 = vmatpush2.bf16.msra.mxu0 0
        %2386 = vmatprep.subr.bf16.mxu0 0
        %2387 = vmatpush2.bf16.msra.mxu0 0
        %2388 = vmatprep.mubr.bf16.mxu0 0
        %2389 = vmatmul.mubr.bf16.gmra.mxu0 %v2304
        %v2390 = vpop.f32.mrf.mxu0
        %v2391 = vadd.f32 0.0, %v2390
        %v2392 = vpop.f32.mrf.mxu0
        %v2393 = vpop.f32.mrf.mxu0
        %v2394 = vpop.f32.mrf.mxu0
        %2395 = vdwg.mxu0
        %v2396 = vadd.f32 %v2271, %v2350
        %v2397 = vadd.f32 %v2272, %v2352
        %v2398 = vadd.f32 %v2273, %v2391
        %v2399 = vld [vmem:[%s175] sm:$0x3f]
        %s2400 = scalar_lea.vmem %s1, 72
        %v2401 = vld [vmem:[%s2400] sm:$0xf]
        %v2403 = vcombine.high %v2399, %v2399
        %v2405 = vunpack.c.l.s4 1983009808
        %v2406 = vunpack.c.0.s8 %v2405
        %v2407 = vlaneseq
        %v2408 = vshrl.u32 %v2407, 7
        %v2409 = vsub.s32 %v2406, %v2408
        %v2410 = vrot.slane %v2399, %v2409
        %v2412 = vunpack.c.l.s4 1983009808
        %v2413 = vunpack.c.0.s8 %v2412
        %v2414 = vlaneseq
        %v2415 = vshrl.u32 %v2414, 7
        %v2416 = vsub.s32 %v2413, %v2415
        %v2417 = vrot.slane %v2403, %v2416
        %v2418 = vcombine.high %v2410, %v2410
        %2419 = vrot.lane.b32.xlu0 %v2410, 65
        %v2420 = vpop.permute.xlu0 %2419
        %2421 = vrot.lane.b32.xlu0 %v2418, 65
        %v2422 = vpop.permute.xlu0 %2421
        %2423 = vrot.lane.b32.xlu0 %v2417, 65
        %v2424 = vpop.permute.xlu0 %2423
        %vm2425 = vcmask 531456
        %v2426 = vsel %vm2425, %v2420, %v2422
        %v2427 = vsel %vm2425, %v2422, %v2424
        %v2429 = vsel %vm211, %v2401, 0
        %v2432 = vsel %vm215, %v2426, 0
        %v2435 = vsel %vm215, %v2427, 0
        %v2438 = vsel %vm215, %v2424, 0
        %2440 = vmatprep.subr.bf16.mxu0 0
        %2441 = vmatpush1.bf16.msra.mxu0 0
        %2442 = vmatprep.subr.bf16.mxu0 0
        %2443 = vmatpush1.bf16.msra.mxu0 0
        %2444 = vmatprep.subr.bf16.mxu0 0
        %2445 = vmatpush1.bf16.msra.mxu0 0
        %2446 = vmatprep.subr.bf16.mxu0 0
        %2447 = vmatpush1.bf16.msra.mxu0 0
        %2448 = vmatprep.subr.bf16.mxu0 0
        %2449 = vmatpush1.bf16.msra.mxu0 0
        %2450 = vmatprep.subr.bf16.mxu0 0
        %2451 = vmatpush1.bf16.msra.mxu0 0
        %2452 = vmatprep.subr.bf16.mxu0 0
        %2453 = vmatpush1.bf16.msra.mxu0 0
        %2454 = vmatprep.subr.bf16.mxu0 %v2435
        %2455 = vmatpush1.bf16.msra.mxu0 %v2432
        %2456 = vmatprep.subr.bf16.mxu0 0
        %2457 = vmatpush2.bf16.msra.mxu0 0
        %2458 = vmatprep.subr.bf16.mxu0 0
        %2459 = vmatpush2.bf16.msra.mxu0 0
        %2460 = vmatprep.subr.bf16.mxu0 0
        %2461 = vmatpush2.bf16.msra.mxu0 0
        %2462 = vmatprep.subr.bf16.mxu0 0
        %2463 = vmatpush2.bf16.msra.mxu0 0
        %2464 = vmatprep.subr.bf16.mxu0 0
        %2465 = vmatpush2.bf16.msra.mxu0 0
        %2466 = vmatprep.subr.bf16.mxu0 0
        %2467 = vmatpush2.bf16.msra.mxu0 0
        %2468 = vmatprep.subr.bf16.mxu0 0
        %2469 = vmatpush2.bf16.msra.mxu0 0
        %2470 = vmatprep.subr.bf16.mxu0 0
        %2471 = vmatpush2.bf16.msra.mxu0 0
        %2472 = vmatprep.mubr.bf16.mxu0 0
        %2473 = vmatmul.mubr.bf16.gmra.mxu0 %v2429
        %v2474 = vpop.f32.mrf.mxu0
        %v2475 = vadd.f32 0.0, %v2474
        %v2476 = vpop.f32.mrf.mxu0
        %v2477 = vadd.f32 0.0, %v2476
        %v2478 = vpop.f32.mrf.mxu0
        %v2479 = vpop.f32.mrf.mxu0
        %2480 = vdwg.mxu0
        %2481 = vmatprep.subr.bf16.mxu0 0
        %2482 = vmatpush1.bf16.msra.mxu0 0
        %2483 = vmatprep.subr.bf16.mxu0 0
        %2484 = vmatpush1.bf16.msra.mxu0 0
        %2485 = vmatprep.subr.bf16.mxu0 0
        %2486 = vmatpush1.bf16.msra.mxu0 0
        %2487 = vmatprep.subr.bf16.mxu0 0
        %2488 = vmatpush1.bf16.msra.mxu0 0
        %2489 = vmatprep.subr.bf16.mxu0 0
        %2490 = vmatpush1.bf16.msra.mxu0 0
        %2491 = vmatprep.subr.bf16.mxu0 0
        %2492 = vmatpush1.bf16.msra.mxu0 0
        %2493 = vmatprep.subr.bf16.mxu0 0
        %2494 = vmatpush1.bf16.msra.mxu0 0
        %2495 = vmatprep.subr.bf16.mxu0 0
        %2496 = vmatpush1.bf16.msra.mxu0 %v2438
        %2497 = vmatprep.subr.bf16.mxu0 0
        %2498 = vmatpush2.bf16.msra.mxu0 0
        %2499 = vmatprep.subr.bf16.mxu0 0
        %2500 = vmatpush2.bf16.msra.mxu0 0
        %2501 = vmatprep.subr.bf16.mxu0 0
        %2502 = vmatpush2.bf16.msra.mxu0 0
        %2503 = vmatprep.subr.bf16.mxu0 0
        %2504 = vmatpush2.bf16.msra.mxu0 0
        %2505 = vmatprep.subr.bf16.mxu0 0
        %2506 = vmatpush2.bf16.msra.mxu0 0
        %2507 = vmatprep.subr.bf16.mxu0 0
        %2508 = vmatpush2.bf16.msra.mxu0 0
        %2509 = vmatprep.subr.bf16.mxu0 0
        %2510 = vmatpush2.bf16.msra.mxu0 0
        %2511 = vmatprep.subr.bf16.mxu0 0
        %2512 = vmatpush2.bf16.msra.mxu0 0
        %2513 = vmatprep.mubr.bf16.mxu0 0
        %2514 = vmatmul.mubr.bf16.gmra.mxu0 %v2429
        %v2515 = vpop.f32.mrf.mxu0
        %v2516 = vadd.f32 0.0, %v2515
        %v2517 = vpop.f32.mrf.mxu0
        %v2518 = vpop.f32.mrf.mxu0
        %v2519 = vpop.f32.mrf.mxu0
        %2520 = vdwg.mxu0
        %v2521 = vadd.f32 %v2396, %v2475
        %v2522 = vadd.f32 %v2397, %v2477
        %v2523 = vadd.f32 %v2398, %v2516
        %v2524 = vld [vmem:[%s175] sm:$0x3f]
        %s2525 = scalar_lea.vmem %s1, 76
        %v2526 = vld [vmem:[%s2525] sm:$0xf]
        %v2528 = vcombine.high %v2524, %v2524
        %v2530 = vunpack.c.l.s4 1983009808
        %v2531 = vunpack.c.0.s8 %v2530
        %v2532 = vlaneseq
        %v2533 = vshrl.u32 %v2532, 7
        %v2534 = vsub.s32 %v2531, %v2533
        %v2535 = vrot.slane %v2524, %v2534
        %v2537 = vunpack.c.l.s4 1983009808
        %v2538 = vunpack.c.0.s8 %v2537
        %v2539 = vlaneseq
        %v2540 = vshrl.u32 %v2539, 7
        %v2541 = vsub.s32 %v2538, %v2540
        %v2542 = vrot.slane %v2528, %v2541
        %v2543 = vcombine.high %v2535, %v2535
        %2544 = vrot.lane.b32.xlu0 %v2535, 64
        %v2545 = vpop.permute.xlu0 %2544
        %2546 = vrot.lane.b32.xlu0 %v2543, 64
        %v2547 = vpop.permute.xlu0 %2546
        %2548 = vrot.lane.b32.xlu0 %v2542, 64
        %v2549 = vpop.permute.xlu0 %2548
        %vm2550 = vcmask 523264
        %v2551 = vsel %vm2550, %v2545, %v2547
        %v2552 = vsel %vm2550, %v2547, %v2549
        %v2554 = vsel %vm211, %v2526, 0
        %v2557 = vsel %vm215, %v2551, 0
        %v2560 = vsel %vm215, %v2552, 0
        %v2563 = vsel %vm215, %v2549, 0
        %2565 = vmatprep.subr.bf16.mxu0 0
        %2566 = vmatpush1.bf16.msra.mxu0 0
        %2567 = vmatprep.subr.bf16.mxu0 0
        %2568 = vmatpush1.bf16.msra.mxu0 0
        %2569 = vmatprep.subr.bf16.mxu0 0
        %2570 = vmatpush1.bf16.msra.mxu0 0
        %2571 = vmatprep.subr.bf16.mxu0 0
        %2572 = vmatpush1.bf16.msra.mxu0 0
        %2573 = vmatprep.subr.bf16.mxu0 0
        %2574 = vmatpush1.bf16.msra.mxu0 0
        %2575 = vmatprep.subr.bf16.mxu0 0
        %2576 = vmatpush1.bf16.msra.mxu0 0
        %2577 = vmatprep.subr.bf16.mxu0 0
        %2578 = vmatpush1.bf16.msra.mxu0 0
        %2579 = vmatprep.subr.bf16.mxu0 %v2560
        %2580 = vmatpush1.bf16.msra.mxu0 %v2557
        %2581 = vmatprep.subr.bf16.mxu0 0
        %2582 = vmatpush2.bf16.msra.mxu0 0
        %2583 = vmatprep.subr.bf16.mxu0 0
        %2584 = vmatpush2.bf16.msra.mxu0 0
        %2585 = vmatprep.subr.bf16.mxu0 0
        %2586 = vmatpush2.bf16.msra.mxu0 0
        %2587 = vmatprep.subr.bf16.mxu0 0
        %2588 = vmatpush2.bf16.msra.mxu0 0
        %2589 = vmatprep.subr.bf16.mxu0 0
        %2590 = vmatpush2.bf16.msra.mxu0 0
        %2591 = vmatprep.subr.bf16.mxu0 0
        %2592 = vmatpush2.bf16.msra.mxu0 0
        %2593 = vmatprep.subr.bf16.mxu0 0
        %2594 = vmatpush2.bf16.msra.mxu0 0
        %2595 = vmatprep.subr.bf16.mxu0 0
        %2596 = vmatpush2.bf16.msra.mxu0 0
        %2597 = vmatprep.mubr.bf16.mxu0 0
        %2598 = vmatmul.mubr.bf16.gmra.mxu0 %v2554
        %v2599 = vpop.f32.mrf.mxu0
        %v2600 = vadd.f32 0.0, %v2599
        %v2601 = vpop.f32.mrf.mxu0
        %v2602 = vadd.f32 0.0, %v2601
        %v2603 = vpop.f32.mrf.mxu0
        %v2604 = vpop.f32.mrf.mxu0
        %2605 = vdwg.mxu0
        %2606 = vmatprep.subr.bf16.mxu0 0
        %2607 = vmatpush1.bf16.msra.mxu0 0
        %2608 = vmatprep.subr.bf16.mxu0 0
        %2609 = vmatpush1.bf16.msra.mxu0 0
        %2610 = vmatprep.subr.bf16.mxu0 0
        %2611 = vmatpush1.bf16.msra.mxu0 0
        %2612 = vmatprep.subr.bf16.mxu0 0
        %2613 = vmatpush1.bf16.msra.mxu0 0
        %2614 = vmatprep.subr.bf16.mxu0 0
        %2615 = vmatpush1.bf16.msra.mxu0 0
        %2616 = vmatprep.subr.bf16.mxu0 0
        %2617 = vmatpush1.bf16.msra.mxu0 0
        %2618 = vmatprep.subr.bf16.mxu0 0
        %2619 = vmatpush1.bf16.msra.mxu0 0
        %2620 = vmatprep.subr.bf16.mxu0 0
        %2621 = vmatpush1.bf16.msra.mxu0 %v2563
        %2622 = vmatprep.subr.bf16.mxu0 0
        %2623 = vmatpush2.bf16.msra.mxu0 0
        %2624 = vmatprep.subr.bf16.mxu0 0
        %2625 = vmatpush2.bf16.msra.mxu0 0
        %2626 = vmatprep.subr.bf16.mxu0 0
        %2627 = vmatpush2.bf16.msra.mxu0 0
        %2628 = vmatprep.subr.bf16.mxu0 0
        %2629 = vmatpush2.bf16.msra.mxu0 0
        %2630 = vmatprep.subr.bf16.mxu0 0
        %2631 = vmatpush2.bf16.msra.mxu0 0
        %2632 = vmatprep.subr.bf16.mxu0 0
        %2633 = vmatpush2.bf16.msra.mxu0 0
        %2634 = vmatprep.subr.bf16.mxu0 0
        %2635 = vmatpush2.bf16.msra.mxu0 0
        %2636 = vmatprep.subr.bf16.mxu0 0
        %2637 = vmatpush2.bf16.msra.mxu0 0
        %2638 = vmatprep.mubr.bf16.mxu0 0
        %2639 = vmatmul.mubr.bf16.gmra.mxu0 %v2554
        %v2640 = vpop.f32.mrf.mxu0
        %v2641 = vadd.f32 0.0, %v2640
        %v2642 = vpop.f32.mrf.mxu0
        %v2643 = vpop.f32.mrf.mxu0
        %v2644 = vpop.f32.mrf.mxu0
        %2645 = vdwg.mxu0
        %v2646 = vadd.f32 %v2521, %v2600
        %v2647 = vadd.f32 %v2522, %v2602
        %v2648 = vadd.f32 %v2523, %v2641
        %v2649 = vld [vmem:[%s175] sm:$0xff]
        %s2650 = scalar_lea.vmem %s1, 80
        %v2651 = vld [vmem:[%s2650] sm:$0xf]
        %v2653 = vcombine.high %v2649, %v2649
        %v2655 = vunpack.c.l.s4 1983009808
        %v2656 = vunpack.c.0.s8 %v2655
        %v2657 = vlaneseq
        %v2658 = vshrl.u32 %v2657, 7
        %v2659 = vsub.s32 %v2656, %v2658
        %v2660 = vrot.slane %v2649, %v2659
        %v2662 = vunpack.c.l.s4 1983009808
        %v2663 = vunpack.c.0.s8 %v2662
        %v2664 = vlaneseq
        %v2665 = vshrl.u32 %v2664, 7
        %v2666 = vsub.s32 %v2663, %v2665
        %v2667 = vrot.slane %v2653, %v2666
        %v2668 = vcombine.high %v2660, %v2660
        %v2669 = vcombine.high %v2667, %v2667
        %2670 = vrot.lane.b32.xlu0 %v2660, 48
        %v2671 = vpop.permute.xlu0 %2670
        %2672 = vrot.lane.b32.xlu0 %v2668, 48
        %v2673 = vpop.permute.xlu0 %2672
        %2674 = vrot.lane.b32.xlu0 %v2667, 48
        %v2675 = vpop.permute.xlu0 %2674
        %2676 = vrot.lane.b32.xlu0 %v2669, 48
        %v2677 = vpop.permute.xlu0 %2676
        %vm2678 = vcmask 392192
        %v2679 = vsel %vm2678, %v2671, %v2673
        %v2680 = vsel %vm2678, %v2673, %v2675
        %v2681 = vsel %vm2678, %v2675, %v2677
        %v2683 = vsel %vm211, %v2651, 0
        %v2686 = vsel %vm215, %v2679, 0
        %v2689 = vsel %vm215, %v2680, 0
        %v2692 = vsel %vm215, %v2681, 0
        %2694 = vmatprep.subr.bf16.mxu0 0
        %2695 = vmatpush1.bf16.msra.mxu0 0
        %2696 = vmatprep.subr.bf16.mxu0 0
        %2697 = vmatpush1.bf16.msra.mxu0 0
        %2698 = vmatprep.subr.bf16.mxu0 0
        %2699 = vmatpush1.bf16.msra.mxu0 0
        %2700 = vmatprep.subr.bf16.mxu0 0
        %2701 = vmatpush1.bf16.msra.mxu0 0
        %2702 = vmatprep.subr.bf16.mxu0 0
        %2703 = vmatpush1.bf16.msra.mxu0 0
        %2704 = vmatprep.subr.bf16.mxu0 0
        %2705 = vmatpush1.bf16.msra.mxu0 0
        %2706 = vmatprep.subr.bf16.mxu0 0
        %2707 = vmatpush1.bf16.msra.mxu0 0
        %2708 = vmatprep.subr.bf16.mxu0 %v2689
        %2709 = vmatpush1.bf16.msra.mxu0 %v2686
        %2710 = vmatprep.subr.bf16.mxu0 0
        %2711 = vmatpush2.bf16.msra.mxu0 0
        %2712 = vmatprep.subr.bf16.mxu0 0
        %2713 = vmatpush2.bf16.msra.mxu0 0
        %2714 = vmatprep.subr.bf16.mxu0 0
        %2715 = vmatpush2.bf16.msra.mxu0 0
        %2716 = vmatprep.subr.bf16.mxu0 0
        %2717 = vmatpush2.bf16.msra.mxu0 0
        %2718 = vmatprep.subr.bf16.mxu0 0
        %2719 = vmatpush2.bf16.msra.mxu0 0
        %2720 = vmatprep.subr.bf16.mxu0 0
        %2721 = vmatpush2.bf16.msra.mxu0 0
        %2722 = vmatprep.subr.bf16.mxu0 0
        %2723 = vmatpush2.bf16.msra.mxu0 0
        %2724 = vmatprep.subr.bf16.mxu0 0
        %2725 = vmatpush2.bf16.msra.mxu0 0
        %2726 = vmatprep.mubr.bf16.mxu0 0
        %2727 = vmatmul.mubr.bf16.gmra.mxu0 %v2683
        %v2728 = vpop.f32.mrf.mxu0
        %v2729 = vadd.f32 0.0, %v2728
        %v2730 = vpop.f32.mrf.mxu0
        %v2731 = vadd.f32 0.0, %v2730
        %v2732 = vpop.f32.mrf.mxu0
        %v2733 = vpop.f32.mrf.mxu0
        %2734 = vdwg.mxu0
        %2735 = vmatprep.subr.bf16.mxu0 0
        %2736 = vmatpush1.bf16.msra.mxu0 0
        %2737 = vmatprep.subr.bf16.mxu0 0
        %2738 = vmatpush1.bf16.msra.mxu0 0
        %2739 = vmatprep.subr.bf16.mxu0 0
        %2740 = vmatpush1.bf16.msra.mxu0 0
        %2741 = vmatprep.subr.bf16.mxu0 0
        %2742 = vmatpush1.bf16.msra.mxu0 0
        %2743 = vmatprep.subr.bf16.mxu0 0
        %2744 = vmatpush1.bf16.msra.mxu0 0
        %2745 = vmatprep.subr.bf16.mxu0 0
        %2746 = vmatpush1.bf16.msra.mxu0 0
        %2747 = vmatprep.subr.bf16.mxu0 0
        %2748 = vmatpush1.bf16.msra.mxu0 0
        %2749 = vmatprep.subr.bf16.mxu0 0
        %2750 = vmatpush1.bf16.msra.mxu0 %v2692
        %2751 = vmatprep.subr.bf16.mxu0 0
        %2752 = vmatpush2.bf16.msra.mxu0 0
        %2753 = vmatprep.subr.bf16.mxu0 0
        %2754 = vmatpush2.bf16.msra.mxu0 0
        %2755 = vmatprep.subr.bf16.mxu0 0
        %2756 = vmatpush2.bf16.msra.mxu0 0
        %2757 = vmatprep.subr.bf16.mxu0 0
        %2758 = vmatpush2.bf16.msra.mxu0 0
        %2759 = vmatprep.subr.bf16.mxu0 0
        %2760 = vmatpush2.bf16.msra.mxu0 0
        %2761 = vmatprep.subr.bf16.mxu0 0
        %2762 = vmatpush2.bf16.msra.mxu0 0
        %2763 = vmatprep.subr.bf16.mxu0 0
        %2764 = vmatpush2.bf16.msra.mxu0 0
        %2765 = vmatprep.subr.bf16.mxu0 0
        %2766 = vmatpush2.bf16.msra.mxu0 0
        %2767 = vmatprep.mubr.bf16.mxu0 0
        %2768 = vmatmul.mubr.bf16.gmra.mxu0 %v2683
        %v2769 = vpop.f32.mrf.mxu0
        %v2770 = vadd.f32 0.0, %v2769
        %v2771 = vpop.f32.mrf.mxu0
        %v2772 = vpop.f32.mrf.mxu0
        %v2773 = vpop.f32.mrf.mxu0
        %2774 = vdwg.mxu0
        %v2775 = vadd.f32 %v2646, %v2729
        %v2776 = vadd.f32 %v2647, %v2731
        %v2777 = vadd.f32 %v2648, %v2770
        %v2778 = vld [vmem:[%s175] sm:$0xff]
        %s2779 = scalar_lea.vmem %s1, 84
        %v2780 = vld [vmem:[%s2779] sm:$0xf]
        %v2782 = vcombine.high %v2778, %v2778
        %v2784 = vunpack.c.l.s4 1983009808
        %v2785 = vunpack.c.0.s8 %v2784
        %v2786 = vlaneseq
        %v2787 = vshrl.u32 %v2786, 7
        %v2788 = vsub.s32 %v2785, %v2787
        %v2789 = vrot.slane %v2778, %v2788
        %v2791 = vunpack.c.l.s4 1983009808
        %v2792 = vunpack.c.0.s8 %v2791
        %v2793 = vlaneseq
        %v2794 = vshrl.u32 %v2793, 7
        %v2795 = vsub.s32 %v2792, %v2794
        %v2796 = vrot.slane %v2782, %v2795
        %v2797 = vcombine.high %v2789, %v2789
        %v2798 = vcombine.high %v2796, %v2796
        %2799 = vrot.lane.b32.xlu0 %v2789, 47
        %v2800 = vpop.permute.xlu0 %2799
        %2801 = vrot.lane.b32.xlu0 %v2797, 47
        %v2802 = vpop.permute.xlu0 %2801
        %2803 = vrot.lane.b32.xlu0 %v2796, 47
        %v2804 = vpop.permute.xlu0 %2803
        %2805 = vrot.lane.b32.xlu0 %v2798, 47
        %v2806 = vpop.permute.xlu0 %2805
        %vm2807 = vcmask 384000
        %v2808 = vsel %vm2807, %v2800, %v2802
        %v2809 = vsel %vm2807, %v2802, %v2804
        %v2810 = vsel %vm2807, %v2804, %v2806
        %v2812 = vsel %vm211, %v2780, 0
        %v2815 = vsel %vm215, %v2808, 0
        %v2818 = vsel %vm215, %v2809, 0
        %v2821 = vsel %vm215, %v2810, 0
        %2823 = vmatprep.subr.bf16.mxu0 0
        %2824 = vmatpush1.bf16.msra.mxu0 0
        %2825 = vmatprep.subr.bf16.mxu0 0
        %2826 = vmatpush1.bf16.msra.mxu0 0
        %2827 = vmatprep.subr.bf16.mxu0 0
        %2828 = vmatpush1.bf16.msra.mxu0 0
        %2829 = vmatprep.subr.bf16.mxu0 0
        %2830 = vmatpush1.bf16.msra.mxu0 0
        %2831 = vmatprep.subr.bf16.mxu0 0
        %2832 = vmatpush1.bf16.msra.mxu0 0
        %2833 = vmatprep.subr.bf16.mxu0 0
        %2834 = vmatpush1.bf16.msra.mxu0 0
        %2835 = vmatprep.subr.bf16.mxu0 0
        %2836 = vmatpush1.bf16.msra.mxu0 0
        %2837 = vmatprep.subr.bf16.mxu0 %v2818
        %2838 = vmatpush1.bf16.msra.mxu0 %v2815
        %2839 = vmatprep.subr.bf16.mxu0 0
        %2840 = vmatpush2.bf16.msra.mxu0 0
        %2841 = vmatprep.subr.bf16.mxu0 0
        %2842 = vmatpush2.bf16.msra.mxu0 0
        %2843 = vmatprep.subr.bf16.mxu0 0
        %2844 = vmatpush2.bf16.msra.mxu0 0
        %2845 = vmatprep.subr.bf16.mxu0 0
        %2846 = vmatpush2.bf16.msra.mxu0 0
        %2847 = vmatprep.subr.bf16.mxu0 0
        %2848 = vmatpush2.bf16.msra.mxu0 0
        %2849 = vmatprep.subr.bf16.mxu0 0
        %2850 = vmatpush2.bf16.msra.mxu0 0
        %2851 = vmatprep.subr.bf16.mxu0 0
        %2852 = vmatpush2.bf16.msra.mxu0 0
        %2853 = vmatprep.subr.bf16.mxu0 0
        %2854 = vmatpush2.bf16.msra.mxu0 0
        %2855 = vmatprep.mubr.bf16.mxu0 0
        %2856 = vmatmul.mubr.bf16.gmra.mxu0 %v2812
        %v2857 = vpop.f32.mrf.mxu0
        %v2858 = vadd.f32 0.0, %v2857
        %v2859 = vpop.f32.mrf.mxu0
        %v2860 = vadd.f32 0.0, %v2859
        %v2861 = vpop.f32.mrf.mxu0
        %v2862 = vpop.f32.mrf.mxu0
        %2863 = vdwg.mxu0
        %2864 = vmatprep.subr.bf16.mxu0 0
        %2865 = vmatpush1.bf16.msra.mxu0 0
        %2866 = vmatprep.subr.bf16.mxu0 0
        %2867 = vmatpush1.bf16.msra.mxu0 0
        %2868 = vmatprep.subr.bf16.mxu0 0
        %2869 = vmatpush1.bf16.msra.mxu0 0
        %2870 = vmatprep.subr.bf16.mxu0 0
        %2871 = vmatpush1.bf16.msra.mxu0 0
        %2872 = vmatprep.subr.bf16.mxu0 0
        %2873 = vmatpush1.bf16.msra.mxu0 0
        %2874 = vmatprep.subr.bf16.mxu0 0
        %2875 = vmatpush1.bf16.msra.mxu0 0
        %2876 = vmatprep.subr.bf16.mxu0 0
        %2877 = vmatpush1.bf16.msra.mxu0 0
        %2878 = vmatprep.subr.bf16.mxu0 0
        %2879 = vmatpush1.bf16.msra.mxu0 %v2821
        %2880 = vmatprep.subr.bf16.mxu0 0
        %2881 = vmatpush2.bf16.msra.mxu0 0
        %2882 = vmatprep.subr.bf16.mxu0 0
        %2883 = vmatpush2.bf16.msra.mxu0 0
        %2884 = vmatprep.subr.bf16.mxu0 0
        %2885 = vmatpush2.bf16.msra.mxu0 0
        %2886 = vmatprep.subr.bf16.mxu0 0
        %2887 = vmatpush2.bf16.msra.mxu0 0
        %2888 = vmatprep.subr.bf16.mxu0 0
        %2889 = vmatpush2.bf16.msra.mxu0 0
        %2890 = vmatprep.subr.bf16.mxu0 0
        %2891 = vmatpush2.bf16.msra.mxu0 0
        %2892 = vmatprep.subr.bf16.mxu0 0
        %2893 = vmatpush2.bf16.msra.mxu0 0
        %2894 = vmatprep.subr.bf16.mxu0 0
        %2895 = vmatpush2.bf16.msra.mxu0 0
        %2896 = vmatprep.mubr.bf16.mxu0 0
        %2897 = vmatmul.mubr.bf16.gmra.mxu0 %v2812
        %v2898 = vpop.f32.mrf.mxu0
        %v2899 = vadd.f32 0.0, %v2898
        %v2900 = vpop.f32.mrf.mxu0
        %v2901 = vpop.f32.mrf.mxu0
        %v2902 = vpop.f32.mrf.mxu0
        %2903 = vdwg.mxu0
        %v2904 = vadd.f32 %v2775, %v2858
        %v2905 = vadd.f32 %v2776, %v2860
        %v2906 = vadd.f32 %v2777, %v2899
        %v2907 = vld [vmem:[%s175] sm:$0xff]
        %s2908 = scalar_lea.vmem %s1, 88
        %v2909 = vld [vmem:[%s2908] sm:$0xf]
        %v2911 = vcombine.high %v2907, %v2907
        %v2913 = vunpack.c.l.s4 1983009808
        %v2914 = vunpack.c.0.s8 %v2913
        %v2915 = vlaneseq
        %v2916 = vshrl.u32 %v2915, 7
        %v2917 = vsub.s32 %v2914, %v2916
        %v2918 = vrot.slane %v2907, %v2917
        %v2920 = vunpack.c.l.s4 1983009808
        %v2921 = vunpack.c.0.s8 %v2920
        %v2922 = vlaneseq
        %v2923 = vshrl.u32 %v2922, 7
        %v2924 = vsub.s32 %v2921, %v2923
        %v2925 = vrot.slane %v2911, %v2924
        %v2926 = vcombine.high %v2918, %v2918
        %v2927 = vcombine.high %v2925, %v2925
        %2928 = vrot.lane.b32.xlu0 %v2918, 46
        %v2929 = vpop.permute.xlu0 %2928
        %2930 = vrot.lane.b32.xlu0 %v2926, 46
        %v2931 = vpop.permute.xlu0 %2930
        %2932 = vrot.lane.b32.xlu0 %v2925, 46
        %v2933 = vpop.permute.xlu0 %2932
        %2934 = vrot.lane.b32.xlu0 %v2927, 46
        %v2935 = vpop.permute.xlu0 %2934
        %vm2936 = vcmask 375808
        %v2937 = vsel %vm2936, %v2929, %v2931
        %v2938 = vsel %vm2936, %v2931, %v2933
        %v2939 = vsel %vm2936, %v2933, %v2935
        %v2941 = vsel %vm211, %v2909, 0
        %v2944 = vsel %vm215, %v2937, 0
        %v2947 = vsel %vm215, %v2938, 0
        %v2950 = vsel %vm215, %v2939, 0
        %2952 = vmatprep.subr.bf16.mxu0 0
        %2953 = vmatpush1.bf16.msra.mxu0 0
        %2954 = vmatprep.subr.bf16.mxu0 0
        %2955 = vmatpush1.bf16.msra.mxu0 0
        %2956 = vmatprep.subr.bf16.mxu0 0
        %2957 = vmatpush1.bf16.msra.mxu0 0
        %2958 = vmatprep.subr.bf16.mxu0 0
        %2959 = vmatpush1.bf16.msra.mxu0 0
        %2960 = vmatprep.subr.bf16.mxu0 0
        %2961 = vmatpush1.bf16.msra.mxu0 0
        %2962 = vmatprep.subr.bf16.mxu0 0
        %2963 = vmatpush1.bf16.msra.mxu0 0
        %2964 = vmatprep.subr.bf16.mxu0 0
        %2965 = vmatpush1.bf16.msra.mxu0 0
        %2966 = vmatprep.subr.bf16.mxu0 %v2947
        %2967 = vmatpush1.bf16.msra.mxu0 %v2944
        %2968 = vmatprep.subr.bf16.mxu0 0
        %2969 = vmatpush2.bf16.msra.mxu0 0
        %2970 = vmatprep.subr.bf16.mxu0 0
        %2971 = vmatpush2.bf16.msra.mxu0 0
        %2972 = vmatprep.subr.bf16.mxu0 0
        %2973 = vmatpush2.bf16.msra.mxu0 0
        %2974 = vmatprep.subr.bf16.mxu0 0
        %2975 = vmatpush2.bf16.msra.mxu0 0
        %2976 = vmatprep.subr.bf16.mxu0 0
        %2977 = vmatpush2.bf16.msra.mxu0 0
        %2978 = vmatprep.subr.bf16.mxu0 0
        %2979 = vmatpush2.bf16.msra.mxu0 0
        %2980 = vmatprep.subr.bf16.mxu0 0
        %2981 = vmatpush2.bf16.msra.mxu0 0
        %2982 = vmatprep.subr.bf16.mxu0 0
        %2983 = vmatpush2.bf16.msra.mxu0 0
        %2984 = vmatprep.mubr.bf16.mxu0 0
        %2985 = vmatmul.mubr.bf16.gmra.mxu0 %v2941
        %v2986 = vpop.f32.mrf.mxu0
        %v2987 = vadd.f32 0.0, %v2986
        %v2988 = vpop.f32.mrf.mxu0
        %v2989 = vadd.f32 0.0, %v2988
        %v2990 = vpop.f32.mrf.mxu0
        %v2991 = vpop.f32.mrf.mxu0
        %2992 = vdwg.mxu0
        %2993 = vmatprep.subr.bf16.mxu0 0
        %2994 = vmatpush1.bf16.msra.mxu0 0
        %2995 = vmatprep.subr.bf16.mxu0 0
        %2996 = vmatpush1.bf16.msra.mxu0 0
        %2997 = vmatprep.subr.bf16.mxu0 0
        %2998 = vmatpush1.bf16.msra.mxu0 0
        %2999 = vmatprep.subr.bf16.mxu0 0
        %3000 = vmatpush1.bf16.msra.mxu0 0
        %3001 = vmatprep.subr.bf16.mxu0 0
        %3002 = vmatpush1.bf16.msra.mxu0 0
        %3003 = vmatprep.subr.bf16.mxu0 0
        %3004 = vmatpush1.bf16.msra.mxu0 0
        %3005 = vmatprep.subr.bf16.mxu0 0
        %3006 = vmatpush1.bf16.msra.mxu0 0
        %3007 = vmatprep.subr.bf16.mxu0 0
        %3008 = vmatpush1.bf16.msra.mxu0 %v2950
        %3009 = vmatprep.subr.bf16.mxu0 0
        %3010 = vmatpush2.bf16.msra.mxu0 0
        %3011 = vmatprep.subr.bf16.mxu0 0
        %3012 = vmatpush2.bf16.msra.mxu0 0
        %3013 = vmatprep.subr.bf16.mxu0 0
        %3014 = vmatpush2.bf16.msra.mxu0 0
        %3015 = vmatprep.subr.bf16.mxu0 0
        %3016 = vmatpush2.bf16.msra.mxu0 0
        %3017 = vmatprep.subr.bf16.mxu0 0
        %3018 = vmatpush2.bf16.msra.mxu0 0
        %3019 = vmatprep.subr.bf16.mxu0 0
        %3020 = vmatpush2.bf16.msra.mxu0 0
        %3021 = vmatprep.subr.bf16.mxu0 0
        %3022 = vmatpush2.bf16.msra.mxu0 0
        %3023 = vmatprep.subr.bf16.mxu0 0
        %3024 = vmatpush2.bf16.msra.mxu0 0
        %3025 = vmatprep.mubr.bf16.mxu0 0
        %3026 = vmatmul.mubr.bf16.gmra.mxu0 %v2941
        %v3027 = vpop.f32.mrf.mxu0
        %v3028 = vadd.f32 0.0, %v3027
        %v3029 = vpop.f32.mrf.mxu0
        %v3030 = vpop.f32.mrf.mxu0
        %v3031 = vpop.f32.mrf.mxu0
        %3032 = vdwg.mxu0
        %v3033 = vadd.f32 %v2904, %v2987
        %v3034 = vadd.f32 %v2905, %v2989
        %v3035 = vadd.f32 %v2906, %v3028
        %v3036 = vld [vmem:[%s175] sm:$0xff]
        %s3037 = scalar_lea.vmem %s1, 92
        %v3038 = vld [vmem:[%s3037] sm:$0xf]
        %v3040 = vcombine.high %v3036, %v3036
        %v3042 = vunpack.c.l.s4 1983009808
        %v3043 = vunpack.c.0.s8 %v3042
        %v3044 = vlaneseq
        %v3045 = vshrl.u32 %v3044, 7
        %v3046 = vsub.s32 %v3043, %v3045
        %v3047 = vrot.slane %v3036, %v3046
        %v3049 = vunpack.c.l.s4 1983009808
        %v3050 = vunpack.c.0.s8 %v3049
        %v3051 = vlaneseq
        %v3052 = vshrl.u32 %v3051, 7
        %v3053 = vsub.s32 %v3050, %v3052
        %v3054 = vrot.slane %v3040, %v3053
        %v3055 = vcombine.high %v3047, %v3047
        %v3056 = vcombine.high %v3054, %v3054
        %3057 = vrot.lane.b32.xlu0 %v3047, 45
        %v3058 = vpop.permute.xlu0 %3057
        %3059 = vrot.lane.b32.xlu0 %v3055, 45
        %v3060 = vpop.permute.xlu0 %3059
        %3061 = vrot.lane.b32.xlu0 %v3054, 45
        %v3062 = vpop.permute.xlu0 %3061
        %3063 = vrot.lane.b32.xlu0 %v3056, 45
        %v3064 = vpop.permute.xlu0 %3063
        %vm3065 = vcmask 367616
        %v3066 = vsel %vm3065, %v3058, %v3060
        %v3067 = vsel %vm3065, %v3060, %v3062
        %v3068 = vsel %vm3065, %v3062, %v3064
        %v3070 = vsel %vm211, %v3038, 0
        %v3073 = vsel %vm215, %v3066, 0
        %v3076 = vsel %vm215, %v3067, 0
        %v3079 = vsel %vm215, %v3068, 0
        %3081 = vmatprep.subr.bf16.mxu0 0
        %3082 = vmatpush1.bf16.msra.mxu0 0
        %3083 = vmatprep.subr.bf16.mxu0 0
        %3084 = vmatpush1.bf16.msra.mxu0 0
        %3085 = vmatprep.subr.bf16.mxu0 0
        %3086 = vmatpush1.bf16.msra.mxu0 0
        %3087 = vmatprep.subr.bf16.mxu0 0
        %3088 = vmatpush1.bf16.msra.mxu0 0
        %3089 = vmatprep.subr.bf16.mxu0 0
        %3090 = vmatpush1.bf16.msra.mxu0 0
        %3091 = vmatprep.subr.bf16.mxu0 0
        %3092 = vmatpush1.bf16.msra.mxu0 0
        %3093 = vmatprep.subr.bf16.mxu0 0
        %3094 = vmatpush1.bf16.msra.mxu0 0
        %3095 = vmatprep.subr.bf16.mxu0 %v3076
        %3096 = vmatpush1.bf16.msra.mxu0 %v3073
        %3097 = vmatprep.subr.bf16.mxu0 0
        %3098 = vmatpush2.bf16.msra.mxu0 0
        %3099 = vmatprep.subr.bf16.mxu0 0
        %3100 = vmatpush2.bf16.msra.mxu0 0
        %3101 = vmatprep.subr.bf16.mxu0 0
        %3102 = vmatpush2.bf16.msra.mxu0 0
        %3103 = vmatprep.subr.bf16.mxu0 0
        %3104 = vmatpush2.bf16.msra.mxu0 0
        %3105 = vmatprep.subr.bf16.mxu0 0
        %3106 = vmatpush2.bf16.msra.mxu0 0
        %3107 = vmatprep.subr.bf16.mxu0 0
        %3108 = vmatpush2.bf16.msra.mxu0 0
        %3109 = vmatprep.subr.bf16.mxu0 0
        %3110 = vmatpush2.bf16.msra.mxu0 0
        %3111 = vmatprep.subr.bf16.mxu0 0
        %3112 = vmatpush2.bf16.msra.mxu0 0
        %3113 = vmatprep.mubr.bf16.mxu0 0
        %3114 = vmatmul.mubr.bf16.gmra.mxu0 %v3070
        %v3115 = vpop.f32.mrf.mxu0
        %v3116 = vadd.f32 0.0, %v3115
        %v3117 = vpop.f32.mrf.mxu0
        %v3118 = vadd.f32 0.0, %v3117
        %v3119 = vpop.f32.mrf.mxu0
        %v3120 = vpop.f32.mrf.mxu0
        %3121 = vdwg.mxu0
        %3122 = vmatprep.subr.bf16.mxu0 0
        %3123 = vmatpush1.bf16.msra.mxu0 0
        %3124 = vmatprep.subr.bf16.mxu0 0
        %3125 = vmatpush1.bf16.msra.mxu0 0
        %3126 = vmatprep.subr.bf16.mxu0 0
        %3127 = vmatpush1.bf16.msra.mxu0 0
        %3128 = vmatprep.subr.bf16.mxu0 0
        %3129 = vmatpush1.bf16.msra.mxu0 0
        %3130 = vmatprep.subr.bf16.mxu0 0
        %3131 = vmatpush1.bf16.msra.mxu0 0
        %3132 = vmatprep.subr.bf16.mxu0 0
        %3133 = vmatpush1.bf16.msra.mxu0 0
        %3134 = vmatprep.subr.bf16.mxu0 0
        %3135 = vmatpush1.bf16.msra.mxu0 0
        %3136 = vmatprep.subr.bf16.mxu0 0
        %3137 = vmatpush1.bf16.msra.mxu0 %v3079
        %3138 = vmatprep.subr.bf16.mxu0 0
        %3139 = vmatpush2.bf16.msra.mxu0 0
        %3140 = vmatprep.subr.bf16.mxu0 0
        %3141 = vmatpush2.bf16.msra.mxu0 0
        %3142 = vmatprep.subr.bf16.mxu0 0
        %3143 = vmatpush2.bf16.msra.mxu0 0
        %3144 = vmatprep.subr.bf16.mxu0 0
        %3145 = vmatpush2.bf16.msra.mxu0 0
        %3146 = vmatprep.subr.bf16.mxu0 0
        %3147 = vmatpush2.bf16.msra.mxu0 0
        %3148 = vmatprep.subr.bf16.mxu0 0
        %3149 = vmatpush2.bf16.msra.mxu0 0
        %3150 = vmatprep.subr.bf16.mxu0 0
        %3151 = vmatpush2.bf16.msra.mxu0 0
        %3152 = vmatprep.subr.bf16.mxu0 0
        %3153 = vmatpush2.bf16.msra.mxu0 0
        %3154 = vmatprep.mubr.bf16.mxu0 0
        %3155 = vmatmul.mubr.bf16.gmra.mxu0 %v3070
        %v3156 = vpop.f32.mrf.mxu0
        %v3157 = vadd.f32 0.0, %v3156
        %v3158 = vpop.f32.mrf.mxu0
        %v3159 = vpop.f32.mrf.mxu0
        %v3160 = vpop.f32.mrf.mxu0
        %3161 = vdwg.mxu0
        %v3162 = vadd.f32 %v3033, %v3116
        %v3163 = vadd.f32 %v3034, %v3118
        %v3164 = vadd.f32 %v3035, %v3157
        %v3165 = vld [vmem:[%s175] sm:$0xff]
        %s3166 = scalar_lea.vmem %s1, 96
        %v3167 = vld [vmem:[%s3166] sm:$0xf]
        %v3169 = vcombine.high %v3165, %v3165
        %v3171 = vunpack.c.l.s4 1983009808
        %v3172 = vunpack.c.0.s8 %v3171
        %v3173 = vlaneseq
        %v3174 = vshrl.u32 %v3173, 7
        %v3175 = vsub.s32 %v3172, %v3174
        %v3176 = vrot.slane %v3165, %v3175
        %v3178 = vunpack.c.l.s4 1983009808
        %v3179 = vunpack.c.0.s8 %v3178
        %v3180 = vlaneseq
        %v3181 = vshrl.u32 %v3180, 7
        %v3182 = vsub.s32 %v3179, %v3181
        %v3183 = vrot.slane %v3169, %v3182
        %v3184 = vcombine.high %v3176, %v3176
        %v3185 = vcombine.high %v3183, %v3183
        %3186 = vrot.lane.b32.xlu0 %v3176, 44
        %v3187 = vpop.permute.xlu0 %3186
        %3188 = vrot.lane.b32.xlu0 %v3184, 44
        %v3189 = vpop.permute.xlu0 %3188
        %3190 = vrot.lane.b32.xlu0 %v3183, 44
        %v3191 = vpop.permute.xlu0 %3190
        %3192 = vrot.lane.b32.xlu0 %v3185, 44
        %v3193 = vpop.permute.xlu0 %3192
        %vm3194 = vcmask 359424
        %v3195 = vsel %vm3194, %v3187, %v3189
        %v3196 = vsel %vm3194, %v3189, %v3191
        %v3197 = vsel %vm3194, %v3191, %v3193
        %v3199 = vsel %vm211, %v3167, 0
        %v3202 = vsel %vm215, %v3195, 0
        %v3205 = vsel %vm215, %v3196, 0
        %v3208 = vsel %vm215, %v3197, 0
        %3210 = vmatprep.subr.bf16.mxu0 0
        %3211 = vmatpush1.bf16.msra.mxu0 0
        %3212 = vmatprep.subr.bf16.mxu0 0
        %3213 = vmatpush1.bf16.msra.mxu0 0
        %3214 = vmatprep.subr.bf16.mxu0 0
        %3215 = vmatpush1.bf16.msra.mxu0 0
        %3216 = vmatprep.subr.bf16.mxu0 0
        %3217 = vmatpush1.bf16.msra.mxu0 0
        %3218 = vmatprep.subr.bf16.mxu0 0
        %3219 = vmatpush1.bf16.msra.mxu0 0
        %3220 = vmatprep.subr.bf16.mxu0 0
        %3221 = vmatpush1.bf16.msra.mxu0 0
        %3222 = vmatprep.subr.bf16.mxu0 0
        %3223 = vmatpush1.bf16.msra.mxu0 0
        %3224 = vmatprep.subr.bf16.mxu0 %v3205
        %3225 = vmatpush1.bf16.msra.mxu0 %v3202
        %3226 = vmatprep.subr.bf16.mxu0 0
        %3227 = vmatpush2.bf16.msra.mxu0 0
        %3228 = vmatprep.subr.bf16.mxu0 0
        %3229 = vmatpush2.bf16.msra.mxu0 0
        %3230 = vmatprep.subr.bf16.mxu0 0
        %3231 = vmatpush2.bf16.msra.mxu0 0
        %3232 = vmatprep.subr.bf16.mxu0 0
        %3233 = vmatpush2.bf16.msra.mxu0 0
        %3234 = vmatprep.subr.bf16.mxu0 0
        %3235 = vmatpush2.bf16.msra.mxu0 0
        %3236 = vmatprep.subr.bf16.mxu0 0
        %3237 = vmatpush2.bf16.msra.mxu0 0
        %3238 = vmatprep.subr.bf16.mxu0 0
        %3239 = vmatpush2.bf16.msra.mxu0 0
        %3240 = vmatprep.subr.bf16.mxu0 0
        %3241 = vmatpush2.bf16.msra.mxu0 0
        %3242 = vmatprep.mubr.bf16.mxu0 0
        %3243 = vmatmul.mubr.bf16.gmra.mxu0 %v3199
        %v3244 = vpop.f32.mrf.mxu0
        %v3245 = vadd.f32 0.0, %v3244
        %v3246 = vpop.f32.mrf.mxu0
        %v3247 = vadd.f32 0.0, %v3246
        %v3248 = vpop.f32.mrf.mxu0
        %v3249 = vpop.f32.mrf.mxu0
        %3250 = vdwg.mxu0
        %3251 = vmatprep.subr.bf16.mxu0 0
        %3252 = vmatpush1.bf16.msra.mxu0 0
        %3253 = vmatprep.subr.bf16.mxu0 0
        %3254 = vmatpush1.bf16.msra.mxu0 0
        %3255 = vmatprep.subr.bf16.mxu0 0
        %3256 = vmatpush1.bf16.msra.mxu0 0
        %3257 = vmatprep.subr.bf16.mxu0 0
        %3258 = vmatpush1.bf16.msra.mxu0 0
        %3259 = vmatprep.subr.bf16.mxu0 0
        %3260 = vmatpush1.bf16.msra.mxu0 0
        %3261 = vmatprep.subr.bf16.mxu0 0
        %3262 = vmatpush1.bf16.msra.mxu0 0
        %3263 = vmatprep.subr.bf16.mxu0 0
        %3264 = vmatpush1.bf16.msra.mxu0 0
        %3265 = vmatprep.subr.bf16.mxu0 0
        %3266 = vmatpush1.bf16.msra.mxu0 %v3208
        %3267 = vmatprep.subr.bf16.mxu0 0
        %3268 = vmatpush2.bf16.msra.mxu0 0
        %3269 = vmatprep.subr.bf16.mxu0 0
        %3270 = vmatpush2.bf16.msra.mxu0 0
        %3271 = vmatprep.subr.bf16.mxu0 0
        %3272 = vmatpush2.bf16.msra.mxu0 0
        %3273 = vmatprep.subr.bf16.mxu0 0
        %3274 = vmatpush2.bf16.msra.mxu0 0
        %3275 = vmatprep.subr.bf16.mxu0 0
        %3276 = vmatpush2.bf16.msra.mxu0 0
        %3277 = vmatprep.subr.bf16.mxu0 0
        %3278 = vmatpush2.bf16.msra.mxu0 0
        %3279 = vmatprep.subr.bf16.mxu0 0
        %3280 = vmatpush2.bf16.msra.mxu0 0
        %3281 = vmatprep.subr.bf16.mxu0 0
        %3282 = vmatpush2.bf16.msra.mxu0 0
        %3283 = vmatprep.mubr.bf16.mxu0 0
        %3284 = vmatmul.mubr.bf16.gmra.mxu0 %v3199
        %v3285 = vpop.f32.mrf.mxu0
        %v3286 = vadd.f32 0.0, %v3285
        %v3287 = vpop.f32.mrf.mxu0
        %v3288 = vpop.f32.mrf.mxu0
        %v3289 = vpop.f32.mrf.mxu0
        %3290 = vdwg.mxu0
        %v3291 = vadd.f32 %v3162, %v3245
        %v3292 = vadd.f32 %v3163, %v3247
        %v3293 = vadd.f32 %v3164, %v3286
        %v3295 = vcombine.high %v3291, %v3291
        %v3297 = vunpack.c.l.s4 1966171168
        %v3298 = vunpack.c.0.s8 %v3297
        %v3299 = vlaneseq
        %v3300 = vshrl.u32 %v3299, 7
        %v3301 = vsub.s32 %v3298, %v3300
        %v3302 = vrot.slane %v3291, %v3301
        %v3304 = vunpack.c.l.s4 1966171168
        %v3305 = vunpack.c.0.s8 %v3304
        %v3306 = vlaneseq
        %v3307 = vshrl.u32 %v3306, 7
        %v3308 = vsub.s32 %v3305, %v3307
        %v3309 = vrot.slane %v3295, %v3308
        %v3310 = vcombine.high %v3302, %v3302
        %v3311 = vcombine.high %v3309, %v3309
        %v3313 = vunpack.c.l.s4 1966171168
        %v3314 = vunpack.c.0.s8 %v3313
        %v3315 = vlaneseq
        %v3316 = vshrl.u32 %v3315, 7
        %v3317 = vsub.s32 %v3314, %v3316
        %v3318 = vrot.slane %v3302, %v3317
        %v3320 = vunpack.c.l.s4 1966171168
        %v3321 = vunpack.c.0.s8 %v3320
        %v3322 = vlaneseq
        %v3323 = vshrl.u32 %v3322, 7
        %v3324 = vsub.s32 %v3321, %v3323
        %v3325 = vrot.slane %v3309, %v3324
        %v3327 = vunpack.c.l.s4 1966171168
        %v3328 = vunpack.c.0.s8 %v3327
        %v3329 = vlaneseq
        %v3330 = vshrl.u32 %v3329, 7
        %v3331 = vsub.s32 %v3328, %v3330
        %v3332 = vrot.slane %v3310, %v3331
        %v3334 = vunpack.c.l.s4 1966171168
        %v3335 = vunpack.c.0.s8 %v3334
        %v3336 = vlaneseq
        %v3337 = vshrl.u32 %v3336, 7
        %v3338 = vsub.s32 %v3335, %v3337
        %v3339 = vrot.slane %v3311, %v3338
        %v3340 = vcombine.high %v3318, %v3318
        %v3341 = vcombine.high %v3325, %v3325
        %v3342 = vcombine.high %v3332, %v3332
        %v3343 = vcombine.high %v3339, %v3339
        %vm3352 = vcmask 122880
        %3353 = vst.msk [vmem:[%s164] sm:$0x1] %vm3352, %v3318
        %3354 = vst.msk [vmem:[%s164 + $0x10] sm:$0x1] %vm3352, %v3332
        %3355 = vst.msk [vmem:[%s164 + $0x20] sm:$0x1] %vm3352, %v3340
        %3356 = vst.msk [vmem:[%s164 + $0x30] sm:$0x1] %vm3352, %v3342
        %3357 = vst.msk [vmem:[%s164 + $0x40] sm:$0x1] %vm3352, %v3325
        %3358 = vst.msk [vmem:[%s164 + $0x50] sm:$0x1] %vm3352, %v3339
        %3359 = vst.msk [vmem:[%s164 + $0x60] sm:$0x1] %vm3352, %v3341
        %3360 = vst.msk [vmem:[%s164 + $0x70] sm:$0x1] %vm3352, %v3343
        %v3361 = vmul.f32 %v3291, %v3291
        %v3362 = vlaneseq
        %v3363 = vshrl.u32 %v3362, 7
        %v3364 = vsub.s32 0, %v3363
        %v3365 = vrot.slane %v3318, %v3364
        %v3366 = vlaneseq
        %v3367 = vshrl.u32 %v3366, 7
        %v3368 = vsub.s32 0, %v3367
        %v3369 = vrot.slane %v3332, %v3368
        %v3370 = vlaneseq
        %v3371 = vshrl.u32 %v3370, 7
        %v3372 = vsub.s32 0, %v3371
        %v3373 = vrot.slane %v3340, %v3372
        %v3374 = vlaneseq
        %v3375 = vshrl.u32 %v3374, 7
        %v3376 = vsub.s32 0, %v3375
        %v3377 = vrot.slane %v3342, %v3376
        %v3378 = vlaneseq
        %v3379 = vshrl.u32 %v3378, 7
        %v3380 = vsub.s32 0, %v3379
        %v3381 = vrot.slane %v3325, %v3380
        %v3382 = vlaneseq
        %v3383 = vshrl.u32 %v3382, 7
        %v3384 = vsub.s32 0, %v3383
        %v3385 = vrot.slane %v3339, %v3384
        %v3386 = vlaneseq
        %v3387 = vshrl.u32 %v3386, 7
        %v3388 = vsub.s32 0, %v3387
        %v3389 = vrot.slane %v3341, %v3388
        %v3390 = vlaneseq
        %v3391 = vshrl.u32 %v3390, 7
        %v3392 = vsub.s32 0, %v3391
        %v3393 = vrot.slane %v3343, %v3392
        %3394 = vrot.lane.b32.xlu0 %v3365, 108
        %v3395 = vpop.permute.xlu0 %3394
        %3396 = vrot.lane.b32.xlu0 %v3369, 108
        %v3397 = vpop.permute.xlu0 %3396
        %3398 = vrot.lane.b32.xlu0 %v3373, 108
        %v3399 = vpop.permute.xlu0 %3398
        %3400 = vrot.lane.b32.xlu0 %v3377, 108
        %v3401 = vpop.permute.xlu0 %3400
        %3402 = vrot.lane.b32.xlu0 %v3381, 108
        %v3403 = vpop.permute.xlu0 %3402
        %3404 = vrot.lane.b32.xlu0 %v3385, 108
        %v3405 = vpop.permute.xlu0 %3404
        %3406 = vrot.lane.b32.xlu0 %v3389, 108
        %v3407 = vpop.permute.xlu0 %3406
        %3408 = vrot.lane.b32.xlu0 %v3393, 108
        %v3409 = vpop.permute.xlu0 %3408
        %3418 = vst.msk [vmem:[%s164 + $0x1] sm:$0x1] %vm3352, %v3395
        %3419 = vst.msk [vmem:[%s164 + $0x11] sm:$0x1] %vm3352, %v3397
        %3420 = vst.msk [vmem:[%s164 + $0x21] sm:$0x1] %vm3352, %v3399
        %3421 = vst.msk [vmem:[%s164 + $0x31] sm:$0x1] %vm3352, %v3401
        %3422 = vst.msk [vmem:[%s164 + $0x41] sm:$0x1] %vm3352, %v3403
        %3423 = vst.msk [vmem:[%s164 + $0x51] sm:$0x1] %vm3352, %v3405
        %3424 = vst.msk [vmem:[%s164 + $0x61] sm:$0x1] %vm3352, %v3407
        %3425 = vst.msk [vmem:[%s164 + $0x71] sm:$0x1] %vm3352, %v3409
        %3426 = vrot.lane.b32.xlu0 %v3291, 108
        %v3427 = vpop.permute.xlu0 %3426
        %v3429 = vadd.f32 %v3291, %v3427
        %3431 = vrot.lane.b32.xlu0 %v3361, 108
        %v3432 = vpop.permute.xlu0 %3431
        %v3434 = vadd.f32 %v3361, %v3432
        %3435 = vrot.lane.b32.xlu0 %v3365, 88
        %v3436 = vpop.permute.xlu0 %3435
        %3437 = vrot.lane.b32.xlu0 %v3369, 88
        %v3438 = vpop.permute.xlu0 %3437
        %3439 = vrot.lane.b32.xlu0 %v3373, 88
        %v3440 = vpop.permute.xlu0 %3439
        %3441 = vrot.lane.b32.xlu0 %v3377, 88
        %v3442 = vpop.permute.xlu0 %3441
        %3443 = vrot.lane.b32.xlu0 %v3381, 88
        %v3444 = vpop.permute.xlu0 %3443
        %3445 = vrot.lane.b32.xlu0 %v3385, 88
        %v3446 = vpop.permute.xlu0 %3445
        %3447 = vrot.lane.b32.xlu0 %v3389, 88
        %v3448 = vpop.permute.xlu0 %3447
        %3449 = vrot.lane.b32.xlu0 %v3393, 88
        %v3450 = vpop.permute.xlu0 %3449
        %3459 = vst.msk [vmem:[%s164 + $0x2] sm:$0x1] %vm3352, %v3436
        %3460 = vst.msk [vmem:[%s164 + $0x12] sm:$0x1] %vm3352, %v3438
        %3461 = vst.msk [vmem:[%s164 + $0x22] sm:$0x1] %vm3352, %v3440
        %3462 = vst.msk [vmem:[%s164 + $0x32] sm:$0x1] %vm3352, %v3442
        %3463 = vst.msk [vmem:[%s164 + $0x42] sm:$0x1] %vm3352, %v3444
        %3464 = vst.msk [vmem:[%s164 + $0x52] sm:$0x1] %vm3352, %v3446
        %3465 = vst.msk [vmem:[%s164 + $0x62] sm:$0x1] %vm3352, %v3448
        %3466 = vst.msk [vmem:[%s164 + $0x72] sm:$0x1] %vm3352, %v3450
        %3467 = vrot.lane.b32.xlu0 %v3291, 88
        %v3468 = vpop.permute.xlu0 %3467
        %v3470 = vadd.f32 %v3429, %v3468
        %3471 = vrot.lane.b32.xlu0 %v3361, 88
        %v3472 = vpop.permute.xlu0 %3471
        %v3474 = vadd.f32 %v3434, %v3472
        %3475 = vrot.lane.b32.xlu0 %v3365, 68
        %v3476 = vpop.permute.xlu0 %3475
        %3477 = vrot.lane.b32.xlu0 %v3369, 68
        %v3478 = vpop.permute.xlu0 %3477
        %3479 = vrot.lane.b32.xlu0 %v3373, 68
        %v3480 = vpop.permute.xlu0 %3479
        %3481 = vrot.lane.b32.xlu0 %v3377, 68
        %v3482 = vpop.permute.xlu0 %3481
        %3483 = vrot.lane.b32.xlu0 %v3381, 68
        %v3484 = vpop.permute.xlu0 %3483
        %3485 = vrot.lane.b32.xlu0 %v3385, 68
        %v3486 = vpop.permute.xlu0 %3485
        %3487 = vrot.lane.b32.xlu0 %v3389, 68
        %v3488 = vpop.permute.xlu0 %3487
        %3489 = vrot.lane.b32.xlu0 %v3393, 68
        %v3490 = vpop.permute.xlu0 %3489
        %3499 = vst.msk [vmem:[%s164 + $0x3] sm:$0x1] %vm3352, %v3476
        %3500 = vst.msk [vmem:[%s164 + $0x13] sm:$0x1] %vm3352, %v3478
        %3501 = vst.msk [vmem:[%s164 + $0x23] sm:$0x1] %vm3352, %v3480
        %3502 = vst.msk [vmem:[%s164 + $0x33] sm:$0x1] %vm3352, %v3482
        %3503 = vst.msk [vmem:[%s164 + $0x43] sm:$0x1] %vm3352, %v3484
        %3504 = vst.msk [vmem:[%s164 + $0x53] sm:$0x1] %vm3352, %v3486
        %3505 = vst.msk [vmem:[%s164 + $0x63] sm:$0x1] %vm3352, %v3488
        %3506 = vst.msk [vmem:[%s164 + $0x73] sm:$0x1] %vm3352, %v3490
        %3507 = vrot.lane.b32.xlu0 %v3291, 68
        %v3508 = vpop.permute.xlu0 %3507
        %v3510 = vadd.f32 %v3470, %v3508
        %3511 = vrot.lane.b32.xlu0 %v3361, 68
        %v3512 = vpop.permute.xlu0 %3511
        %v3514 = vadd.f32 %v3474, %v3512
        %3515 = vrot.lane.b32.xlu0 %v3365, 48
        %v3516 = vpop.permute.xlu0 %3515
        %3517 = vrot.lane.b32.xlu0 %v3369, 48
        %v3518 = vpop.permute.xlu0 %3517
        %3519 = vrot.lane.b32.xlu0 %v3373, 48
        %v3520 = vpop.permute.xlu0 %3519
        %3521 = vrot.lane.b32.xlu0 %v3377, 48
        %v3522 = vpop.permute.xlu0 %3521
        %3523 = vrot.lane.b32.xlu0 %v3381, 48
        %v3524 = vpop.permute.xlu0 %3523
        %3525 = vrot.lane.b32.xlu0 %v3385, 48
        %v3526 = vpop.permute.xlu0 %3525
        %3527 = vrot.lane.b32.xlu0 %v3389, 48
        %v3528 = vpop.permute.xlu0 %3527
        %3529 = vrot.lane.b32.xlu0 %v3393, 48
        %v3530 = vpop.permute.xlu0 %3529
        %3539 = vst.msk [vmem:[%s164 + $0x4] sm:$0x1] %vm3352, %v3516
        %3540 = vst.msk [vmem:[%s164 + $0x14] sm:$0x1] %vm3352, %v3518
        %3541 = vst.msk [vmem:[%s164 + $0x24] sm:$0x1] %vm3352, %v3520
        %3542 = vst.msk [vmem:[%s164 + $0x34] sm:$0x1] %vm3352, %v3522
        %3543 = vst.msk [vmem:[%s164 + $0x44] sm:$0x1] %vm3352, %v3524
        %3544 = vst.msk [vmem:[%s164 + $0x54] sm:$0x1] %vm3352, %v3526
        %3545 = vst.msk [vmem:[%s164 + $0x64] sm:$0x1] %vm3352, %v3528
        %3546 = vst.msk [vmem:[%s164 + $0x74] sm:$0x1] %vm3352, %v3530
        %3547 = vrot.lane.b32.xlu0 %v3291, 48
        %v3548 = vpop.permute.xlu0 %3547
        %v3550 = vadd.f32 %v3510, %v3548
        %3551 = vrot.lane.b32.xlu0 %v3361, 48
        %v3552 = vpop.permute.xlu0 %3551
        %v3554 = vadd.f32 %v3514, %v3552
        %3555 = vrot.lane.b32.xlu0 %v3365, 28
        %v3556 = vpop.permute.xlu0 %3555
        %3557 = vrot.lane.b32.xlu0 %v3369, 28
        %v3558 = vpop.permute.xlu0 %3557
        %3559 = vrot.lane.b32.xlu0 %v3373, 28
        %v3560 = vpop.permute.xlu0 %3559
        %3561 = vrot.lane.b32.xlu0 %v3377, 28
        %v3562 = vpop.permute.xlu0 %3561
        %3563 = vrot.lane.b32.xlu0 %v3381, 28
        %v3564 = vpop.permute.xlu0 %3563
        %3565 = vrot.lane.b32.xlu0 %v3385, 28
        %v3566 = vpop.permute.xlu0 %3565
        %3567 = vrot.lane.b32.xlu0 %v3389, 28
        %v3568 = vpop.permute.xlu0 %3567
        %3569 = vrot.lane.b32.xlu0 %v3393, 28
        %v3570 = vpop.permute.xlu0 %3569
        %3579 = vst.msk [vmem:[%s164 + $0x5] sm:$0x1] %vm3352, %v3556
        %3580 = vst.msk [vmem:[%s164 + $0x15] sm:$0x1] %vm3352, %v3558
        %3581 = vst.msk [vmem:[%s164 + $0x25] sm:$0x1] %vm3352, %v3560
        %3582 = vst.msk [vmem:[%s164 + $0x35] sm:$0x1] %vm3352, %v3562
        %3583 = vst.msk [vmem:[%s164 + $0x45] sm:$0x1] %vm3352, %v3564
        %3584 = vst.msk [vmem:[%s164 + $0x55] sm:$0x1] %vm3352, %v3566
        %3585 = vst.msk [vmem:[%s164 + $0x65] sm:$0x1] %vm3352, %v3568
        %3586 = vst.msk [vmem:[%s164 + $0x75] sm:$0x1] %vm3352, %v3570
        %3587 = vrot.lane.b32.xlu0 %v3291, 28
        %v3588 = vpop.permute.xlu0 %3587
        %v3590 = vadd.f32 %v3550, %v3588
        %3591 = vrot.lane.b32.xlu0 %v3361, 28
        %v3592 = vpop.permute.xlu0 %3591
        %v3594 = vadd.f32 %v3554, %v3592
        %v3596 = vcombine.low %v3291, %v3292
        %v3597 = vcombine.high %v3291, %v3292
        %v3599 = vunpack.c.l.s4 1966171168
        %v3600 = vunpack.c.0.s8 %v3599
        %v3601 = vlaneseq
        %v3602 = vshrl.u32 %v3601, 7
        %v3603 = vsub.s32 %v3600, %v3602
        %v3604 = vrot.slane %v3596, %v3603
        %v3606 = vunpack.c.l.s4 1966171168
        %v3607 = vunpack.c.0.s8 %v3606
        %v3608 = vlaneseq
        %v3609 = vshrl.u32 %v3608, 7
        %v3610 = vsub.s32 %v3607, %v3609
        %v3611 = vrot.slane %v3597, %v3610
        %v3612 = vcombine.high %v3604, %v3604
        %v3613 = vcombine.high %v3611, %v3611
        %v3615 = vunpack.c.l.s4 1966171168
        %v3616 = vunpack.c.0.s8 %v3615
        %v3617 = vlaneseq
        %v3618 = vshrl.u32 %v3617, 7
        %v3619 = vsub.s32 %v3616, %v3618
        %v3620 = vrot.slane %v3604, %v3619
        %v3622 = vunpack.c.l.s4 1966171168
        %v3623 = vunpack.c.0.s8 %v3622
        %v3624 = vlaneseq
        %v3625 = vshrl.u32 %v3624, 7
        %v3626 = vsub.s32 %v3623, %v3625
        %v3627 = vrot.slane %v3611, %v3626
        %v3629 = vunpack.c.l.s4 1966171168
        %v3630 = vunpack.c.0.s8 %v3629
        %v3631 = vlaneseq
        %v3632 = vshrl.u32 %v3631, 7
        %v3633 = vsub.s32 %v3630, %v3632
        %v3634 = vrot.slane %v3612, %v3633
        %v3636 = vunpack.c.l.s4 1966171168
        %v3637 = vunpack.c.0.s8 %v3636
        %v3638 = vlaneseq
        %v3639 = vshrl.u32 %v3638, 7
        %v3640 = vsub.s32 %v3637, %v3639
        %v3641 = vrot.slane %v3613, %v3640
        %v3642 = vcombine.high %v3620, %v3620
        %v3643 = vcombine.high %v3627, %v3627
        %v3644 = vcombine.high %v3634, %v3634
        %v3645 = vcombine.high %v3641, %v3641
        %v3646 = vlaneseq
        %v3647 = vshrl.u32 %v3646, 7
        %v3648 = vsub.s32 0, %v3647
        %v3649 = vrot.slane %v3620, %v3648
        %v3650 = vlaneseq
        %v3651 = vshrl.u32 %v3650, 7
        %v3652 = vsub.s32 1, %v3651
        %v3653 = vrot.slane %v3620, %v3652
        %v3654 = vlaneseq
        %v3655 = vshrl.u32 %v3654, 7
        %v3656 = vsub.s32 0, %v3655
        %v3657 = vrot.slane %v3634, %v3656
        %v3658 = vlaneseq
        %v3659 = vshrl.u32 %v3658, 7
        %v3660 = vsub.s32 1, %v3659
        %v3661 = vrot.slane %v3634, %v3660
        %v3662 = vlaneseq
        %v3663 = vshrl.u32 %v3662, 7
        %v3664 = vsub.s32 0, %v3663
        %v3665 = vrot.slane %v3642, %v3664
        %v3666 = vlaneseq
        %v3667 = vshrl.u32 %v3666, 7
        %v3668 = vsub.s32 1, %v3667
        %v3669 = vrot.slane %v3642, %v3668
        %v3670 = vlaneseq
        %v3671 = vshrl.u32 %v3670, 7
        %v3672 = vsub.s32 0, %v3671
        %v3673 = vrot.slane %v3644, %v3672
        %v3674 = vlaneseq
        %v3675 = vshrl.u32 %v3674, 7
        %v3676 = vsub.s32 1, %v3675
        %v3677 = vrot.slane %v3644, %v3676
        %v3678 = vlaneseq
        %v3679 = vshrl.u32 %v3678, 7
        %v3680 = vsub.s32 0, %v3679
        %v3681 = vrot.slane %v3627, %v3680
        %v3682 = vlaneseq
        %v3683 = vshrl.u32 %v3682, 7
        %v3684 = vsub.s32 1, %v3683
        %v3685 = vrot.slane %v3627, %v3684
        %v3686 = vlaneseq
        %v3687 = vshrl.u32 %v3686, 7
        %v3688 = vsub.s32 0, %v3687
        %v3689 = vrot.slane %v3641, %v3688
        %v3690 = vlaneseq
        %v3691 = vshrl.u32 %v3690, 7
        %v3692 = vsub.s32 1, %v3691
        %v3693 = vrot.slane %v3641, %v3692
        %v3694 = vlaneseq
        %v3695 = vshrl.u32 %v3694, 7
        %v3696 = vsub.s32 0, %v3695
        %v3697 = vrot.slane %v3643, %v3696
        %v3698 = vlaneseq
        %v3699 = vshrl.u32 %v3698, 7
        %v3700 = vsub.s32 1, %v3699
        %v3701 = vrot.slane %v3643, %v3700
        %v3702 = vlaneseq
        %v3703 = vshrl.u32 %v3702, 7
        %v3704 = vsub.s32 0, %v3703
        %v3705 = vrot.slane %v3645, %v3704
        %v3706 = vlaneseq
        %v3707 = vshrl.u32 %v3706, 7
        %v3708 = vsub.s32 1, %v3707
        %v3709 = vrot.slane %v3645, %v3708
        %3710 = vrot.lane.b32.xlu0 %v3649, 8
        %v3711 = vpop.permute.xlu0 %3710
        %3712 = vrot.lane.b32.xlu0 %v3653, 8
        %v3713 = vpop.permute.xlu0 %3712
        %3714 = vrot.lane.b32.xlu0 %v3657, 8
        %v3715 = vpop.permute.xlu0 %3714
        %3716 = vrot.lane.b32.xlu0 %v3661, 8
        %v3717 = vpop.permute.xlu0 %3716
        %3718 = vrot.lane.b32.xlu0 %v3665, 8
        %v3719 = vpop.permute.xlu0 %3718
        %3720 = vrot.lane.b32.xlu0 %v3669, 8
        %v3721 = vpop.permute.xlu0 %3720
        %3722 = vrot.lane.b32.xlu0 %v3673, 8
        %v3723 = vpop.permute.xlu0 %3722
        %3724 = vrot.lane.b32.xlu0 %v3677, 8
        %v3725 = vpop.permute.xlu0 %3724
        %3726 = vrot.lane.b32.xlu0 %v3681, 8
        %v3727 = vpop.permute.xlu0 %3726
        %3728 = vrot.lane.b32.xlu0 %v3685, 8
        %v3729 = vpop.permute.xlu0 %3728
        %3730 = vrot.lane.b32.xlu0 %v3689, 8
        %v3731 = vpop.permute.xlu0 %3730
        %3732 = vrot.lane.b32.xlu0 %v3693, 8
        %v3733 = vpop.permute.xlu0 %3732
        %3734 = vrot.lane.b32.xlu0 %v3697, 8
        %v3735 = vpop.permute.xlu0 %3734
        %3736 = vrot.lane.b32.xlu0 %v3701, 8
        %v3737 = vpop.permute.xlu0 %3736
        %3738 = vrot.lane.b32.xlu0 %v3705, 8
        %v3739 = vpop.permute.xlu0 %3738
        %3740 = vrot.lane.b32.xlu0 %v3709, 8
        %v3741 = vpop.permute.xlu0 %3740
        %vm3742 = vcmask 64512
        %v3743 = vsel %vm3742, %v3711, %v3713
        %v3744 = vsel %vm3742, %v3715, %v3717
        %v3745 = vsel %vm3742, %v3719, %v3721
        %v3746 = vsel %vm3742, %v3723, %v3725
        %v3747 = vsel %vm3742, %v3727, %v3729
        %v3748 = vsel %vm3742, %v3731, %v3733
        %v3749 = vsel %vm3742, %v3735, %v3737
        %v3750 = vsel %vm3742, %v3739, %v3741
        %3759 = vst.msk [vmem:[%s164 + $0x6] sm:$0x1] %vm3352, %v3743
        %3760 = vst.msk [vmem:[%s164 + $0x16] sm:$0x1] %vm3352, %v3744
        %3761 = vst.msk [vmem:[%s164 + $0x26] sm:$0x1] %vm3352, %v3745
        %3762 = vst.msk [vmem:[%s164 + $0x36] sm:$0x1] %vm3352, %v3746
        %3763 = vst.msk [vmem:[%s164 + $0x46] sm:$0x1] %vm3352, %v3747
        %3764 = vst.msk [vmem:[%s164 + $0x56] sm:$0x1] %vm3352, %v3748
        %3765 = vst.msk [vmem:[%s164 + $0x66] sm:$0x1] %vm3352, %v3749
        %3766 = vst.msk [vmem:[%s164 + $0x76] sm:$0x1] %vm3352, %v3750
        %3767 = vrot.lane.b32.xlu0 %v3291, 8
        %v3768 = vpop.permute.xlu0 %3767
        %3769 = vrot.lane.b32.xlu0 %v3292, 8
        %v3770 = vpop.permute.xlu0 %3769
        %v3771 = vsel %vm3742, %v3768, %v3770
        %v3773 = vadd.f32 %v3590, %v3771
        %v3774 = vmul.f32 %v3292, %v3292
        %3776 = vrot.lane.b32.xlu0 %v3361, 8
        %v3777 = vpop.permute.xlu0 %3776
        %3778 = vrot.lane.b32.xlu0 %v3774, 8
        %v3779 = vpop.permute.xlu0 %3778
        %v3780 = vsel %vm3742, %v3777, %v3779
        %v3782 = vadd.f32 %v3594, %v3780
        %v3783 = vcombine.high %v3292, %v3292
        %v3785 = vunpack.c.l.s4 1966171168
        %v3786 = vunpack.c.0.s8 %v3785
        %v3787 = vlaneseq
        %v3788 = vshrl.u32 %v3787, 7
        %v3789 = vsub.s32 %v3786, %v3788
        %v3790 = vrot.slane %v3292, %v3789
        %v3792 = vunpack.c.l.s4 1966171168
        %v3793 = vunpack.c.0.s8 %v3792
        %v3794 = vlaneseq
        %v3795 = vshrl.u32 %v3794, 7
        %v3796 = vsub.s32 %v3793, %v3795
        %v3797 = vrot.slane %v3783, %v3796
        %v3798 = vcombine.high %v3790, %v3790
        %v3799 = vcombine.high %v3797, %v3797
        %v3801 = vunpack.c.l.s4 1966171168
        %v3802 = vunpack.c.0.s8 %v3801
        %v3803 = vlaneseq
        %v3804 = vshrl.u32 %v3803, 7
        %v3805 = vsub.s32 %v3802, %v3804
        %v3806 = vrot.slane %v3790, %v3805
        %v3808 = vunpack.c.l.s4 1966171168
        %v3809 = vunpack.c.0.s8 %v3808
        %v3810 = vlaneseq
        %v3811 = vshrl.u32 %v3810, 7
        %v3812 = vsub.s32 %v3809, %v3811
        %v3813 = vrot.slane %v3797, %v3812
        %v3815 = vunpack.c.l.s4 1966171168
        %v3816 = vunpack.c.0.s8 %v3815
        %v3817 = vlaneseq
        %v3818 = vshrl.u32 %v3817, 7
        %v3819 = vsub.s32 %v3816, %v3818
        %v3820 = vrot.slane %v3798, %v3819
        %v3822 = vunpack.c.l.s4 1966171168
        %v3823 = vunpack.c.0.s8 %v3822
        %v3824 = vlaneseq
        %v3825 = vshrl.u32 %v3824, 7
        %v3826 = vsub.s32 %v3823, %v3825
        %v3827 = vrot.slane %v3799, %v3826
        %v3828 = vcombine.high %v3806, %v3806
        %v3829 = vcombine.high %v3813, %v3813
        %v3830 = vcombine.high %v3820, %v3820
        %v3831 = vcombine.high %v3827, %v3827
        %v3832 = vlaneseq
        %v3833 = vshrl.u32 %v3832, 7
        %v3834 = vsub.s32 0, %v3833
        %v3835 = vrot.slane %v3806, %v3834
        %v3836 = vlaneseq
        %v3837 = vshrl.u32 %v3836, 7
        %v3838 = vsub.s32 0, %v3837
        %v3839 = vrot.slane %v3820, %v3838
        %v3840 = vlaneseq
        %v3841 = vshrl.u32 %v3840, 7
        %v3842 = vsub.s32 0, %v3841
        %v3843 = vrot.slane %v3828, %v3842
        %v3844 = vlaneseq
        %v3845 = vshrl.u32 %v3844, 7
        %v3846 = vsub.s32 0, %v3845
        %v3847 = vrot.slane %v3830, %v3846
        %v3848 = vlaneseq
        %v3849 = vshrl.u32 %v3848, 7
        %v3850 = vsub.s32 0, %v3849
        %v3851 = vrot.slane %v3813, %v3850
        %v3852 = vlaneseq
        %v3853 = vshrl.u32 %v3852, 7
        %v3854 = vsub.s32 0, %v3853
        %v3855 = vrot.slane %v3827, %v3854
        %v3856 = vlaneseq
        %v3857 = vshrl.u32 %v3856, 7
        %v3858 = vsub.s32 0, %v3857
        %v3859 = vrot.slane %v3829, %v3858
        %v3860 = vlaneseq
        %v3861 = vshrl.u32 %v3860, 7
        %v3862 = vsub.s32 0, %v3861
        %v3863 = vrot.slane %v3831, %v3862
        %3864 = vrot.lane.b32.xlu0 %v3835, 116
        %v3865 = vpop.permute.xlu0 %3864
        %3866 = vrot.lane.b32.xlu0 %v3839, 116
        %v3867 = vpop.permute.xlu0 %3866
        %3868 = vrot.lane.b32.xlu0 %v3843, 116
        %v3869 = vpop.permute.xlu0 %3868
        %3870 = vrot.lane.b32.xlu0 %v3847, 116
        %v3871 = vpop.permute.xlu0 %3870
        %3872 = vrot.lane.b32.xlu0 %v3851, 116
        %v3873 = vpop.permute.xlu0 %3872
        %3874 = vrot.lane.b32.xlu0 %v3855, 116
        %v3875 = vpop.permute.xlu0 %3874
        %3876 = vrot.lane.b32.xlu0 %v3859, 116
        %v3877 = vpop.permute.xlu0 %3876
        %3878 = vrot.lane.b32.xlu0 %v3863, 116
        %v3879 = vpop.permute.xlu0 %3878
        %3888 = vst.msk [vmem:[%s164 + $0x7] sm:$0x1] %vm3352, %v3865
        %3889 = vst.msk [vmem:[%s164 + $0x17] sm:$0x1] %vm3352, %v3867
        %3890 = vst.msk [vmem:[%s164 + $0x27] sm:$0x1] %vm3352, %v3869
        %3891 = vst.msk [vmem:[%s164 + $0x37] sm:$0x1] %vm3352, %v3871
        %3892 = vst.msk [vmem:[%s164 + $0x47] sm:$0x1] %vm3352, %v3873
        %3893 = vst.msk [vmem:[%s164 + $0x57] sm:$0x1] %vm3352, %v3875
        %3894 = vst.msk [vmem:[%s164 + $0x67] sm:$0x1] %vm3352, %v3877
        %3895 = vst.msk [vmem:[%s164 + $0x77] sm:$0x1] %vm3352, %v3879
        %3896 = vrot.lane.b32.xlu0 %v3292, 116
        %v3897 = vpop.permute.xlu0 %3896
        %v3899 = vadd.f32 %v3773, %v3897
        %3900 = vrot.lane.b32.xlu0 %v3774, 116
        %v3901 = vpop.permute.xlu0 %3900
        %v3903 = vadd.f32 %v3782, %v3901
        %3904 = vrot.lane.b32.xlu0 %v3835, 96
        %v3905 = vpop.permute.xlu0 %3904
        %3906 = vrot.lane.b32.xlu0 %v3839, 96
        %v3907 = vpop.permute.xlu0 %3906
        %3908 = vrot.lane.b32.xlu0 %v3843, 96
        %v3909 = vpop.permute.xlu0 %3908
        %3910 = vrot.lane.b32.xlu0 %v3847, 96
        %v3911 = vpop.permute.xlu0 %3910
        %3912 = vrot.lane.b32.xlu0 %v3851, 96
        %v3913 = vpop.permute.xlu0 %3912
        %3914 = vrot.lane.b32.xlu0 %v3855, 96
        %v3915 = vpop.permute.xlu0 %3914
        %3916 = vrot.lane.b32.xlu0 %v3859, 96
        %v3917 = vpop.permute.xlu0 %3916
        %3918 = vrot.lane.b32.xlu0 %v3863, 96
        %v3919 = vpop.permute.xlu0 %3918
        %3928 = vst.msk [vmem:[%s164 + $0x8] sm:$0x1] %vm3352, %v3905
        %3929 = vst.msk [vmem:[%s164 + $0x18] sm:$0x1] %vm3352, %v3907
        %3930 = vst.msk [vmem:[%s164 + $0x28] sm:$0x1] %vm3352, %v3909
        %3931 = vst.msk [vmem:[%s164 + $0x38] sm:$0x1] %vm3352, %v3911
        %3932 = vst.msk [vmem:[%s164 + $0x48] sm:$0x1] %vm3352, %v3913
        %3933 = vst.msk [vmem:[%s164 + $0x58] sm:$0x1] %vm3352, %v3915
        %3934 = vst.msk [vmem:[%s164 + $0x68] sm:$0x1] %vm3352, %v3917
        %3935 = vst.msk [vmem:[%s164 + $0x78] sm:$0x1] %vm3352, %v3919
        %3936 = vrot.lane.b32.xlu0 %v3292, 96
        %v3937 = vpop.permute.xlu0 %3936
        %v3939 = vadd.f32 %v3899, %v3937
        %3940 = vrot.lane.b32.xlu0 %v3774, 96
        %v3941 = vpop.permute.xlu0 %3940
        %v3943 = vadd.f32 %v3903, %v3941
        %3944 = vrot.lane.b32.xlu0 %v3835, 76
        %v3945 = vpop.permute.xlu0 %3944
        %3946 = vrot.lane.b32.xlu0 %v3839, 76
        %v3947 = vpop.permute.xlu0 %3946
        %3948 = vrot.lane.b32.xlu0 %v3843, 76
        %v3949 = vpop.permute.xlu0 %3948
        %3950 = vrot.lane.b32.xlu0 %v3847, 76
        %v3951 = vpop.permute.xlu0 %3950
        %3952 = vrot.lane.b32.xlu0 %v3851, 76
        %v3953 = vpop.permute.xlu0 %3952
        %3954 = vrot.lane.b32.xlu0 %v3855, 76
        %v3955 = vpop.permute.xlu0 %3954
        %3956 = vrot.lane.b32.xlu0 %v3859, 76
        %v3957 = vpop.permute.xlu0 %3956
        %3958 = vrot.lane.b32.xlu0 %v3863, 76
        %v3959 = vpop.permute.xlu0 %3958
        %3968 = vst.msk [vmem:[%s164 + $0x9] sm:$0x1] %vm3352, %v3945
        %3969 = vst.msk [vmem:[%s164 + $0x19] sm:$0x1] %vm3352, %v3947
        %3970 = vst.msk [vmem:[%s164 + $0x29] sm:$0x1] %vm3352, %v3949
        %3971 = vst.msk [vmem:[%s164 + $0x39] sm:$0x1] %vm3352, %v3951
        %3972 = vst.msk [vmem:[%s164 + $0x49] sm:$0x1] %vm3352, %v3953
        %3973 = vst.msk [vmem:[%s164 + $0x59] sm:$0x1] %vm3352, %v3955
        %3974 = vst.msk [vmem:[%s164 + $0x69] sm:$0x1] %vm3352, %v3957
        %3975 = vst.msk [vmem:[%s164 + $0x79] sm:$0x1] %vm3352, %v3959
        %3976 = vrot.lane.b32.xlu0 %v3292, 76
        %v3977 = vpop.permute.xlu0 %3976
        %v3979 = vadd.f32 %v3939, %v3977
        %3980 = vrot.lane.b32.xlu0 %v3774, 76
        %v3981 = vpop.permute.xlu0 %3980
        %v3983 = vadd.f32 %v3943, %v3981
        %3984 = vrot.lane.b32.xlu0 %v3835, 56
        %v3985 = vpop.permute.xlu0 %3984
        %3986 = vrot.lane.b32.xlu0 %v3839, 56
        %v3987 = vpop.permute.xlu0 %3986
        %3988 = vrot.lane.b32.xlu0 %v3843, 56
        %v3989 = vpop.permute.xlu0 %3988
        %3990 = vrot.lane.b32.xlu0 %v3847, 56
        %v3991 = vpop.permute.xlu0 %3990
        %3992 = vrot.lane.b32.xlu0 %v3851, 56
        %v3993 = vpop.permute.xlu0 %3992
        %3994 = vrot.lane.b32.xlu0 %v3855, 56
        %v3995 = vpop.permute.xlu0 %3994
        %3996 = vrot.lane.b32.xlu0 %v3859, 56
        %v3997 = vpop.permute.xlu0 %3996
        %3998 = vrot.lane.b32.xlu0 %v3863, 56
        %v3999 = vpop.permute.xlu0 %3998
        %4008 = vst.msk [vmem:[%s164 + $0xa] sm:$0x1] %vm3352, %v3985
        %4009 = vst.msk [vmem:[%s164 + $0x1a] sm:$0x1] %vm3352, %v3987
        %4010 = vst.msk [vmem:[%s164 + $0x2a] sm:$0x1] %vm3352, %v3989
        %4011 = vst.msk [vmem:[%s164 + $0x3a] sm:$0x1] %vm3352, %v3991
        %4012 = vst.msk [vmem:[%s164 + $0x4a] sm:$0x1] %vm3352, %v3993
        %4013 = vst.msk [vmem:[%s164 + $0x5a] sm:$0x1] %vm3352, %v3995
        %4014 = vst.msk [vmem:[%s164 + $0x6a] sm:$0x1] %vm3352, %v3997
        %4015 = vst.msk [vmem:[%s164 + $0x7a] sm:$0x1] %vm3352, %v3999
        %4016 = vrot.lane.b32.xlu0 %v3292, 56
        %v4017 = vpop.permute.xlu0 %4016
        %v4019 = vadd.f32 %v3979, %v4017
        %4020 = vrot.lane.b32.xlu0 %v3774, 56
        %v4021 = vpop.permute.xlu0 %4020
        %v4023 = vadd.f32 %v3983, %v4021
        %4024 = vrot.lane.b32.xlu0 %v3835, 36
        %v4025 = vpop.permute.xlu0 %4024
        %4026 = vrot.lane.b32.xlu0 %v3839, 36
        %v4027 = vpop.permute.xlu0 %4026
        %4028 = vrot.lane.b32.xlu0 %v3843, 36
        %v4029 = vpop.permute.xlu0 %4028
        %4030 = vrot.lane.b32.xlu0 %v3847, 36
        %v4031 = vpop.permute.xlu0 %4030
        %4032 = vrot.lane.b32.xlu0 %v3851, 36
        %v4033 = vpop.permute.xlu0 %4032
        %4034 = vrot.lane.b32.xlu0 %v3855, 36
        %v4035 = vpop.permute.xlu0 %4034
        %4036 = vrot.lane.b32.xlu0 %v3859, 36
        %v4037 = vpop.permute.xlu0 %4036
        %4038 = vrot.lane.b32.xlu0 %v3863, 36
        %v4039 = vpop.permute.xlu0 %4038
        %4048 = vst.msk [vmem:[%s164 + $0xb] sm:$0x1] %vm3352, %v4025
        %4049 = vst.msk [vmem:[%s164 + $0x1b] sm:$0x1] %vm3352, %v4027
        %4050 = vst.msk [vmem:[%s164 + $0x2b] sm:$0x1] %vm3352, %v4029
        %4051 = vst.msk [vmem:[%s164 + $0x3b] sm:$0x1] %vm3352, %v4031
        %4052 = vst.msk [vmem:[%s164 + $0x4b] sm:$0x1] %vm3352, %v4033
        %4053 = vst.msk [vmem:[%s164 + $0x5b] sm:$0x1] %vm3352, %v4035
        %4054 = vst.msk [vmem:[%s164 + $0x6b] sm:$0x1] %vm3352, %v4037
        %4055 = vst.msk [vmem:[%s164 + $0x7b] sm:$0x1] %vm3352, %v4039
        %4056 = vrot.lane.b32.xlu0 %v3292, 36
        %v4057 = vpop.permute.xlu0 %4056
        %v4059 = vadd.f32 %v4019, %v4057
        %4060 = vrot.lane.b32.xlu0 %v3774, 36
        %v4061 = vpop.permute.xlu0 %4060
        %v4063 = vadd.f32 %v4023, %v4061
        %4064 = vrot.lane.b32.xlu0 %v3835, 16
        %v4065 = vpop.permute.xlu0 %4064
        %4066 = vrot.lane.b32.xlu0 %v3839, 16
        %v4067 = vpop.permute.xlu0 %4066
        %4068 = vrot.lane.b32.xlu0 %v3843, 16
        %v4069 = vpop.permute.xlu0 %4068
        %4070 = vrot.lane.b32.xlu0 %v3847, 16
        %v4071 = vpop.permute.xlu0 %4070
        %4072 = vrot.lane.b32.xlu0 %v3851, 16
        %v4073 = vpop.permute.xlu0 %4072
        %4074 = vrot.lane.b32.xlu0 %v3855, 16
        %v4075 = vpop.permute.xlu0 %4074
        %4076 = vrot.lane.b32.xlu0 %v3859, 16
        %v4077 = vpop.permute.xlu0 %4076
        %4078 = vrot.lane.b32.xlu0 %v3863, 16
        %v4079 = vpop.permute.xlu0 %4078
        %4088 = vst.msk [vmem:[%s164 + $0xc] sm:$0x1] %vm3352, %v4065
        %4089 = vst.msk [vmem:[%s164 + $0x1c] sm:$0x1] %vm3352, %v4067
        %4090 = vst.msk [vmem:[%s164 + $0x2c] sm:$0x1] %vm3352, %v4069
        %4091 = vst.msk [vmem:[%s164 + $0x3c] sm:$0x1] %vm3352, %v4071
        %4092 = vst.msk [vmem:[%s164 + $0x4c] sm:$0x1] %vm3352, %v4073
        %4093 = vst.msk [vmem:[%s164 + $0x5c] sm:$0x1] %vm3352, %v4075
        %4094 = vst.msk [vmem:[%s164 + $0x6c] sm:$0x1] %vm3352, %v4077
        %4095 = vst.msk [vmem:[%s164 + $0x7c] sm:$0x1] %vm3352, %v4079
        %4096 = vrot.lane.b32.xlu0 %v3292, 16
        %v4097 = vpop.permute.xlu0 %4096
        %v4099 = vadd.f32 %v4059, %v4097
        %4100 = vrot.lane.b32.xlu0 %v3774, 16
        %v4101 = vpop.permute.xlu0 %4100
        %v4103 = vadd.f32 %v4063, %v4101
        %v4105 = vcombine.high %v3293, %v3293
        %v4107 = vunpack.c.l.s4 1966171168
        %v4108 = vunpack.c.0.s8 %v4107
        %v4109 = vlaneseq
        %v4110 = vshrl.u32 %v4109, 7
        %v4111 = vsub.s32 %v4108, %v4110
        %v4112 = vrot.slane %v3293, %v4111
        %v4114 = vunpack.c.l.s4 1966171168
        %v4115 = vunpack.c.0.s8 %v4114
        %v4116 = vlaneseq
        %v4117 = vshrl.u32 %v4116, 7
        %v4118 = vsub.s32 %v4115, %v4117
        %v4119 = vrot.slane %v4105, %v4118
        %v4120 = vcombine.high %v4112, %v4112
        %v4121 = vcombine.high %v4119, %v4119
        %v4123 = vunpack.c.l.s4 1966171168
        %v4124 = vunpack.c.0.s8 %v4123
        %v4125 = vlaneseq
        %v4126 = vshrl.u32 %v4125, 7
        %v4127 = vsub.s32 %v4124, %v4126
        %v4128 = vrot.slane %v4112, %v4127
        %v4130 = vunpack.c.l.s4 1966171168
        %v4131 = vunpack.c.0.s8 %v4130
        %v4132 = vlaneseq
        %v4133 = vshrl.u32 %v4132, 7
        %v4134 = vsub.s32 %v4131, %v4133
        %v4135 = vrot.slane %v4119, %v4134
        %v4137 = vunpack.c.l.s4 1966171168
        %v4138 = vunpack.c.0.s8 %v4137
        %v4139 = vlaneseq
        %v4140 = vshrl.u32 %v4139, 7
        %v4141 = vsub.s32 %v4138, %v4140
        %v4142 = vrot.slane %v4120, %v4141
        %v4144 = vunpack.c.l.s4 1966171168
        %v4145 = vunpack.c.0.s8 %v4144
        %v4146 = vlaneseq
        %v4147 = vshrl.u32 %v4146, 7
        %v4148 = vsub.s32 %v4145, %v4147
        %v4149 = vrot.slane %v4121, %v4148
        %v4150 = vcombine.high %v4128, %v4128
        %v4151 = vcombine.high %v4135, %v4135
        %v4152 = vcombine.high %v4142, %v4142
        %v4153 = vcombine.high %v4149, %v4149
        %v4154 = vlaneseq
        %v4155 = vshrl.u32 %v4154, 7
        %v4156 = vsub.s32 0, %v4155
        %v4157 = vrot.slane %v4128, %v4156
        %v4158 = vlaneseq
        %v4159 = vshrl.u32 %v4158, 7
        %v4160 = vsub.s32 0, %v4159
        %v4161 = vrot.slane %v4142, %v4160
        %v4162 = vlaneseq
        %v4163 = vshrl.u32 %v4162, 7
        %v4164 = vsub.s32 0, %v4163
        %v4165 = vrot.slane %v4150, %v4164
        %v4166 = vlaneseq
        %v4167 = vshrl.u32 %v4166, 7
        %v4168 = vsub.s32 0, %v4167
        %v4169 = vrot.slane %v4152, %v4168
        %v4170 = vlaneseq
        %v4171 = vshrl.u32 %v4170, 7
        %v4172 = vsub.s32 0, %v4171
        %v4173 = vrot.slane %v4135, %v4172
        %v4174 = vlaneseq
        %v4175 = vshrl.u32 %v4174, 7
        %v4176 = vsub.s32 0, %v4175
        %v4177 = vrot.slane %v4149, %v4176
        %v4178 = vlaneseq
        %v4179 = vshrl.u32 %v4178, 7
        %v4180 = vsub.s32 0, %v4179
        %v4181 = vrot.slane %v4151, %v4180
        %v4182 = vlaneseq
        %v4183 = vshrl.u32 %v4182, 7
        %v4184 = vsub.s32 0, %v4183
        %v4185 = vrot.slane %v4153, %v4184
        %4186 = vrot.lane.b32.xlu0 %v4157, 124
        %v4187 = vpop.permute.xlu0 %4186
        %4188 = vrot.lane.b32.xlu0 %v4161, 124
        %v4189 = vpop.permute.xlu0 %4188
        %4190 = vrot.lane.b32.xlu0 %v4165, 124
        %v4191 = vpop.permute.xlu0 %4190
        %4192 = vrot.lane.b32.xlu0 %v4169, 124
        %v4193 = vpop.permute.xlu0 %4192
        %4194 = vrot.lane.b32.xlu0 %v4173, 124
        %v4195 = vpop.permute.xlu0 %4194
        %4196 = vrot.lane.b32.xlu0 %v4177, 124
        %v4197 = vpop.permute.xlu0 %4196
        %4198 = vrot.lane.b32.xlu0 %v4181, 124
        %v4199 = vpop.permute.xlu0 %4198
        %4200 = vrot.lane.b32.xlu0 %v4185, 124
        %v4201 = vpop.permute.xlu0 %4200
        %4210 = vst.msk [vmem:[%s164 + $0xd] sm:$0x1] %vm3352, %v4187
        %4211 = vst.msk [vmem:[%s164 + $0x1d] sm:$0x1] %vm3352, %v4189
        %4212 = vst.msk [vmem:[%s164 + $0x2d] sm:$0x1] %vm3352, %v4191
        %4213 = vst.msk [vmem:[%s164 + $0x3d] sm:$0x1] %vm3352, %v4193
        %4214 = vst.msk [vmem:[%s164 + $0x4d] sm:$0x1] %vm3352, %v4195
        %4215 = vst.msk [vmem:[%s164 + $0x5d] sm:$0x1] %vm3352, %v4197
        %4216 = vst.msk [vmem:[%s164 + $0x6d] sm:$0x1] %vm3352, %v4199
        %4217 = vst.msk [vmem:[%s164 + $0x7d] sm:$0x1] %vm3352, %v4201
        %4218 = vrot.lane.b32.xlu0 %v3293, 124
        %v4219 = vpop.permute.xlu0 %4218
        %v4221 = vadd.f32 %v4099, %v4219
        %v4222 = vmul.f32 %v3293, %v3293
        %4224 = vrot.lane.b32.xlu0 %v4222, 124
        %v4225 = vpop.permute.xlu0 %4224
        %v4227 = vadd.f32 %v4103, %v4225
        %4228 = vrot.lane.b32.xlu0 %v4157, 104
        %v4229 = vpop.permute.xlu0 %4228
        %4230 = vrot.lane.b32.xlu0 %v4161, 104
        %v4231 = vpop.permute.xlu0 %4230
        %4232 = vrot.lane.b32.xlu0 %v4165, 104
        %v4233 = vpop.permute.xlu0 %4232
        %4234 = vrot.lane.b32.xlu0 %v4169, 104
        %v4235 = vpop.permute.xlu0 %4234
        %4236 = vrot.lane.b32.xlu0 %v4173, 104
        %v4237 = vpop.permute.xlu0 %4236
        %4238 = vrot.lane.b32.xlu0 %v4177, 104
        %v4239 = vpop.permute.xlu0 %4238
        %4240 = vrot.lane.b32.xlu0 %v4181, 104
        %v4241 = vpop.permute.xlu0 %4240
        %4242 = vrot.lane.b32.xlu0 %v4185, 104
        %v4243 = vpop.permute.xlu0 %4242
        %4252 = vst.msk [vmem:[%s164 + $0xe] sm:$0x1] %vm3352, %v4229
        %4253 = vst.msk [vmem:[%s164 + $0x1e] sm:$0x1] %vm3352, %v4231
        %4254 = vst.msk [vmem:[%s164 + $0x2e] sm:$0x1] %vm3352, %v4233
        %4255 = vst.msk [vmem:[%s164 + $0x3e] sm:$0x1] %vm3352, %v4235
        %4256 = vst.msk [vmem:[%s164 + $0x4e] sm:$0x1] %vm3352, %v4237
        %4257 = vst.msk [vmem:[%s164 + $0x5e] sm:$0x1] %vm3352, %v4239
        %4258 = vst.msk [vmem:[%s164 + $0x6e] sm:$0x1] %vm3352, %v4241
        %4259 = vst.msk [vmem:[%s164 + $0x7e] sm:$0x1] %vm3352, %v4243
        %4260 = vrot.lane.b32.xlu0 %v3293, 104
        %v4261 = vpop.permute.xlu0 %4260
        %v4263 = vadd.f32 %v4221, %v4261
        %4264 = vrot.lane.b32.xlu0 %v4222, 104
        %v4265 = vpop.permute.xlu0 %4264
        %v4267 = vadd.f32 %v4227, %v4265
        %4268 = vrot.lane.b32.xlu0 %v4157, 84
        %v4269 = vpop.permute.xlu0 %4268
        %4270 = vrot.lane.b32.xlu0 %v4161, 84
        %v4271 = vpop.permute.xlu0 %4270
        %4272 = vrot.lane.b32.xlu0 %v4165, 84
        %v4273 = vpop.permute.xlu0 %4272
        %4274 = vrot.lane.b32.xlu0 %v4169, 84
        %v4275 = vpop.permute.xlu0 %4274
        %4276 = vrot.lane.b32.xlu0 %v4173, 84
        %v4277 = vpop.permute.xlu0 %4276
        %4278 = vrot.lane.b32.xlu0 %v4177, 84
        %v4279 = vpop.permute.xlu0 %4278
        %4280 = vrot.lane.b32.xlu0 %v4181, 84
        %v4281 = vpop.permute.xlu0 %4280
        %4282 = vrot.lane.b32.xlu0 %v4185, 84
        %v4283 = vpop.permute.xlu0 %4282
        %4292 = vst.msk [vmem:[%s164 + $0xf] sm:$0x1] %vm3352, %v4269
        %4293 = vst.msk [vmem:[%s164 + $0x1f] sm:$0x1] %vm3352, %v4271
        %4294 = vst.msk [vmem:[%s164 + $0x2f] sm:$0x1] %vm3352, %v4273
        %4295 = vst.msk [vmem:[%s164 + $0x3f] sm:$0x1] %vm3352, %v4275
        %4296 = vst.msk [vmem:[%s164 + $0x4f] sm:$0x1] %vm3352, %v4277
        %4297 = vst.msk [vmem:[%s164 + $0x5f] sm:$0x1] %vm3352, %v4279
        %4298 = vst.msk [vmem:[%s164 + $0x6f] sm:$0x1] %vm3352, %v4281
        %4299 = vst.msk [vmem:[%s164 + $0x7f] sm:$0x1] %vm3352, %v4283
        %4300 = vrot.lane.b32.xlu0 %v3293, 84
        %v4301 = vpop.permute.xlu0 %4300
        %v4303 = vadd.f32 %v4263, %v4301
        %4304 = vrot.lane.b32.xlu0 %v4222, 84
        %v4305 = vpop.permute.xlu0 %4304
        %v4307 = vadd.f32 %v4267, %v4305
        %vm4308 = vcmask 130048
        %v4309 = vsel %vm4308, %v4303, 0.0
        %4310 = vadd.xlane.f32.xlu0 %v4309
        %v4311 = vpop.xlane.xlu0 %4310
        %vm4312 = vcmask 7168
        %4313 = vst.msk [vmem:[%s179] sm:$0xff] %vm4312, %v4311
        %v4314 = vsel %vm4308, %v4307, 0.0
        %4315 = vadd.xlane.f32.xlu0 %v4314
        %v4316 = vpop.xlane.xlu0 %4315
        %vm4317 = vcmask 15368
        %4318 = vst.msk [vmem:[%s179] sm:$0xff] %vm4317, %v4316
        %s4319 = sand.u32 %s73, 1
        %s4320 = scalar_lea.sflag [#allocation3], %s4319
        %s4321 = sand.u32 %s73, 1
        %s4322 = smul.addr %s4321, 128
        %s4323 = scalar_lea.vmem [#allocation2], %s4322
        %p4324 = scmp.lt.s32.totalorder %s18, 1
        %s4325 = scalar_select %p4324, %s18, 1
        %s4326 = smul.addr %s4325, 8
        %s4327 = scalar_lea.vmem %s3, %s4326
        // Predicated region
        $region29: #{tpu_custom_call.1} parent=27 // pred_check
          %p4328 = pneg %p83
        $region30: #{tpu_custom_call.1} parent=27 // pred_check_branch
          %4330 = sbr.rel (%p4328) target = $region32
        $region31: #{tpu_custom_call.1} parent=27 // pred_region
          %s4332 = ssub.s32 2048, 2048
          %4333 = vsyncadd %s4320, %s4332
          %s4334 = smul.addr %s18, 16
          %s4335 = smul.addr %s4334, 128
          %s4336 = scalar_lea.hbm %s2, %s4335
          %s4337 = sshll.u32 %s4323, 4
          %s4338 = int_to_ptr.vmem [resolvable:$true] %s4337
          %4343 = dma.vmem_to_hbm [thread:$0]  %s4338, 2048, %s4336, %s4320, 128, 128, 8
        $region32: #{tpu_custom_call.1} parent=27 // pred_fallthru
          _
        // Predicated region
        $region33: #{tpu_custom_call.1} parent=27 // pred_check
          %p4344 = pneg %p109
        $region34: #{tpu_custom_call.1} parent=27 // pred_check_branch
          %4346 = sbr.rel (%p4344) target = $region36
        $region35: #{tpu_custom_call.1} parent=27 // pred_region
          _
        $region36: #{tpu_custom_call.1} parent=27 // pred_fallthru
          _
      $region28: #{tpu_custom_call.1} parent=5 // pred_fallthru
        _
      %p4347 = scmp.le.s32.totalorder 2, %s13
      // Predicated region
      $region37: #{tpu_custom_call.1} parent=5 // pred_check
        %p4348 = pneg %p4347
      $region38: #{tpu_custom_call.1} parent=5 // pred_check_branch
        %4350 = sbr.rel (%p4348) target = $region40
      $region39: #{tpu_custom_call.1} parent=5 // pred_region
        %s4351 = ssub.s32 %s13, 2
        // Predicated region
        $region41: #{tpu_custom_call.1} parent=39 // pred_check
          %p4352 = pneg %p89
        $region42: #{tpu_custom_call.1} parent=39 // pred_check_branch
          %4354 = sbr.rel (%p4352) target = $region44
        $region43: #{tpu_custom_call.1} parent=39 // pred_region
          %s4355 = sand.u32 %s74, 1
          %s4356 = scalar_lea.sflag [#allocation3], %s4355
          %s4357 = sand.u32 %s74, 1
          %s4358 = smul.addr %s4357, 128
          %s4359 = scalar_lea.vmem [#allocation2], %s4358
          %4360 = dma.done %s4356, 2048
        $region44: #{tpu_custom_call.1} parent=39 // pred_fallthru
          _
        // Predicated region
        $region45: #{tpu_custom_call.1} parent=39 // pred_check
          %p4361 = pneg %p115
        $region46: #{tpu_custom_call.1} parent=39 // pred_check_branch
          %4363 = sbr.rel (%p4361) target = $region48
        $region47: #{tpu_custom_call.1} parent=39 // pred_region
          %p4364 = scmp.lt.s32.totalorder %s19, 1
          %s4365 = scalar_select %p4364, %s19, 1
          %s4366 = smul.addr %s4365, 8
          %s4367 = scalar_lea.vmem %s3, %s4366
        $region48: #{tpu_custom_call.1} parent=39 // pred_fallthru
          _
      $region40: #{tpu_custom_call.1} parent=5 // pred_fallthru
        _
    $region6: #{tpu_custom_call.1} parent=1 // loop_footer
      %s17 = sadd.s32 1, %s13
    $region7: #{tpu_custom_call.1} parent=1 // loop_footer_branch
      %12 = sbr.rel target = $region3
    $region8: #{tpu_custom_call.1} parent=1 // loop_exit
      _
    %4368 = vsyncpa [#allocation3], 1
    %s4369 = scalar_lea.sflag [#allocation3], 1
    %4370 = vsyncpa %s4369, 1

</llo_original>
